<compile_context>
chip_gen: v7x
topology: tpu7x:2x2x1
jax: 0.10.0
libtpu: 0.0.40
codegen_flags: <defaults>
</compile_context>

<pallas_src>
import functools
import math

import jax
import jax.numpy as jnp
from jax.experimental import pallas as pl

# ------------------------- model hyper-params (small) ------------------------
INPUT_DIM = 8
HIDDEN = 32
HEADS = 4
HEAD_DIM = HIDDEN // HEADS
FF = HIDDEN * 4
LAYERS = 2
BATCH = 2
SEQ = 8
MAX_SEQ = 64
LN_EPS = 1e-5
BN_EPS = 1e-5
ATTN_SCALE = 1.0 / math.sqrt(HEAD_DIM)
NUM_REG_HEADS = 3            # volatility, price_change, spread
OUT_COLS = 8                 # [vol, price, spread, dir_logit, dir_prob, pad x3]
SLAB_WIDTH = 128


# ------------------------------- kernel helpers -------------------------------
def _layer_norm(v, g, b, eps=LN_EPS):
    mu = jnp.mean(v, axis=-1, keepdims=True)
    var = jnp.mean((v - mu) ** 2, axis=-1, keepdims=True)
    return (v - mu) * jax.lax.rsqrt(var + eps) * g + b


def _softmax_lastdim(s):
    m = jnp.max(s, axis=-1, keepdims=True)
    p = jnp.exp(s - m)
    return p / jnp.sum(p, axis=-1, keepdims=True)


# ------------------------------- fused kernel ---------------------------------
def fused_forward_kernel(x_ref, slab_ref, out_ref, *, layout, batch, seq):
    B, S = batch, seq
    E, H, Dh = HIDDEN, HEADS, HEAD_DIM

    def g(name):
        off, r, c = layout[name]          # static python ints -> static slice
        return slab_ref[off:off + r, 0:c]

    # ---- input embedding + positional encoding (pe pre-tiled to (B*S, E)) ----
    x = x_ref[...].reshape(B * S, INPUT_DIM)
    h = jnp.dot(x, g("emb_w"), preferred_element_type=jnp.float32) + g("emb_b")
    h = h + g("pe")

    # ---- transformer encoder: post-norm, ReLU FF, eval-mode (dropout = id) ----
    for l in range(LAYERS):
        qkv = jnp.dot(h, g(f"ipw{l}"),
                      preferred_element_type=jnp.float32) + g(f"ipb{l}")     # (B*S, 3E)
        qkv3 = qkv.reshape(B, S, 3 * E)

        # stack heads along a (H*B) batch axis -> one batched QK^T / PV per layer
        q = jnp.concatenate(
            [qkv3[:, :, hh * Dh:(hh + 1) * Dh] for hh in range(H)], axis=0)  # (H*B,S,Dh)
        k = jnp.concatenate(
            [qkv3[:, :, E + hh * Dh:E + (hh + 1) * Dh] for hh in range(H)], axis=0)
        v = jnp.concatenate(
            [qkv3[:, :, 2 * E + hh * Dh:2 * E + (hh + 1) * Dh] for hh in range(H)],
            axis=0)

        # 1/sqrt(head_dim) already folded into the Q projection at init
        s = jnp.einsum("bqd,bkd->bqk", q, k,
                       preferred_element_type=jnp.float32)                   # (H*B,S,S)
        p = _softmax_lastdim(s)
        o = jnp.einsum("bqk,bkd->bqd", p, v,
                       preferred_element_type=jnp.float32)                   # (H*B,S,Dh)

        attn = jnp.concatenate(
            [o[hh * B:(hh + 1) * B] for hh in range(H)], axis=-1)            # (B,S,E)
        attn = attn.reshape(B * S, E)

        o2 = jnp.dot(attn, g(f"opw{l}"),
                     preferred_element_type=jnp.float32) + g(f"opb{l}")
        h = _layer_norm(h + o2, g(f"l1g{l}"), g(f"l1b{l}"))

        ff = jnp.dot(h, g(f"f1w{l}"),
                     preferred_element_type=jnp.float32) + g(f"f1b{l}")
        ff = jnp.maximum(ff, 0.0)
        ff = jnp.dot(ff, g(f"f2w{l}"),
                     preferred_element_type=jnp.float32) + g(f"f2b{l}")
        h = _layer_norm(h + ff, g(f"l2g{l}"), g(f"l2b{l}"))

    # ---- feature LayerNorm (no residual) ----
    h = _layer_norm(h, g("fng"), g("fnb"))

    # ---- feature attention logits ----
    a = jnp.dot(h, g("faw1"), preferred_element_type=jnp.float32) + g("fab1")
    a = jnp.maximum(a, 0.0)
    a = jnp.dot(a, g("faw2"), preferred_element_type=jnp.float32) + g("fab2")  # (B*S,1)

    # ---- last / mean / attention pooling (assembled in registers) ----
    h3 = h.reshape(B, S, E)
    a3 = a.reshape(B, S, 1)
    m = jnp.max(a3, axis=1, keepdims=True)
    pw = jnp.exp(a3 - m)
    pw = pw / jnp.sum(pw, axis=1, keepdims=True)
    attn_pool = jnp.sum(h3 * pw, axis=1)                    # (B, E)
    mean_pool = jnp.mean(h3, axis=1)                         # (B, E)
    last_pool = h3[:, S - 1:S, :].reshape(B, E)              # (B, E)
    combined = jnp.concatenate([last_pool, mean_pool, attn_pool], axis=-1)   # (B, 3E)

    # ---- fused output heads: 3 lane-dense matmuls + 1 tiny direction matmul ----
    # per-lane slope vectors: 0.0 -> ReLU, 0.1 -> LeakyReLU(0.1), 1.0 -> identity
    t = jnp.dot(combined, g("W1"), preferred_element_type=jnp.float32) + g("b1")
    t = jnp.where(t >= 0.0, t, t * g("s1"))                  # (B, 128)
    t = jnp.dot(t, g("W2"), preferred_element_type=jnp.float32) + g("b2")
    t = jnp.where(t >= 0.0, t, t * g("s2"))                  # (B, 64)
    t = jnp.dot(t, g("W3"), preferred_element_type=jnp.float32) + g("b3")
    t = jnp.where(t >= 0.0, t, t * g("s3"))                  # (B, 11): [v,p,s,dir(8)]

    logits = jnp.dot(t[:, NUM_REG_HEADS:], g("dw4"),
                     preferred_element_type=jnp.float32) + g("db4")          # (B, 1)
    neg = jnp.exp(-jnp.abs(logits))                          # stable sigmoid
    prob = jnp.where(logits >= 0.0, 1.0 / (1.0 + neg), neg / (1.0 + neg))

    pad = jnp.zeros((B, OUT_COLS - 5), jnp.float32)
    out_ref[...] = jnp.concatenate(
        [t[:, 0:NUM_REG_HEADS], logits, prob, pad], axis=-1)  # single (B, 8) store


# ------------------------------ parameter packing ------------------------------
def _ceil8(n):
    return ((n + 7) // 8) * 8


class _SlabBuilder:
    """Packs all weights/constants into one lane-padded (rows, 128) f32 slab."""

    def __init__(self, width=SLAB_WIDTH):
        self.width = width
        self._chunks = []
        self._layout = {}
        self._rows = 0

    def add(self, name, arr):
        arr = jnp.asarray(arr, jnp.float32)
        if arr.ndim == 1:
            arr = arr[None, :]
        r, c = arr.shape
        assert c <= self.width, (name, arr.shape)
        block = jnp.zeros((_ceil8(r), self.width), jnp.float32).at[:r, :c].set(arr)
        self._layout[name] = (self._rows, r, c)
        self._chunks.append(block)
        self._rows += block.shape[0]

    def build(self):
        return jnp.concatenate(self._chunks, axis=0), self._layout


def _lin_init(key, in_f, out_f):
    """Linear weights directly in (in, out) layout — no per-call transposes."""
    k1, k2 = jax.random.split(key)
    w = jax.random.normal(k1, (in_f, out_f), jnp.float32) * 0.02
    b = jax.random.normal(k2, (1, out_f), jnp.float32) * 0.02
    return w, b


def _bn_default(feat):
    return (jnp.ones((feat,), jnp.float32), jnp.zeros((feat,), jnp.float32),
            jnp.zeros((feat,), jnp.float32), jnp.ones((feat,), jnp.float32))


def _fold_bn(w, b, gamma, beta, rm, rv, eps=BN_EPS):
    """Fold eval-mode BatchNorm1d into the preceding (in, out) Linear."""
    scale = gamma / jnp.sqrt(rv + eps)                       # (out,)
    return w * scale[None, :], (b - rm[None, :]) * scale[None, :] + beta[None, :]


def make_positional_encoding(seq, d_model):
    pos = jnp.arange(seq, dtype=jnp.float32)[:, None]
    div = jnp.exp(jnp.arange(0, d_model, 2, dtype=jnp.float32)
                  * (-math.log(10000.0) / d_model))
    pe = jnp.zeros((seq, d_model), jnp.float32)
    pe = pe.at[:, 0::2].set(jnp.sin(pos * div))
    pe = pe.at[:, 1::2].set(jnp.cos(pos * div))
    return pe                                                # (seq, d_model)


def init_model(key, batch=BATCH, seq=SEQ):
    keys = iter(jax.random.split(key, 64))
    sb = _SlabBuilder()

    emb_w, emb_b = _lin_init(next(keys), INPUT_DIM, HIDDEN)
    sb.add("emb_w", emb_w)
    sb.add("emb_b", emb_b)
    sb.add("pe", jnp.tile(make_positional_encoding(MAX_SEQ, HIDDEN)[:seq], (batch, 1)))

    for l in range(LAYERS):
        ipw, ipb = _lin_init(next(keys), HIDDEN, 3 * HIDDEN)
        # fold 1/sqrt(head_dim) into the Q projection (weights AND bias)
        ipw = ipw.at[:, :HIDDEN].multiply(ATTN_SCALE)
        ipb = ipb.at[:, :HIDDEN].multiply(ATTN_SCALE)
        sb.add(f"ipw{l}", ipw)
        sb.add(f"ipb{l}", ipb)
        opw, opb = _lin_init(next(keys), HIDDEN, HIDDEN)
        sb.add(f"opw{l}", opw)
        sb.add(f"opb{l}", opb)
        sb.add(f"l1g{l}", jnp.ones((1, HIDDEN), jnp.float32))
        sb.add(f"l1b{l}", jnp.zeros((1, HIDDEN), jnp.float32))
        f1w, f1b = _lin_init(next(keys), HIDDEN, FF)
        sb.add(f"f1w{l}", f1w)
        sb.add(f"f1b{l}", f1b)
        f2w, f2b = _lin_init(next(keys), FF, HIDDEN)
        sb.add(f"f2w{l}", f2w)
        sb.add(f"f2b{l}", f2b)
        sb.add(f"l2g{l}", jnp.ones((1, HIDDEN), jnp.float32))
        sb.add(f"l2b{l}", jnp.zeros((1, HIDDEN), jnp.float32))

    sb.add("fng", jnp.ones((1, HIDDEN), jnp.float32))
    sb.add("fnb", jnp.zeros((1, HIDDEN), jnp.float32))

    faw1, fab1 = _lin_init(next(keys), HIDDEN, HIDDEN // 2)
    faw2, fab2 = _lin_init(next(keys), HIDDEN // 2, 1)
    sb.add("faw1", faw1)
    sb.add("fab1", fab1)
    sb.add("faw2", faw2)
    sb.add("fab2", fab2)

    hd2, hd4 = HIDDEN // 2, HIDDEN // 4

    # ---- stage 1: concat [vol | price | spread | direction(BN folded)] -> (96, 128)
    w1s, b1s = [], []
    for _ in range(NUM_REG_HEADS):
        w, b = _lin_init(next(keys), 3 * HIDDEN, HIDDEN)
        w1s.append(w)
        b1s.append(b)
    dw1, db1 = _fold_bn(*_lin_init(next(keys), 3 * HIDDEN, HIDDEN), *_bn_default(HIDDEN))
    sb.add("W1", jnp.concatenate(w1s + [dw1], axis=1))
    sb.add("b1", jnp.concatenate(b1s + [db1], axis=1))
    sb.add("s1", jnp.concatenate([jnp.zeros((1, NUM_REG_HEADS * HIDDEN), jnp.float32),
                                  jnp.full((1, HIDDEN), 0.1, jnp.float32)], axis=1))

    # ---- stage 2: block-diagonal (128, 64)
    W2 = jnp.zeros(((NUM_REG_HEADS + 1) * HIDDEN, (NUM_REG_HEADS + 1) * hd2), jnp.float32)
    b2s, s2s = [], []
    for i in range(NUM_REG_HEADS):
        w, b = _lin_init(next(keys), HIDDEN, hd2)
        W2 = W2.at[i * HIDDEN:(i + 1) * HIDDEN, i * hd2:(i + 1) * hd2].set(w)
        b2s.append(b)
        s2s.append(jnp.zeros((1, hd2), jnp.float32))
    dw2, db2 = _fold_bn(*_lin_init(next(keys), HIDDEN, hd2), *_bn_default(hd2))
    W2 = W2.at[NUM_REG_HEADS * HIDDEN:, NUM_REG_HEADS * hd2:].set(dw2)
    b2s.append(db2)
    s2s.append(jnp.full((1, hd2), 0.1, jnp.float32))
    sb.add("W2", W2)
    sb.add("b2", jnp.concatenate(b2s, axis=1))
    sb.add("s2", jnp.concatenate(s2s, axis=1))

    # ---- stage 3: block-diagonal (64, 11) = [vol(1) | price(1) | spread(1) | dir(8)]
    out3 = NUM_REG_HEADS + hd4
    W3 = jnp.zeros(((NUM_REG_HEADS + 1) * hd2, out3), jnp.float32)
    b3s, s3s = [], []
    for i in range(NUM_REG_HEADS):
        w, b = _lin_init(next(keys), hd2, 1)
        W3 = W3.at[i * hd2:(i + 1) * hd2, i:i + 1].set(w)
        b3s.append(b)
        s3s.append(jnp.ones((1, 1), jnp.float32))            # identity (final outputs)
    dw3, db3 = _fold_bn(*_lin_init(next(keys), hd2, hd4), *_bn_default(hd4))
    W3 = W3.at[NUM_REG_HEADS * hd2:, NUM_REG_HEADS:].set(dw3)
    b3s.append(db3)
    s3s.append(jnp.full((1, hd4), 0.1, jnp.float32))
    sb.add("W3", W3)
    sb.add("b3", jnp.concatenate(b3s, axis=1))
    sb.add("s3", jnp.concatenate(s3s, axis=1))

    dw4, db4 = _lin_init(next(keys), hd4, 1)
    sb.add("dw4", dw4)
    sb.add("db4", db4)

    return sb.build()        # (slab (rows,128) f32, layout dict of static offsets)


# -------------------------------- forward pass --------------------------------
def make_forward(layout, slab_bytes, batch=BATCH, seq=SEQ):
    kernel = functools.partial(fused_forward_kernel, layout=layout,
                               batch=batch, seq=seq)
    cost = pl.CostEstimate(
        flops=1_000_000,
        transcendentals=2_048,
        bytes_accessed=int(slab_bytes + batch * seq * INPUT_DIM * 4
                           + batch * OUT_COLS * 4),
    )

    @jax.jit
    def forward(slab, x):
        out = pl.pallas_call(
            kernel,
            out_shape=jax.ShapeDtypeStruct((batch, OUT_COLS), jnp.float32),
            cost_estimate=cost,
        )(x, slab)
        return {
            "direction_logits": out[:, 3:4],
            "direction_prob": out[:, 4:5],
            "volatility": out[:, 0:1],
            "price_change": out[:, 1:2],
            "spread": out[:, 2:3],
        }

    return forward


# ------------------------------------ main -------------------------------------
if __name__ == "__main__":
    key = jax.random.PRNGKey(0)
    k_param, k_x = jax.random.split(key)

    slab, layout = init_model(k_param, BATCH, SEQ)
    forward = make_forward(layout, slab.size * 4, BATCH, SEQ)

    x = jax.random.normal(k_x, (BATCH, SEQ, INPUT_DIM), jnp.float32)
    out = forward(slab, x)
    out = jax.tree_util.tree_map(jax.block_until_ready, out)

    for name in ("direction_logits", "direction_prob", "volatility",
                 "price_change", "spread"):
        assert out[name].shape == (BATCH, 1), (name, out[name].shape)
        assert bool(jnp.all(jnp.isfinite(out[name]))), name
    assert bool(jnp.all((out["direction_prob"] >= 0.0)
                        & (out["direction_prob"] <= 1.0)))
    print("KERNEL_OK")
</pallas_src>

<mosaic_0001>
module attributes {stable_mosaic.version = 11 : i64} {
  func.func @fused_forward_kernel(%arg0: memref<2x8x8xf32, #tpu.memory_space<vmem>>, %arg1: memref<1040x128xf32, #tpu.memory_space<vmem>>, %arg2: memref<2x8xf32, #tpu.memory_space<vmem>>) attributes {dimension_semantics = [], scalar_prefetch = 0 : i64, scratch_operands = 0 : i64, tpu.core_type = #tpu.core_type<tc>} {
    %c0 = arith.constant 0 : index
    %c0_0 = arith.constant 0 : index
    %c0_1 = arith.constant 0 : index
    %0 = vector.load %arg0[%c0, %c0_0, %c0_1] : memref<2x8x8xf32, #tpu.memory_space<vmem>>, vector<2x8x8xf32>
    %1 = vector.shape_cast %0 : vector<2x8x8xf32> to vector<16x8xf32>
    %c0_2 = arith.constant 0 : index
    %c0_3 = arith.constant 0 : index
    %2 = vector.load %arg1[%c0_2, %c0_3] : memref<1040x128xf32, #tpu.memory_space<vmem>>, vector<8x32xf32>
    %cst = arith.constant dense<0.000000e+00> : vector<16x32xf32>
    %3 = tpu.matmul %1, %2, %cst {dimension_numbers = #tpu.dot_dimension_numbers<[1], [0], [0], [1], [0, 0, 1, 1], [], []>} : vector<16x8xf32>, vector<8x32xf32>, vector<16x32xf32> -> vector<16x32xf32>
    %c8 = arith.constant 8 : index
    %c0_4 = arith.constant 0 : index
    %4 = vector.load %arg1[%c8, %c0_4] : memref<1040x128xf32, #tpu.memory_space<vmem>>, vector<1x32xf32>
    %5 = vector.broadcast %4 : vector<1x32xf32> to vector<16x32xf32>
    %6 = arith.addf %3, %5 : vector<16x32xf32>
    %c16 = arith.constant 16 : index
    %c0_5 = arith.constant 0 : index
    %7 = vector.load %arg1[%c16, %c0_5] : memref<1040x128xf32, #tpu.memory_space<vmem>>, vector<16x32xf32>
    %8 = arith.addf %6, %7 : vector<16x32xf32>
    %c32 = arith.constant 32 : index
    %c0_6 = arith.constant 0 : index
    %9 = vector.load %arg1[%c32, %c0_6] : memref<1040x128xf32, #tpu.memory_space<vmem>>, vector<32x96xf32>
    %cst_7 = arith.constant dense<0.000000e+00> : vector<16x96xf32>
    %10 = tpu.matmul %8, %9, %cst_7 {dimension_numbers = #tpu.dot_dimension_numbers<[1], [0], [0], [1], [0, 0, 1, 1], [], []>} : vector<16x32xf32>, vector<32x96xf32>, vector<16x96xf32> -> vector<16x96xf32>
    %c64 = arith.constant 64 : index
    %c0_8 = arith.constant 0 : index
    %11 = vector.load %arg1[%c64, %c0_8] : memref<1040x128xf32, #tpu.memory_space<vmem>>, vector<1x96xf32>
    %12 = vector.broadcast %11 : vector<1x96xf32> to vector<16x96xf32>
    %13 = arith.addf %10, %12 : vector<16x96xf32>
    %14 = vector.shape_cast %13 : vector<16x96xf32> to vector<2x8x96xf32>
    %15 = vector.extract_strided_slice %14 {offsets = [0, 0, 0], sizes = [2, 8, 8], strides = [1, 1, 1]} : vector<2x8x96xf32> to vector<2x8x8xf32>
    %16 = vector.extract_strided_slice %14 {offsets = [0, 0, 8], sizes = [2, 8, 8], strides = [1, 1, 1]} : vector<2x8x96xf32> to vector<2x8x8xf32>
    %17 = vector.extract_strided_slice %14 {offsets = [0, 0, 16], sizes = [2, 8, 8], strides = [1, 1, 1]} : vector<2x8x96xf32> to vector<2x8x8xf32>
    %18 = vector.extract_strided_slice %14 {offsets = [0, 0, 24], sizes = [2, 8, 8], strides = [1, 1, 1]} : vector<2x8x96xf32> to vector<2x8x8xf32>
    %19 = tpu.concatenate %15, %16, %17, %18 in 0 : vector<2x8x8xf32>, vector<2x8x8xf32>, vector<2x8x8xf32>, vector<2x8x8xf32> -> vector<8x8x8xf32>
    %20 = vector.extract_strided_slice %14 {offsets = [0, 0, 32], sizes = [2, 8, 8], strides = [1, 1, 1]} : vector<2x8x96xf32> to vector<2x8x8xf32>
    %21 = vector.extract_strided_slice %14 {offsets = [0, 0, 40], sizes = [2, 8, 8], strides = [1, 1, 1]} : vector<2x8x96xf32> to vector<2x8x8xf32>
    %22 = vector.extract_strided_slice %14 {offsets = [0, 0, 48], sizes = [2, 8, 8], strides = [1, 1, 1]} : vector<2x8x96xf32> to vector<2x8x8xf32>
    %23 = vector.extract_strided_slice %14 {offsets = [0, 0, 56], sizes = [2, 8, 8], strides = [1, 1, 1]} : vector<2x8x96xf32> to vector<2x8x8xf32>
    %24 = tpu.concatenate %20, %21, %22, %23 in 0 : vector<2x8x8xf32>, vector<2x8x8xf32>, vector<2x8x8xf32>, vector<2x8x8xf32> -> vector<8x8x8xf32>
    %25 = vector.extract_strided_slice %14 {offsets = [0, 0, 64], sizes = [2, 8, 8], strides = [1, 1, 1]} : vector<2x8x96xf32> to vector<2x8x8xf32>
    %26 = vector.extract_strided_slice %14 {offsets = [0, 0, 72], sizes = [2, 8, 8], strides = [1, 1, 1]} : vector<2x8x96xf32> to vector<2x8x8xf32>
    %27 = vector.extract_strided_slice %14 {offsets = [0, 0, 80], sizes = [2, 8, 8], strides = [1, 1, 1]} : vector<2x8x96xf32> to vector<2x8x8xf32>
    %28 = vector.extract_strided_slice %14 {offsets = [0, 0, 88], sizes = [2, 8, 8], strides = [1, 1, 1]} : vector<2x8x96xf32> to vector<2x8x8xf32>
    %29 = tpu.concatenate %25, %26, %27, %28 in 0 : vector<2x8x8xf32>, vector<2x8x8xf32>, vector<2x8x8xf32>, vector<2x8x8xf32> -> vector<8x8x8xf32>
    "tpu.trace_start"() <{level = 10 : i32, message = "bqd,bkd->bqk"}> : () -> ()
    %cst_9 = arith.constant dense<0.000000e+00> : vector<8x8x8xf32>
    %30 = tpu.matmul %19, %24, %cst_9 {dimension_numbers = #tpu.dot_dimension_numbers<[2], [2], [1], [1], [0, 0, 0, 1, 1, 1], [0], [0]>} : vector<8x8x8xf32>, vector<8x8x8xf32>, vector<8x8x8xf32> -> vector<8x8x8xf32>
    "tpu.trace_stop"() : () -> ()
    %cst_10 = arith.constant dense<0xFF800000> : vector<8x8xf32>
    %31 = vector.multi_reduction <maximumf>, %30, %cst_10 [2] : vector<8x8x8xf32> to vector<8x8xf32>
    %32 = vector.shape_cast %31 : vector<8x8xf32> to vector<8x8x1xf32>
    %33 = vector.broadcast %32 : vector<8x8x1xf32> to vector<8x8x8xf32>
    %34 = arith.subf %30, %33 : vector<8x8x8xf32>
    %35 = math.exp %34 : vector<8x8x8xf32>
    %cst_11 = arith.constant dense<0.000000e+00> : vector<8x8xf32>
    %36 = vector.multi_reduction <add>, %35, %cst_11 [2] : vector<8x8x8xf32> to vector<8x8xf32>
    %37 = vector.shape_cast %36 : vector<8x8xf32> to vector<8x8x1xf32>
    %38 = vector.broadcast %37 : vector<8x8x1xf32> to vector<8x8x8xf32>
    %39 = arith.divf %35, %38 : vector<8x8x8xf32>
    "tpu.trace_start"() <{level = 10 : i32, message = "bqk,bkd->bqd"}> : () -> ()
    %cst_12 = arith.constant dense<0.000000e+00> : vector<8x8x8xf32>
    %40 = tpu.matmul %39, %29, %cst_12 {dimension_numbers = #tpu.dot_dimension_numbers<[2], [1], [1], [2], [0, 0, 0, 1, 1, 2], [0], [0]>} : vector<8x8x8xf32>, vector<8x8x8xf32>, vector<8x8x8xf32> -> vector<8x8x8xf32>
    "tpu.trace_stop"() : () -> ()
    %41 = vector.extract_strided_slice %40 {offsets = [0, 0, 0], sizes = [2, 8, 8], strides = [1, 1, 1]} : vector<8x8x8xf32> to vector<2x8x8xf32>
    %42 = vector.extract_strided_slice %40 {offsets = [2, 0, 0], sizes = [2, 8, 8], strides = [1, 1, 1]} : vector<8x8x8xf32> to vector<2x8x8xf32>
    %43 = vector.extract_strided_slice %40 {offsets = [4, 0, 0], sizes = [2, 8, 8], strides = [1, 1, 1]} : vector<8x8x8xf32> to vector<2x8x8xf32>
    %44 = vector.extract_strided_slice %40 {offsets = [6, 0, 0], sizes = [2, 8, 8], strides = [1, 1, 1]} : vector<8x8x8xf32> to vector<2x8x8xf32>
    %45 = tpu.concatenate %41, %42, %43, %44 in 2 : vector<2x8x8xf32>, vector<2x8x8xf32>, vector<2x8x8xf32>, vector<2x8x8xf32> -> vector<2x8x32xf32>
    %46 = vector.shape_cast %45 : vector<2x8x32xf32> to vector<16x32xf32>
    %c72 = arith.constant 72 : index
    %c0_13 = arith.constant 0 : index
    %47 = vector.load %arg1[%c72, %c0_13] : memref<1040x128xf32, #tpu.memory_space<vmem>>, vector<32x32xf32>
    %cst_14 = arith.constant dense<0.000000e+00> : vector<16x32xf32>
    %48 = tpu.matmul %46, %47, %cst_14 {dimension_numbers = #tpu.dot_dimension_numbers<[1], [0], [0], [1], [0, 0, 1, 1], [], []>} : vector<16x32xf32>, vector<32x32xf32>, vector<16x32xf32> -> vector<16x32xf32>
    %c104 = arith.constant 104 : index
    %c0_15 = arith.constant 0 : index
    %49 = vector.load %arg1[%c104, %c0_15] : memref<1040x128xf32, #tpu.memory_space<vmem>>, vector<1x32xf32>
    %50 = vector.broadcast %49 : vector<1x32xf32> to vector<16x32xf32>
    %51 = arith.addf %48, %50 : vector<16x32xf32>
    %52 = arith.addf %8, %51 : vector<16x32xf32>
    %c112 = arith.constant 112 : index
    %c0_16 = arith.constant 0 : index
    %53 = vector.load %arg1[%c112, %c0_16] : memref<1040x128xf32, #tpu.memory_space<vmem>>, vector<1x32xf32>
    %c120 = arith.constant 120 : index
    %c0_17 = arith.constant 0 : index
    %54 = vector.load %arg1[%c120, %c0_17] : memref<1040x128xf32, #tpu.memory_space<vmem>>, vector<1x32xf32>
    %cst_18 = arith.constant dense<0.000000e+00> : vector<16xf32>
    %55 = vector.multi_reduction <add>, %52, %cst_18 [1] : vector<16x32xf32> to vector<16xf32>
    %56 = vector.shape_cast %55 : vector<16xf32> to vector<16x1xf32>
    %cst_19 = arith.constant 3.200000e+01 : f32
    %57 = vector.broadcast %cst_19 : f32 to vector<16x1xf32>
    %58 = arith.divf %56, %57 : vector<16x1xf32>
    %59 = vector.broadcast %58 : vector<16x1xf32> to vector<16x32xf32>
    %60 = arith.subf %52, %59 : vector<16x32xf32>
    %61 = arith.mulf %60, %60 : vector<16x32xf32>
    %cst_20 = arith.constant dense<0.000000e+00> : vector<16xf32>
    %62 = vector.multi_reduction <add>, %61, %cst_20 [1] : vector<16x32xf32> to vector<16xf32>
    %63 = vector.shape_cast %62 : vector<16xf32> to vector<16x1xf32>
    %cst_21 = arith.constant 3.200000e+01 : f32
    %64 = vector.broadcast %cst_21 : f32 to vector<16x1xf32>
    %65 = arith.divf %63, %64 : vector<16x1xf32>
    %66 = vector.broadcast %58 : vector<16x1xf32> to vector<16x32xf32>
    %67 = arith.subf %52, %66 : vector<16x32xf32>
    %cst_22 = arith.constant 9.99999974E-6 : f32
    %68 = vector.broadcast %cst_22 : f32 to vector<16x1xf32>
    %69 = arith.addf %65, %68 : vector<16x1xf32>
    %70 = math.rsqrt %69 : vector<16x1xf32>
    %71 = vector.broadcast %70 : vector<16x1xf32> to vector<16x32xf32>
    %72 = arith.mulf %67, %71 : vector<16x32xf32>
    %73 = vector.broadcast %53 : vector<1x32xf32> to vector<16x32xf32>
    %74 = arith.mulf %72, %73 : vector<16x32xf32>
    %75 = vector.broadcast %54 : vector<1x32xf32> to vector<16x32xf32>
    %76 = arith.addf %74, %75 : vector<16x32xf32>
    %c128 = arith.constant 128 : index
    %c0_23 = arith.constant 0 : index
    %77 = vector.load %arg1[%c128, %c0_23] : memref<1040x128xf32, #tpu.memory_space<vmem>>, vector<32x128xf32>
    %cst_24 = arith.constant dense<0.000000e+00> : vector<16x128xf32>
    %78 = tpu.matmul %76, %77, %cst_24 {dimension_numbers = #tpu.dot_dimension_numbers<[1], [0], [0], [1], [0, 0, 1, 1], [], []>} : vector<16x32xf32>, vector<32x128xf32>, vector<16x128xf32> -> vector<16x128xf32>
    %c160 = arith.constant 160 : index
    %c0_25 = arith.constant 0 : index
    %79 = vector.load %arg1[%c160, %c0_25] : memref<1040x128xf32, #tpu.memory_space<vmem>>, vector<1x128xf32>
    %80 = vector.broadcast %79 : vector<1x128xf32> to vector<16x128xf32>
    %81 = arith.addf %78, %80 : vector<16x128xf32>
    %cst_26 = arith.constant 0.000000e+00 : f32
    %82 = vector.broadcast %cst_26 : f32 to vector<16x128xf32>
    %83 = arith.maximumf %81, %82 : vector<16x128xf32>
    %c168 = arith.constant 168 : index
    %c0_27 = arith.constant 0 : index
    %84 = vector.load %arg1[%c168, %c0_27] : memref<1040x128xf32, #tpu.memory_space<vmem>>, vector<128x32xf32>
    %cst_28 = arith.constant dense<0.000000e+00> : vector<16x32xf32>
    %85 = tpu.matmul %83, %84, %cst_28 {dimension_numbers = #tpu.dot_dimension_numbers<[1], [0], [0], [1], [0, 0, 1, 1], [], []>} : vector<16x128xf32>, vector<128x32xf32>, vector<16x32xf32> -> vector<16x32xf32>
    %c296 = arith.constant 296 : index
    %c0_29 = arith.constant 0 : index
    %86 = vector.load %arg1[%c296, %c0_29] : memref<1040x128xf32, #tpu.memory_space<vmem>>, vector<1x32xf32>
    %87 = vector.broadcast %86 : vector<1x32xf32> to vector<16x32xf32>
    %88 = arith.addf %85, %87 : vector<16x32xf32>
    %89 = arith.addf %76, %88 : vector<16x32xf32>
    %c304 = arith.constant 304 : index
    %c0_30 = arith.constant 0 : index
    %90 = vector.load %arg1[%c304, %c0_30] : memref<1040x128xf32, #tpu.memory_space<vmem>>, vector<1x32xf32>
    %c312 = arith.constant 312 : index
    %c0_31 = arith.constant 0 : index
    %91 = vector.load %arg1[%c312, %c0_31] : memref<1040x128xf32, #tpu.memory_space<vmem>>, vector<1x32xf32>
    %cst_32 = arith.constant dense<0.000000e+00> : vector<16xf32>
    %92 = vector.multi_reduction <add>, %89, %cst_32 [1] : vector<16x32xf32> to vector<16xf32>
    %93 = vector.shape_cast %92 : vector<16xf32> to vector<16x1xf32>
    %cst_33 = arith.constant 3.200000e+01 : f32
    %94 = vector.broadcast %cst_33 : f32 to vector<16x1xf32>
    %95 = arith.divf %93, %94 : vector<16x1xf32>
    %96 = vector.broadcast %95 : vector<16x1xf32> to vector<16x32xf32>
    %97 = arith.subf %89, %96 : vector<16x32xf32>
    %98 = arith.mulf %97, %97 : vector<16x32xf32>
    %cst_34 = arith.constant dense<0.000000e+00> : vector<16xf32>
    %99 = vector.multi_reduction <add>, %98, %cst_34 [1] : vector<16x32xf32> to vector<16xf32>
    %100 = vector.shape_cast %99 : vector<16xf32> to vector<16x1xf32>
    %cst_35 = arith.constant 3.200000e+01 : f32
    %101 = vector.broadcast %cst_35 : f32 to vector<16x1xf32>
    %102 = arith.divf %100, %101 : vector<16x1xf32>
    %103 = vector.broadcast %95 : vector<16x1xf32> to vector<16x32xf32>
    %104 = arith.subf %89, %103 : vector<16x32xf32>
    %cst_36 = arith.constant 9.99999974E-6 : f32
    %105 = vector.broadcast %cst_36 : f32 to vector<16x1xf32>
    %106 = arith.addf %102, %105 : vector<16x1xf32>
    %107 = math.rsqrt %106 : vector<16x1xf32>
    %108 = vector.broadcast %107 : vector<16x1xf32> to vector<16x32xf32>
    %109 = arith.mulf %104, %108 : vector<16x32xf32>
    %110 = vector.broadcast %90 : vector<1x32xf32> to vector<16x32xf32>
    %111 = arith.mulf %109, %110 : vector<16x32xf32>
    %112 = vector.broadcast %91 : vector<1x32xf32> to vector<16x32xf32>
    %113 = arith.addf %111, %112 : vector<16x32xf32>
    %c320 = arith.constant 320 : index
    %c0_37 = arith.constant 0 : index
    %114 = vector.load %arg1[%c320, %c0_37] : memref<1040x128xf32, #tpu.memory_space<vmem>>, vector<32x96xf32>
    %cst_38 = arith.constant dense<0.000000e+00> : vector<16x96xf32>
    %115 = tpu.matmul %113, %114, %cst_38 {dimension_numbers = #tpu.dot_dimension_numbers<[1], [0], [0], [1], [0, 0, 1, 1], [], []>} : vector<16x32xf32>, vector<32x96xf32>, vector<16x96xf32> -> vector<16x96xf32>
    %c352 = arith.constant 352 : index
    %c0_39 = arith.constant 0 : index
    %116 = vector.load %arg1[%c352, %c0_39] : memref<1040x128xf32, #tpu.memory_space<vmem>>, vector<1x96xf32>
    %117 = vector.broadcast %116 : vector<1x96xf32> to vector<16x96xf32>
    %118 = arith.addf %115, %117 : vector<16x96xf32>
    %119 = vector.shape_cast %118 : vector<16x96xf32> to vector<2x8x96xf32>
    %120 = vector.extract_strided_slice %119 {offsets = [0, 0, 0], sizes = [2, 8, 8], strides = [1, 1, 1]} : vector<2x8x96xf32> to vector<2x8x8xf32>
    %121 = vector.extract_strided_slice %119 {offsets = [0, 0, 8], sizes = [2, 8, 8], strides = [1, 1, 1]} : vector<2x8x96xf32> to vector<2x8x8xf32>
    %122 = vector.extract_strided_slice %119 {offsets = [0, 0, 16], sizes = [2, 8, 8], strides = [1, 1, 1]} : vector<2x8x96xf32> to vector<2x8x8xf32>
    %123 = vector.extract_strided_slice %119 {offsets = [0, 0, 24], sizes = [2, 8, 8], strides = [1, 1, 1]} : vector<2x8x96xf32> to vector<2x8x8xf32>
    %124 = tpu.concatenate %120, %121, %122, %123 in 0 : vector<2x8x8xf32>, vector<2x8x8xf32>, vector<2x8x8xf32>, vector<2x8x8xf32> -> vector<8x8x8xf32>
    %125 = vector.extract_strided_slice %119 {offsets = [0, 0, 32], sizes = [2, 8, 8], strides = [1, 1, 1]} : vector<2x8x96xf32> to vector<2x8x8xf32>
    %126 = vector.extract_strided_slice %119 {offsets = [0, 0, 40], sizes = [2, 8, 8], strides = [1, 1, 1]} : vector<2x8x96xf32> to vector<2x8x8xf32>
    %127 = vector.extract_strided_slice %119 {offsets = [0, 0, 48], sizes = [2, 8, 8], strides = [1, 1, 1]} : vector<2x8x96xf32> to vector<2x8x8xf32>
    %128 = vector.extract_strided_slice %119 {offsets = [0, 0, 56], sizes = [2, 8, 8], strides = [1, 1, 1]} : vector<2x8x96xf32> to vector<2x8x8xf32>
    %129 = tpu.concatenate %125, %126, %127, %128 in 0 : vector<2x8x8xf32>, vector<2x8x8xf32>, vector<2x8x8xf32>, vector<2x8x8xf32> -> vector<8x8x8xf32>
    %130 = vector.extract_strided_slice %119 {offsets = [0, 0, 64], sizes = [2, 8, 8], strides = [1, 1, 1]} : vector<2x8x96xf32> to vector<2x8x8xf32>
    %131 = vector.extract_strided_slice %119 {offsets = [0, 0, 72], sizes = [2, 8, 8], strides = [1, 1, 1]} : vector<2x8x96xf32> to vector<2x8x8xf32>
    %132 = vector.extract_strided_slice %119 {offsets = [0, 0, 80], sizes = [2, 8, 8], strides = [1, 1, 1]} : vector<2x8x96xf32> to vector<2x8x8xf32>
    %133 = vector.extract_strided_slice %119 {offsets = [0, 0, 88], sizes = [2, 8, 8], strides = [1, 1, 1]} : vector<2x8x96xf32> to vector<2x8x8xf32>
    %134 = tpu.concatenate %130, %131, %132, %133 in 0 : vector<2x8x8xf32>, vector<2x8x8xf32>, vector<2x8x8xf32>, vector<2x8x8xf32> -> vector<8x8x8xf32>
    "tpu.trace_start"() <{level = 10 : i32, message = "bqd,bkd->bqk"}> : () -> ()
    %cst_40 = arith.constant dense<0.000000e+00> : vector<8x8x8xf32>
    %135 = tpu.matmul %124, %129, %cst_40 {dimension_numbers = #tpu.dot_dimension_numbers<[2], [2], [1], [1], [0, 0, 0, 1, 1, 1], [0], [0]>} : vector<8x8x8xf32>, vector<8x8x8xf32>, vector<8x8x8xf32> -> vector<8x8x8xf32>
    "tpu.trace_stop"() : () -> ()
    %cst_41 = arith.constant dense<0xFF800000> : vector<8x8xf32>
    %136 = vector.multi_reduction <maximumf>, %135, %cst_41 [2] : vector<8x8x8xf32> to vector<8x8xf32>
    %137 = vector.shape_cast %136 : vector<8x8xf32> to vector<8x8x1xf32>
    %138 = vector.broadcast %137 : vector<8x8x1xf32> to vector<8x8x8xf32>
    %139 = arith.subf %135, %138 : vector<8x8x8xf32>
    %140 = math.exp %139 : vector<8x8x8xf32>
    %cst_42 = arith.constant dense<0.000000e+00> : vector<8x8xf32>
    %141 = vector.multi_reduction <add>, %140, %cst_42 [2] : vector<8x8x8xf32> to vector<8x8xf32>
    %142 = vector.shape_cast %141 : vector<8x8xf32> to vector<8x8x1xf32>
    %143 = vector.broadcast %142 : vector<8x8x1xf32> to vector<8x8x8xf32>
    %144 = arith.divf %140, %143 : vector<8x8x8xf32>
    "tpu.trace_start"() <{level = 10 : i32, message = "bqk,bkd->bqd"}> : () -> ()
    %cst_43 = arith.constant dense<0.000000e+00> : vector<8x8x8xf32>
    %145 = tpu.matmul %144, %134, %cst_43 {dimension_numbers = #tpu.dot_dimension_numbers<[2], [1], [1], [2], [0, 0, 0, 1, 1, 2], [0], [0]>} : vector<8x8x8xf32>, vector<8x8x8xf32>, vector<8x8x8xf32> -> vector<8x8x8xf32>
    "tpu.trace_stop"() : () -> ()
    %146 = vector.extract_strided_slice %145 {offsets = [0, 0, 0], sizes = [2, 8, 8], strides = [1, 1, 1]} : vector<8x8x8xf32> to vector<2x8x8xf32>
    %147 = vector.extract_strided_slice %145 {offsets = [2, 0, 0], sizes = [2, 8, 8], strides = [1, 1, 1]} : vector<8x8x8xf32> to vector<2x8x8xf32>
    %148 = vector.extract_strided_slice %145 {offsets = [4, 0, 0], sizes = [2, 8, 8], strides = [1, 1, 1]} : vector<8x8x8xf32> to vector<2x8x8xf32>
    %149 = vector.extract_strided_slice %145 {offsets = [6, 0, 0], sizes = [2, 8, 8], strides = [1, 1, 1]} : vector<8x8x8xf32> to vector<2x8x8xf32>
    %150 = tpu.concatenate %146, %147, %148, %149 in 2 : vector<2x8x8xf32>, vector<2x8x8xf32>, vector<2x8x8xf32>, vector<2x8x8xf32> -> vector<2x8x32xf32>
    %151 = vector.shape_cast %150 : vector<2x8x32xf32> to vector<16x32xf32>
    %c360 = arith.constant 360 : index
    %c0_44 = arith.constant 0 : index
    %152 = vector.load %arg1[%c360, %c0_44] : memref<1040x128xf32, #tpu.memory_space<vmem>>, vector<32x32xf32>
    %cst_45 = arith.constant dense<0.000000e+00> : vector<16x32xf32>
    %153 = tpu.matmul %151, %152, %cst_45 {dimension_numbers = #tpu.dot_dimension_numbers<[1], [0], [0], [1], [0, 0, 1, 1], [], []>} : vector<16x32xf32>, vector<32x32xf32>, vector<16x32xf32> -> vector<16x32xf32>
    %c392 = arith.constant 392 : index
    %c0_46 = arith.constant 0 : index
    %154 = vector.load %arg1[%c392, %c0_46] : memref<1040x128xf32, #tpu.memory_space<vmem>>, vector<1x32xf32>
    %155 = vector.broadcast %154 : vector<1x32xf32> to vector<16x32xf32>
    %156 = arith.addf %153, %155 : vector<16x32xf32>
    %157 = arith.addf %113, %156 : vector<16x32xf32>
    %c400 = arith.constant 400 : index
    %c0_47 = arith.constant 0 : index
    %158 = vector.load %arg1[%c400, %c0_47] : memref<1040x128xf32, #tpu.memory_space<vmem>>, vector<1x32xf32>
    %c408 = arith.constant 408 : index
    %c0_48 = arith.constant 0 : index
    %159 = vector.load %arg1[%c408, %c0_48] : memref<1040x128xf32, #tpu.memory_space<vmem>>, vector<1x32xf32>
    %cst_49 = arith.constant dense<0.000000e+00> : vector<16xf32>
    %160 = vector.multi_reduction <add>, %157, %cst_49 [1] : vector<16x32xf32> to vector<16xf32>
    %161 = vector.shape_cast %160 : vector<16xf32> to vector<16x1xf32>
    %cst_50 = arith.constant 3.200000e+01 : f32
    %162 = vector.broadcast %cst_50 : f32 to vector<16x1xf32>
    %163 = arith.divf %161, %162 : vector<16x1xf32>
    %164 = vector.broadcast %163 : vector<16x1xf32> to vector<16x32xf32>
    %165 = arith.subf %157, %164 : vector<16x32xf32>
    %166 = arith.mulf %165, %165 : vector<16x32xf32>
    %cst_51 = arith.constant dense<0.000000e+00> : vector<16xf32>
    %167 = vector.multi_reduction <add>, %166, %cst_51 [1] : vector<16x32xf32> to vector<16xf32>
    %168 = vector.shape_cast %167 : vector<16xf32> to vector<16x1xf32>
    %cst_52 = arith.constant 3.200000e+01 : f32
    %169 = vector.broadcast %cst_52 : f32 to vector<16x1xf32>
    %170 = arith.divf %168, %169 : vector<16x1xf32>
    %171 = vector.broadcast %163 : vector<16x1xf32> to vector<16x32xf32>
    %172 = arith.subf %157, %171 : vector<16x32xf32>
    %cst_53 = arith.constant 9.99999974E-6 : f32
    %173 = vector.broadcast %cst_53 : f32 to vector<16x1xf32>
    %174 = arith.addf %170, %173 : vector<16x1xf32>
    %175 = math.rsqrt %174 : vector<16x1xf32>
    %176 = vector.broadcast %175 : vector<16x1xf32> to vector<16x32xf32>
    %177 = arith.mulf %172, %176 : vector<16x32xf32>
    %178 = vector.broadcast %158 : vector<1x32xf32> to vector<16x32xf32>
    %179 = arith.mulf %177, %178 : vector<16x32xf32>
    %180 = vector.broadcast %159 : vector<1x32xf32> to vector<16x32xf32>
    %181 = arith.addf %179, %180 : vector<16x32xf32>
    %c416 = arith.constant 416 : index
    %c0_54 = arith.constant 0 : index
    %182 = vector.load %arg1[%c416, %c0_54] : memref<1040x128xf32, #tpu.memory_space<vmem>>, vector<32x128xf32>
    %cst_55 = arith.constant dense<0.000000e+00> : vector<16x128xf32>
    %183 = tpu.matmul %181, %182, %cst_55 {dimension_numbers = #tpu.dot_dimension_numbers<[1], [0], [0], [1], [0, 0, 1, 1], [], []>} : vector<16x32xf32>, vector<32x128xf32>, vector<16x128xf32> -> vector<16x128xf32>
    %c448 = arith.constant 448 : index
    %c0_56 = arith.constant 0 : index
    %184 = vector.load %arg1[%c448, %c0_56] : memref<1040x128xf32, #tpu.memory_space<vmem>>, vector<1x128xf32>
    %185 = vector.broadcast %184 : vector<1x128xf32> to vector<16x128xf32>
    %186 = arith.addf %183, %185 : vector<16x128xf32>
    %cst_57 = arith.constant 0.000000e+00 : f32
    %187 = vector.broadcast %cst_57 : f32 to vector<16x128xf32>
    %188 = arith.maximumf %186, %187 : vector<16x128xf32>
    %c456 = arith.constant 456 : index
    %c0_58 = arith.constant 0 : index
    %189 = vector.load %arg1[%c456, %c0_58] : memref<1040x128xf32, #tpu.memory_space<vmem>>, vector<128x32xf32>
    %cst_59 = arith.constant dense<0.000000e+00> : vector<16x32xf32>
    %190 = tpu.matmul %188, %189, %cst_59 {dimension_numbers = #tpu.dot_dimension_numbers<[1], [0], [0], [1], [0, 0, 1, 1], [], []>} : vector<16x128xf32>, vector<128x32xf32>, vector<16x32xf32> -> vector<16x32xf32>
    %c584 = arith.constant 584 : index
    %c0_60 = arith.constant 0 : index
    %191 = vector.load %arg1[%c584, %c0_60] : memref<1040x128xf32, #tpu.memory_space<vmem>>, vector<1x32xf32>
    %192 = vector.broadcast %191 : vector<1x32xf32> to vector<16x32xf32>
    %193 = arith.addf %190, %192 : vector<16x32xf32>
    %194 = arith.addf %181, %193 : vector<16x32xf32>
    %c592 = arith.constant 592 : index
    %c0_61 = arith.constant 0 : index
    %195 = vector.load %arg1[%c592, %c0_61] : memref<1040x128xf32, #tpu.memory_space<vmem>>, vector<1x32xf32>
    %c600 = arith.constant 600 : index
    %c0_62 = arith.constant 0 : index
    %196 = vector.load %arg1[%c600, %c0_62] : memref<1040x128xf32, #tpu.memory_space<vmem>>, vector<1x32xf32>
    %cst_63 = arith.constant dense<0.000000e+00> : vector<16xf32>
    %197 = vector.multi_reduction <add>, %194, %cst_63 [1] : vector<16x32xf32> to vector<16xf32>
    %198 = vector.shape_cast %197 : vector<16xf32> to vector<16x1xf32>
    %cst_64 = arith.constant 3.200000e+01 : f32
    %199 = vector.broadcast %cst_64 : f32 to vector<16x1xf32>
    %200 = arith.divf %198, %199 : vector<16x1xf32>
    %201 = vector.broadcast %200 : vector<16x1xf32> to vector<16x32xf32>
    %202 = arith.subf %194, %201 : vector<16x32xf32>
    %203 = arith.mulf %202, %202 : vector<16x32xf32>
    %cst_65 = arith.constant dense<0.000000e+00> : vector<16xf32>
    %204 = vector.multi_reduction <add>, %203, %cst_65 [1] : vector<16x32xf32> to vector<16xf32>
    %205 = vector.shape_cast %204 : vector<16xf32> to vector<16x1xf32>
    %cst_66 = arith.constant 3.200000e+01 : f32
    %206 = vector.broadcast %cst_66 : f32 to vector<16x1xf32>
    %207 = arith.divf %205, %206 : vector<16x1xf32>
    %208 = vector.broadcast %200 : vector<16x1xf32> to vector<16x32xf32>
    %209 = arith.subf %194, %208 : vector<16x32xf32>
    %cst_67 = arith.constant 9.99999974E-6 : f32
    %210 = vector.broadcast %cst_67 : f32 to vector<16x1xf32>
    %211 = arith.addf %207, %210 : vector<16x1xf32>
    %212 = math.rsqrt %211 : vector<16x1xf32>
    %213 = vector.broadcast %212 : vector<16x1xf32> to vector<16x32xf32>
    %214 = arith.mulf %209, %213 : vector<16x32xf32>
    %215 = vector.broadcast %195 : vector<1x32xf32> to vector<16x32xf32>
    %216 = arith.mulf %214, %215 : vector<16x32xf32>
    %217 = vector.broadcast %196 : vector<1x32xf32> to vector<16x32xf32>
    %218 = arith.addf %216, %217 : vector<16x32xf32>
    %c608 = arith.constant 608 : index
    %c0_68 = arith.constant 0 : index
    %219 = vector.load %arg1[%c608, %c0_68] : memref<1040x128xf32, #tpu.memory_space<vmem>>, vector<1x32xf32>
    %c616 = arith.constant 616 : index
    %c0_69 = arith.constant 0 : index
    %220 = vector.load %arg1[%c616, %c0_69] : memref<1040x128xf32, #tpu.memory_space<vmem>>, vector<1x32xf32>
    %cst_70 = arith.constant dense<0.000000e+00> : vector<16xf32>
    %221 = vector.multi_reduction <add>, %218, %cst_70 [1] : vector<16x32xf32> to vector<16xf32>
    %222 = vector.shape_cast %221 : vector<16xf32> to vector<16x1xf32>
    %cst_71 = arith.constant 3.200000e+01 : f32
    %223 = vector.broadcast %cst_71 : f32 to vector<16x1xf32>
    %224 = arith.divf %222, %223 : vector<16x1xf32>
    %225 = vector.broadcast %224 : vector<16x1xf32> to vector<16x32xf32>
    %226 = arith.subf %218, %225 : vector<16x32xf32>
    %227 = arith.mulf %226, %226 : vector<16x32xf32>
    %cst_72 = arith.constant dense<0.000000e+00> : vector<16xf32>
    %228 = vector.multi_reduction <add>, %227, %cst_72 [1] : vector<16x32xf32> to vector<16xf32>
    %229 = vector.shape_cast %228 : vector<16xf32> to vector<16x1xf32>
    %cst_73 = arith.constant 3.200000e+01 : f32
    %230 = vector.broadcast %cst_73 : f32 to vector<16x1xf32>
    %231 = arith.divf %229, %230 : vector<16x1xf32>
    %232 = vector.broadcast %224 : vector<16x1xf32> to vector<16x32xf32>
    %233 = arith.subf %218, %232 : vector<16x32xf32>
    %cst_74 = arith.constant 9.99999974E-6 : f32
    %234 = vector.broadcast %cst_74 : f32 to vector<16x1xf32>
    %235 = arith.addf %231, %234 : vector<16x1xf32>
    %236 = math.rsqrt %235 : vector<16x1xf32>
    %237 = vector.broadcast %236 : vector<16x1xf32> to vector<16x32xf32>
    %238 = arith.mulf %233, %237 : vector<16x32xf32>
    %239 = vector.broadcast %219 : vector<1x32xf32> to vector<16x32xf32>
    %240 = arith.mulf %238, %239 : vector<16x32xf32>
    %241 = vector.broadcast %220 : vector<1x32xf32> to vector<16x32xf32>
    %242 = arith.addf %240, %241 : vector<16x32xf32>
    %c624 = arith.constant 624 : index
    %c0_75 = arith.constant 0 : index
    %243 = vector.load %arg1[%c624, %c0_75] : memref<1040x128xf32, #tpu.memory_space<vmem>>, vector<32x16xf32>
    %cst_76 = arith.constant dense<0.000000e+00> : vector<16x16xf32>
    %244 = tpu.matmul %242, %243, %cst_76 {dimension_numbers = #tpu.dot_dimension_numbers<[1], [0], [0], [1], [0, 0, 1, 1], [], []>} : vector<16x32xf32>, vector<32x16xf32>, vector<16x16xf32> -> vector<16x16xf32>
    %c656 = arith.constant 656 : index
    %c0_77 = arith.constant 0 : index
    %245 = vector.load %arg1[%c656, %c0_77] : memref<1040x128xf32, #tpu.memory_space<vmem>>, vector<1x16xf32>
    %246 = vector.broadcast %245 : vector<1x16xf32> to vector<16x16xf32>
    %247 = arith.addf %244, %246 : vector<16x16xf32>
    %cst_78 = arith.constant 0.000000e+00 : f32
    %248 = vector.broadcast %cst_78 : f32 to vector<16x16xf32>
    %249 = arith.maximumf %247, %248 : vector<16x16xf32>
    %c664 = arith.constant 664 : index
    %c0_79 = arith.constant 0 : index
    %250 = vector.load %arg1[%c664, %c0_79] : memref<1040x128xf32, #tpu.memory_space<vmem>>, vector<16x1xf32>
    %cst_80 = arith.constant dense<0.000000e+00> : vector<16x1xf32>
    %251 = tpu.matmul %249, %250, %cst_80 {dimension_numbers = #tpu.dot_dimension_numbers<[1], [0], [0], [1], [0, 0, 1, 1], [], []>} : vector<16x16xf32>, vector<16x1xf32>, vector<16x1xf32> -> vector<16x1xf32>
    %c680 = arith.constant 680 : index
    %c0_81 = arith.constant 0 : index
    %252 = vector.load %arg1[%c680, %c0_81] : memref<1040x128xf32, #tpu.memory_space<vmem>>, vector<1x1xf32>
    %253 = vector.broadcast %252 : vector<1x1xf32> to vector<16x1xf32>
    %254 = arith.addf %251, %253 : vector<16x1xf32>
    %255 = vector.shape_cast %242 : vector<16x32xf32> to vector<2x8x32xf32>
    %256 = vector.shape_cast %254 : vector<16x1xf32> to vector<2x8x1xf32>
    %cst_82 = arith.constant dense<0xFF800000> : vector<2x1xf32>
    %257 = vector.multi_reduction <maximumf>, %256, %cst_82 [1] : vector<2x8x1xf32> to vector<2x1xf32>
    %258 = vector.shape_cast %257 : vector<2x1xf32> to vector<2x1x1xf32>
    %259 = vector.broadcast %258 : vector<2x1x1xf32> to vector<2x8x1xf32>
    %260 = arith.subf %256, %259 : vector<2x8x1xf32>
    %261 = math.exp %260 : vector<2x8x1xf32>
    %cst_83 = arith.constant dense<0.000000e+00> : vector<2x1xf32>
    %262 = vector.multi_reduction <add>, %261, %cst_83 [1] : vector<2x8x1xf32> to vector<2x1xf32>
    %263 = vector.shape_cast %262 : vector<2x1xf32> to vector<2x1x1xf32>
    %264 = vector.broadcast %263 : vector<2x1x1xf32> to vector<2x8x1xf32>
    %265 = arith.divf %261, %264 : vector<2x8x1xf32>
    %266 = vector.broadcast %265 : vector<2x8x1xf32> to vector<2x8x32xf32>
    %267 = arith.mulf %255, %266 : vector<2x8x32xf32>
    %cst_84 = arith.constant dense<0.000000e+00> : vector<2x32xf32>
    %268 = vector.multi_reduction <add>, %267, %cst_84 [1] : vector<2x8x32xf32> to vector<2x32xf32>
    %cst_85 = arith.constant dense<0.000000e+00> : vector<2x32xf32>
    %269 = vector.multi_reduction <add>, %255, %cst_85 [1] : vector<2x8x32xf32> to vector<2x32xf32>
    %cst_86 = arith.constant 8.000000e+00 : f32
    %270 = vector.broadcast %cst_86 : f32 to vector<2x32xf32>
    %271 = arith.divf %269, %270 : vector<2x32xf32>
    %272 = vector.extract_strided_slice %255 {offsets = [0, 7, 0], sizes = [2, 1, 32], strides = [1, 1, 1]} : vector<2x8x32xf32> to vector<2x1x32xf32>
    %273 = vector.shape_cast %272 : vector<2x1x32xf32> to vector<2x32xf32>
    %274 = tpu.concatenate %273, %271, %268 in 1 : vector<2x32xf32>, vector<2x32xf32>, vector<2x32xf32> -> vector<2x96xf32>
    %c688 = arith.constant 688 : index
    %c0_87 = arith.constant 0 : index
    %275 = vector.load %arg1[%c688, %c0_87] : memref<1040x128xf32, #tpu.memory_space<vmem>>, vector<96x128xf32>
    %cst_88 = arith.constant dense<0.000000e+00> : vector<2x128xf32>
    %276 = tpu.matmul %274, %275, %cst_88 {dimension_numbers = #tpu.dot_dimension_numbers<[1], [0], [0], [1], [0, 0, 1, 1], [], []>} : vector<2x96xf32>, vector<96x128xf32>, vector<2x128xf32> -> vector<2x128xf32>
    %c784 = arith.constant 784 : index
    %c0_89 = arith.constant 0 : index
    %277 = vector.load %arg1[%c784, %c0_89] : memref<1040x128xf32, #tpu.memory_space<vmem>>, vector<1x128xf32>
    %278 = vector.broadcast %277 : vector<1x128xf32> to vector<2x128xf32>
    %279 = arith.addf %276, %278 : vector<2x128xf32>
    %cst_90 = arith.constant 0.000000e+00 : f32
    %280 = vector.broadcast %cst_90 : f32 to vector<2x128xf32>
    %281 = arith.cmpf oge, %279, %280 : vector<2x128xf32>
    %c792 = arith.constant 792 : index
    %c0_91 = arith.constant 0 : index
    %282 = vector.load %arg1[%c792, %c0_91] : memref<1040x128xf32, #tpu.memory_space<vmem>>, vector<1x128xf32>
    %283 = vector.broadcast %282 : vector<1x128xf32> to vector<2x128xf32>
    %284 = arith.mulf %279, %283 : vector<2x128xf32>
    %285 = arith.select %281, %279, %284 : vector<2x128xi1>, vector<2x128xf32>
    %c800 = arith.constant 800 : index
    %c0_92 = arith.constant 0 : index
    %286 = vector.load %arg1[%c800, %c0_92] : memref<1040x128xf32, #tpu.memory_space<vmem>>, vector<128x64xf32>
    %cst_93 = arith.constant dense<0.000000e+00> : vector<2x64xf32>
    %287 = tpu.matmul %285, %286, %cst_93 {dimension_numbers = #tpu.dot_dimension_numbers<[1], [0], [0], [1], [0, 0, 1, 1], [], []>} : vector<2x128xf32>, vector<128x64xf32>, vector<2x64xf32> -> vector<2x64xf32>
    %c928 = arith.constant 928 : index
    %c0_94 = arith.constant 0 : index
    %288 = vector.load %arg1[%c928, %c0_94] : memref<1040x128xf32, #tpu.memory_space<vmem>>, vector<1x64xf32>
    %289 = vector.broadcast %288 : vector<1x64xf32> to vector<2x64xf32>
    %290 = arith.addf %287, %289 : vector<2x64xf32>
    %cst_95 = arith.constant 0.000000e+00 : f32
    %291 = vector.broadcast %cst_95 : f32 to vector<2x64xf32>
    %292 = arith.cmpf oge, %290, %291 : vector<2x64xf32>
    %c936 = arith.constant 936 : index
    %c0_96 = arith.constant 0 : index
    %293 = vector.load %arg1[%c936, %c0_96] : memref<1040x128xf32, #tpu.memory_space<vmem>>, vector<1x64xf32>
    %294 = vector.broadcast %293 : vector<1x64xf32> to vector<2x64xf32>
    %295 = arith.mulf %290, %294 : vector<2x64xf32>
    %296 = arith.select %292, %290, %295 : vector<2x64xi1>, vector<2x64xf32>
    %c944 = arith.constant 944 : index
    %c0_97 = arith.constant 0 : index
    %297 = vector.load %arg1[%c944, %c0_97] : memref<1040x128xf32, #tpu.memory_space<vmem>>, vector<64x11xf32>
    %cst_98 = arith.constant dense<0.000000e+00> : vector<2x11xf32>
    %298 = tpu.matmul %296, %297, %cst_98 {dimension_numbers = #tpu.dot_dimension_numbers<[1], [0], [0], [1], [0, 0, 1, 1], [], []>} : vector<2x64xf32>, vector<64x11xf32>, vector<2x11xf32> -> vector<2x11xf32>
    %c1008 = arith.constant 1008 : index
    %c0_99 = arith.constant 0 : index
    %299 = vector.load %arg1[%c1008, %c0_99] : memref<1040x128xf32, #tpu.memory_space<vmem>>, vector<1x11xf32>
    %300 = vector.broadcast %299 : vector<1x11xf32> to vector<2x11xf32>
    %301 = arith.addf %298, %300 : vector<2x11xf32>
    %cst_100 = arith.constant 0.000000e+00 : f32
    %302 = vector.broadcast %cst_100 : f32 to vector<2x11xf32>
    %303 = arith.cmpf oge, %301, %302 : vector<2x11xf32>
    %c1016 = arith.constant 1016 : index
    %c0_101 = arith.constant 0 : index
    %304 = vector.load %arg1[%c1016, %c0_101] : memref<1040x128xf32, #tpu.memory_space<vmem>>, vector<1x11xf32>
    %305 = vector.broadcast %304 : vector<1x11xf32> to vector<2x11xf32>
    %306 = arith.mulf %301, %305 : vector<2x11xf32>
    %307 = arith.select %303, %301, %306 : vector<2x11xi1>, vector<2x11xf32>
    %308 = vector.extract_strided_slice %307 {offsets = [0, 3], sizes = [2, 8], strides = [1, 1]} : vector<2x11xf32> to vector<2x8xf32>
    %c1024 = arith.constant 1024 : index
    %c0_102 = arith.constant 0 : index
    %309 = vector.load %arg1[%c1024, %c0_102] : memref<1040x128xf32, #tpu.memory_space<vmem>>, vector<8x1xf32>
    %cst_103 = arith.constant dense<0.000000e+00> : vector<2x1xf32>
    %310 = tpu.matmul %308, %309, %cst_103 {dimension_numbers = #tpu.dot_dimension_numbers<[1], [0], [0], [1], [0, 0, 1, 1], [], []>} : vector<2x8xf32>, vector<8x1xf32>, vector<2x1xf32> -> vector<2x1xf32>
    %c1032 = arith.constant 1032 : index
    %c0_104 = arith.constant 0 : index
    %311 = vector.load %arg1[%c1032, %c0_104] : memref<1040x128xf32, #tpu.memory_space<vmem>>, vector<1x1xf32>
    %312 = vector.broadcast %311 : vector<1x1xf32> to vector<2x1xf32>
    %313 = arith.addf %310, %312 : vector<2x1xf32>
    %314 = math.absf %313 : vector<2x1xf32>
    %cst_105 = arith.constant 0.000000e+00 : f32
    %315 = vector.broadcast %cst_105 : f32 to vector<2x1xf32>
    %316 = arith.subf %315, %314 : vector<2x1xf32>
    %317 = math.exp %316 : vector<2x1xf32>
    %cst_106 = arith.constant 0.000000e+00 : f32
    %318 = vector.broadcast %cst_106 : f32 to vector<2x1xf32>
    %319 = arith.cmpf oge, %313, %318 : vector<2x1xf32>
    %cst_107 = arith.constant 1.000000e+00 : f32
    %320 = vector.broadcast %cst_107 : f32 to vector<2x1xf32>
    %321 = arith.addf %320, %317 : vector<2x1xf32>
    %cst_108 = arith.constant 1.000000e+00 : f32
    %322 = vector.broadcast %cst_108 : f32 to vector<2x1xf32>
    %323 = arith.divf %322, %321 : vector<2x1xf32>
    %cst_109 = arith.constant 1.000000e+00 : f32
    %324 = vector.broadcast %cst_109 : f32 to vector<2x1xf32>
    %325 = arith.addf %324, %317 : vector<2x1xf32>
    %326 = arith.divf %317, %325 : vector<2x1xf32>
    %327 = arith.select %319, %323, %326 : vector<2x1xi1>, vector<2x1xf32>
    %cst_110 = arith.constant 0.000000e+00 : f32
    %328 = vector.broadcast %cst_110 : f32 to vector<2x3xf32>
    %329 = vector.extract_strided_slice %307 {offsets = [0, 0], sizes = [2, 3], strides = [1, 1]} : vector<2x11xf32> to vector<2x3xf32>
    %330 = tpu.concatenate %329, %313, %327, %328 in 1 : vector<2x3xf32>, vector<2x1xf32>, vector<2x1xf32>, vector<2x3xf32> -> vector<2x8xf32>
    %c0_111 = arith.constant 0 : index
    %c0_112 = arith.constant 0 : index
    %331 = vector.load %arg2[%c0_111, %c0_112] : memref<2x8xf32, #tpu.memory_space<vmem>>, vector<2x8xf32>
    tpu.vector_store %arg2[%c0_111, %c0_112], %330 {strides = array<i32>} : memref<2x8xf32, #tpu.memory_space<vmem>>, vector<2x8xf32>,
    return
  }
}

</mosaic_0001>

<llo_original>
// kernel: forward.1
$region0: #{forward.1}
  #allocation0 [shape = 'u32[]', space=smem, size = 0x4, offset = 0x4, fixed_abs, tag = 'smem constant byte address 0x4 - core index']
  #allocation1 [shape = 'u32[144,128]{1,0:T(1,128)}', space=vmem, size = 0x12000, scoped, tag = 'internal scratch']
  %s0 = inlined_call_operand.hbm [shape: f32[2,8,8], index: 0, kind: input, shape index: {}]
  %s1 = inlined_call_operand.hbm [shape: f32[1040,128], index: 1, kind: input, shape index: {}]
  %s2 = inlined_call_operand.vmem [shape: f32[2,8], index: 2, kind: output, shape index: {}]
  %s3 = sld [smem:[#allocation0]]
  $region26: #{forward.1} parent=0
    _
  %s5 = ssub.s32 1, %s3
  %s6 = scalar_select 0, %s5, %s3
  $region1: #{forward.1} parent=0
    #allocation2 [shape = 'u8[8192]{0}', space=vmem, size = 0x2000, scoped, tag = 'input window, operand 0, single buffered']
    #allocation3 [shape = 's32[1]{0}', space=sflag, size = 0x4, scoped, tag = 'scoped memory for forward.1']
    #allocation4 [shape = 'u8[532480]{0}', space=vmem, size = 0x82000, scoped, tag = 'input window, operand 1, single buffered']
    #allocation5 [shape = 's32[1]{0}', space=sflag, size = 0x4, scoped, tag = 'scoped memory for forward.1']
    %7 = vsyncpa [#allocation3], 0
    %8 = vsyncpa [#allocation5], 0
    // Predicated region
    $region2: #{forward.1} parent=1 // pred_check
      _
    $region3: #{forward.1} parent=1 // pred_check_branch
      %10 = sbr.rel (0) target = $region5
    $region4: #{forward.1} parent=1 // pred_region
      %s12 = ssub.s32 256, 256
      %13 = vsyncadd [#allocation3], %s12
      %s14 = sshll.u32 [#allocation2], 4
      %s15 = int_to_ptr.vmem [resolvable:$true] %s14
      %20 = dma.hbm_to_vmem [thread:$0]  %s0, 256, %s15, [#allocation3], 128, 128, 8
    $region5: #{forward.1} parent=1 // pred_fallthru
      _
    // Predicated region
    $region6: #{forward.1} parent=1 // pred_check
      _
    $region7: #{forward.1} parent=1 // pred_check_branch
      %22 = sbr.rel (0) target = $region9
    $region8: #{forward.1} parent=1 // pred_region
      %s24 = ssub.s32 16640, 16640
      %25 = vsyncadd [#allocation5], %s24
      %s26 = sshll.u32 [#allocation4], 4
      %s27 = int_to_ptr.vmem [resolvable:$true] %s26
      %32 = dma.hbm_to_vmem [thread:$0]  %s1, 16640, %s27, [#allocation5], 128, 128, 8
    $region9: #{forward.1} parent=1 // pred_fallthru
      _
    // Predicated region
    $region10: #{forward.1} parent=1 // pred_check
      _
    $region11: #{forward.1} parent=1 // pred_check_branch
      %34 = sbr.rel (0) target = $region13
    $region12: #{forward.1} parent=1 // pred_region
      %35 = dma.done [#allocation3], 256
    $region13: #{forward.1} parent=1 // pred_fallthru
      _
    // Predicated region
    $region14: #{forward.1} parent=1 // pred_check
      _
    $region15: #{forward.1} parent=1 // pred_check_branch
      %37 = sbr.rel (0) target = $region17
    $region16: #{forward.1} parent=1 // pred_region
      %38 = dma.done [#allocation5], 16640
    $region17: #{forward.1} parent=1 // pred_fallthru
      _
    %v39 = vld [vmem:[#allocation2] sm:$0xff]
    %v40 = vld [vmem:[#allocation2 + $0x8] sm:$0xff]
    %v41 = vld [vmem:[#allocation4] sm:$0xff]
    %v42 = vld [vmem:[#allocation4 + $0x8] sm:$0x1]
    %v43 = vlaneseq
    %v44 = vshrl.u32 %v43, 7
    %v45 = vsub.s32 0, %v44
    %v46 = vrot.slane %v42, %v45
    %vm47 = vcmask 64512
    %v49 = vsel %vm47, %v39, 0
    %v52 = vsel %vm47, %v40, 0
    %54 = vmatprep.subr.mxu0 0.0
    %55 = vmatpush1.msra.mxu0 %v41
    %56 = vmatprep.subr.mxu0 0.0
    %57 = vmatpush1.msra.mxu0 0.0
    %58 = vmatprep.subr.mxu0 0.0
    %59 = vmatpush1.msra.mxu0 0.0
    %60 = vmatprep.subr.mxu0 0.0
    %61 = vmatpush1.msra.mxu0 0.0
    %62 = vmatprep.subr.mxu0 0.0
    %63 = vmatpush1.msra.mxu0 0.0
    %64 = vmatprep.subr.mxu0 0.0
    %65 = vmatpush1.msra.mxu0 0.0
    %66 = vmatprep.subr.mxu0 0.0
    %67 = vmatpush1.msra.mxu0 0.0
    %68 = vmatprep.subr.mxu0 0.0
    %69 = vmatpush1.msra.mxu0 0.0
    %70 = vmatprep.subr.mxu0 0.0
    %71 = vmatpush1.msra.mxu0 0.0
    %72 = vmatprep.subr.mxu0 0.0
    %73 = vmatpush1.msra.mxu0 0.0
    %74 = vmatprep.subr.mxu0 0.0
    %75 = vmatpush1.msra.mxu0 0.0
    %76 = vmatprep.subr.mxu0 0.0
    %77 = vmatpush1.msra.mxu0 0.0
    %78 = vmatprep.subr.mxu0 0.0
    %79 = vmatpush1.msra.mxu0 0.0
    %80 = vmatprep.subr.mxu0 0.0
    %81 = vmatpush1.msra.mxu0 0.0
    %82 = vmatprep.subr.mxu0 0.0
    %83 = vmatpush1.msra.mxu0 0.0
    %84 = vmatprep.subr.mxu0 0.0
    %85 = vmatpush1.msra.mxu0 0.0
    %86 = vmatprep.subr.mxu0 0.0
    %87 = vmatpush1.msra.mxu0 0.0
    %88 = vmatprep.subr.mxu0 0.0
    %89 = vmatpush1.msra.mxu0 0.0
    %90 = vmatprep.subr.mxu0 0.0
    %91 = vmatpush1.msra.mxu0 0.0
    %92 = vmatprep.subr.mxu0 0.0
    %93 = vmatpush1.msra.mxu0 0.0
    %94 = vmatprep.subr.mxu0 0.0
    %95 = vmatpush1.msra.mxu0 0.0
    %96 = vmatprep.subr.mxu0 0.0
    %97 = vmatpush1.msra.mxu0 0.0
    %98 = vmatprep.subr.mxu0 0.0
    %99 = vmatpush1.msra.mxu0 0.0
    %100 = vmatprep.subr.mxu0 0.0
    %101 = vmatpush1.msra.mxu0 0.0
    %102 = vmatprep.subr.mxu0 0.0
    %103 = vmatpush1.msra.mxu0 0.0
    %104 = vmatprep.subr.mxu0 0.0
    %105 = vmatpush1.msra.mxu0 0.0
    %106 = vmatprep.subr.mxu0 0.0
    %107 = vmatpush1.msra.mxu0 0.0
    %108 = vmatprep.subr.mxu0 0.0
    %109 = vmatpush1.msra.mxu0 0.0
    %110 = vmatprep.subr.mxu0 0.0
    %111 = vmatpush1.msra.mxu0 0.0
    %112 = vmatprep.subr.mxu0 0.0
    %113 = vmatpush1.msra.mxu0 0.0
    %114 = vmatprep.subr.mxu0 0.0
    %115 = vmatpush1.msra.mxu0 0.0
    %116 = vmatprep.subr.mxu0 0.0
    %117 = vmatpush1.msra.mxu0 0.0
    %118 = vmatprep.mubr.f32.mxu0 0.0
    %119 = vmatmul.mubr.f32.gmra.mrb[0].mxu0 %v49
    %v120 = vpop.f32.mrb[0].mxu0
    %v121 = vadd.f32 %v46, %v120
    %v122 = vpop.f32.mrb[0].mxu0
    %123 = vmatprep.mubr.f32.mxu0 0.0
    %124 = vmatmul.mubr.f32.gmra.mrb[0].mxu0 %v52
    %v125 = vpop.f32.mrb[0].mxu0
    %v126 = vadd.f32 %v46, %v125
    %v127 = vpop.f32.mrb[0].mxu0
    %128 = vdwg.mxu0
    %v129 = vld [vmem:[#allocation4 + $0x10] sm:$0xff]
    %v130 = vld [vmem:[#allocation4 + $0x18] sm:$0xff]
    %v131 = vadd.f32 %v121, %v129
    %v132 = vadd.f32 %v126, %v130
    %v133 = vld [vmem:[#allocation4 + $0x20] sm:$0xff]
    %v134 = vld [vmem:[#allocation4 + $0x28] sm:$0xff]
    %v135 = vld [vmem:[#allocation4 + $0x30] sm:$0xff]
    %v136 = vld [vmem:[#allocation4 + $0x38] sm:$0xff]
    %v137 = vld [vmem:[#allocation4 + $0x40] sm:$0x1]
    %v138 = vlaneseq
    %v139 = vshrl.u32 %v138, 7
    %v140 = vsub.s32 0, %v139
    %v141 = vrot.slane %v137, %v140
    %vm142 = vcmask 261120
    %v144 = vsel %vm142, %v131, 0
    %v147 = vsel %vm142, %v132, 0
    %149 = vmatprep.subr.mxu0 0.0
    %150 = vmatpush1.msra.mxu0 %v133
    %151 = vmatprep.subr.mxu0 0.0
    %152 = vmatpush1.msra.mxu0 %v134
    %153 = vmatprep.subr.mxu0 0.0
    %154 = vmatpush1.msra.mxu0 %v135
    %155 = vmatprep.subr.mxu0 0.0
    %156 = vmatpush1.msra.mxu0 %v136
    %157 = vmatprep.subr.mxu0 0.0
    %158 = vmatpush1.msra.mxu0 0.0
    %159 = vmatprep.subr.mxu0 0.0
    %160 = vmatpush1.msra.mxu0 0.0
    %161 = vmatprep.subr.mxu0 0.0
    %162 = vmatpush1.msra.mxu0 0.0
    %163 = vmatprep.subr.mxu0 0.0
    %164 = vmatpush1.msra.mxu0 0.0
    %165 = vmatprep.subr.mxu0 0.0
    %166 = vmatpush1.msra.mxu0 0.0
    %167 = vmatprep.subr.mxu0 0.0
    %168 = vmatpush1.msra.mxu0 0.0
    %169 = vmatprep.subr.mxu0 0.0
    %170 = vmatpush1.msra.mxu0 0.0
    %171 = vmatprep.subr.mxu0 0.0
    %172 = vmatpush1.msra.mxu0 0.0
    %173 = vmatprep.subr.mxu0 0.0
    %174 = vmatpush1.msra.mxu0 0.0
    %175 = vmatprep.subr.mxu0 0.0
    %176 = vmatpush1.msra.mxu0 0.0
    %177 = vmatprep.subr.mxu0 0.0
    %178 = vmatpush1.msra.mxu0 0.0
    %179 = vmatprep.subr.mxu0 0.0
    %180 = vmatpush1.msra.mxu0 0.0
    %181 = vmatprep.subr.mxu0 0.0
    %182 = vmatpush1.msra.mxu0 0.0
    %183 = vmatprep.subr.mxu0 0.0
    %184 = vmatpush1.msra.mxu0 0.0
    %185 = vmatprep.subr.mxu0 0.0
    %186 = vmatpush1.msra.mxu0 0.0
    %187 = vmatprep.subr.mxu0 0.0
    %188 = vmatpush1.msra.mxu0 0.0
    %189 = vmatprep.subr.mxu0 0.0
    %190 = vmatpush1.msra.mxu0 0.0
    %191 = vmatprep.subr.mxu0 0.0
    %192 = vmatpush1.msra.mxu0 0.0
    %193 = vmatprep.subr.mxu0 0.0
    %194 = vmatpush1.msra.mxu0 0.0
    %195 = vmatprep.subr.mxu0 0.0
    %196 = vmatpush1.msra.mxu0 0.0
    %197 = vmatprep.subr.mxu0 0.0
    %198 = vmatpush1.msra.mxu0 0.0
    %199 = vmatprep.subr.mxu0 0.0
    %200 = vmatpush1.msra.mxu0 0.0
    %201 = vmatprep.subr.mxu0 0.0
    %202 = vmatpush1.msra.mxu0 0.0
    %203 = vmatprep.subr.mxu0 0.0
    %204 = vmatpush1.msra.mxu0 0.0
    %205 = vmatprep.subr.mxu0 0.0
    %206 = vmatpush1.msra.mxu0 0.0
    %207 = vmatprep.subr.mxu0 0.0
    %208 = vmatpush1.msra.mxu0 0.0
    %209 = vmatprep.subr.mxu0 0.0
    %210 = vmatpush1.msra.mxu0 0.0
    %211 = vmatprep.subr.mxu0 0.0
    %212 = vmatpush1.msra.mxu0 0.0
    %213 = vmatprep.mubr.f32.mxu0 0.0
    %214 = vmatmul.mubr.f32.gmra.mrb[0].mxu0 %v144
    %v215 = vpop.f32.mrb[0].mxu0
    %v216 = vadd.f32 %v141, %v215
    %v217 = vpop.f32.mrb[0].mxu0
    %218 = vmatprep.mubr.f32.mxu0 0.0
    %219 = vmatmul.mubr.f32.gmra.mrb[0].mxu0 %v147
    %v220 = vpop.f32.mrb[0].mxu0
    %v221 = vadd.f32 %v141, %v220
    %v222 = vpop.f32.mrb[0].mxu0
    %223 = vdwg.mxu0
    %226 = vrot.lane.b32.xlu0 %v216, 120
    %v227 = vpop.permute.xlu0 %226
    %228 = vrot.lane.b32.xlu0 %v221, 120
    %v229 = vpop.permute.xlu0 %228
    %230 = vrot.lane.b32.xlu0 %v216, 112
    %v231 = vpop.permute.xlu0 %230
    %232 = vrot.lane.b32.xlu0 %v221, 112
    %v233 = vpop.permute.xlu0 %232
    %234 = vrot.lane.b32.xlu0 %v216, 104
    %v235 = vpop.permute.xlu0 %234
    %236 = vrot.lane.b32.xlu0 %v221, 104
    %v237 = vpop.permute.xlu0 %236
    %238 = vrot.lane.b32.xlu0 %v216, 96
    %v239 = vpop.permute.xlu0 %238
    %v240 = vsel %vm47, %v216, 0
    %v242 = vsel %vm47, %v239, 0
    %244 = vmatprep.subr.mxu0 0.0
    %245 = vmatpush1.xpose.msra.mxu0 %v242
    %246 = vmatprep.subr.mxu0 0.0
    %247 = vmatpush1.xpose.msra.mxu0 0.0
    %248 = vmatprep.subr.mxu0 0.0
    %249 = vmatpush1.xpose.msra.mxu0 0.0
    %250 = vmatprep.subr.mxu0 0.0
    %251 = vmatpush1.xpose.msra.mxu0 0.0
    %252 = vmatprep.subr.mxu0 0.0
    %253 = vmatpush1.xpose.msra.mxu0 0.0
    %254 = vmatprep.subr.mxu0 0.0
    %255 = vmatpush1.xpose.msra.mxu0 0.0
    %256 = vmatprep.subr.mxu0 0.0
    %257 = vmatpush1.xpose.msra.mxu0 0.0
    %258 = vmatprep.subr.mxu0 0.0
    %259 = vmatpush1.xpose.msra.mxu0 0.0
    %260 = vmatprep.subr.mxu0 0.0
    %261 = vmatpush1.xpose.msra.mxu0 0.0
    %262 = vmatprep.subr.mxu0 0.0
    %263 = vmatpush1.xpose.msra.mxu0 0.0
    %264 = vmatprep.subr.mxu0 0.0
    %265 = vmatpush1.xpose.msra.mxu0 0.0
    %266 = vmatprep.subr.mxu0 0.0
    %267 = vmatpush1.xpose.msra.mxu0 0.0
    %268 = vmatprep.subr.mxu0 0.0
    %269 = vmatpush1.xpose.msra.mxu0 0.0
    %270 = vmatprep.subr.mxu0 0.0
    %271 = vmatpush1.xpose.msra.mxu0 0.0
    %272 = vmatprep.subr.mxu0 0.0
    %273 = vmatpush1.xpose.msra.mxu0 0.0
    %274 = vmatprep.subr.mxu0 0.0
    %275 = vmatpush1.xpose.msra.mxu0 0.0
    %276 = vmatprep.subr.mxu0 0.0
    %277 = vmatpush1.xpose.msra.mxu0 0.0
    %278 = vmatprep.subr.mxu0 0.0
    %279 = vmatpush1.xpose.msra.mxu0 0.0
    %280 = vmatprep.subr.mxu0 0.0
    %281 = vmatpush1.xpose.msra.mxu0 0.0
    %282 = vmatprep.subr.mxu0 0.0
    %283 = vmatpush1.xpose.msra.mxu0 0.0
    %284 = vmatprep.subr.mxu0 0.0
    %285 = vmatpush1.xpose.msra.mxu0 0.0
    %286 = vmatprep.subr.mxu0 0.0
    %287 = vmatpush1.xpose.msra.mxu0 0.0
    %288 = vmatprep.subr.mxu0 0.0
    %289 = vmatpush1.xpose.msra.mxu0 0.0
    %290 = vmatprep.subr.mxu0 0.0
    %291 = vmatpush1.xpose.msra.mxu0 0.0
    %292 = vmatprep.subr.mxu0 0.0
    %293 = vmatpush1.xpose.msra.mxu0 0.0
    %294 = vmatprep.subr.mxu0 0.0
    %295 = vmatpush1.xpose.msra.mxu0 0.0
    %296 = vmatprep.subr.mxu0 0.0
    %297 = vmatpush1.xpose.msra.mxu0 0.0
    %298 = vmatprep.subr.mxu0 0.0
    %299 = vmatpush1.xpose.msra.mxu0 0.0
    %300 = vmatprep.subr.mxu0 0.0
    %301 = vmatpush1.xpose.msra.mxu0 0.0
    %302 = vmatprep.subr.mxu0 0.0
    %303 = vmatpush1.xpose.msra.mxu0 0.0
    %304 = vmatprep.subr.mxu0 0.0
    %305 = vmatpush1.xpose.msra.mxu0 0.0
    %306 = vmatprep.subr.mxu0 0.0
    %307 = vmatpush1.xpose.msra.mxu0 0.0
    %308 = vmatprep.mubr.f32.mxu0 0.0
    %309 = vmatmul.mubr.f32.gmra.mrb[0].mxu0 %v240
    %v310 = vpop.f32.mrb[0].mxu0
    %v311 = vadd.f32 0.0, %v310
    %v312 = vpop.f32.mrb[0].mxu0
    %313 = vdwg.mxu0
    %314 = vrot.lane.b32.xlu0 %v221, 96
    %v315 = vpop.permute.xlu0 %314
    %v316 = vsel %vm47, %v221, 0
    %v318 = vsel %vm47, %v315, 0
    %320 = vmatprep.subr.mxu0 0.0
    %321 = vmatpush1.xpose.msra.mxu0 %v318
    %322 = vmatprep.subr.mxu0 0.0
    %323 = vmatpush1.xpose.msra.mxu0 0.0
    %324 = vmatprep.subr.mxu0 0.0
    %325 = vmatpush1.xpose.msra.mxu0 0.0
    %326 = vmatprep.subr.mxu0 0.0
    %327 = vmatpush1.xpose.msra.mxu0 0.0
    %328 = vmatprep.subr.mxu0 0.0
    %329 = vmatpush1.xpose.msra.mxu0 0.0
    %330 = vmatprep.subr.mxu0 0.0
    %331 = vmatpush1.xpose.msra.mxu0 0.0
    %332 = vmatprep.subr.mxu0 0.0
    %333 = vmatpush1.xpose.msra.mxu0 0.0
    %334 = vmatprep.subr.mxu0 0.0
    %335 = vmatpush1.xpose.msra.mxu0 0.0
    %336 = vmatprep.subr.mxu0 0.0
    %337 = vmatpush1.xpose.msra.mxu0 0.0
    %338 = vmatprep.subr.mxu0 0.0
    %339 = vmatpush1.xpose.msra.mxu0 0.0
    %340 = vmatprep.subr.mxu0 0.0
    %341 = vmatpush1.xpose.msra.mxu0 0.0
    %342 = vmatprep.subr.mxu0 0.0
    %343 = vmatpush1.xpose.msra.mxu0 0.0
    %344 = vmatprep.subr.mxu0 0.0
    %345 = vmatpush1.xpose.msra.mxu0 0.0
    %346 = vmatprep.subr.mxu0 0.0
    %347 = vmatpush1.xpose.msra.mxu0 0.0
    %348 = vmatprep.subr.mxu0 0.0
    %349 = vmatpush1.xpose.msra.mxu0 0.0
    %350 = vmatprep.subr.mxu0 0.0
    %351 = vmatpush1.xpose.msra.mxu0 0.0
    %352 = vmatprep.subr.mxu0 0.0
    %353 = vmatpush1.xpose.msra.mxu0 0.0
    %354 = vmatprep.subr.mxu0 0.0
    %355 = vmatpush1.xpose.msra.mxu0 0.0
    %356 = vmatprep.subr.mxu0 0.0
    %357 = vmatpush1.xpose.msra.mxu0 0.0
    %358 = vmatprep.subr.mxu0 0.0
    %359 = vmatpush1.xpose.msra.mxu0 0.0
    %360 = vmatprep.subr.mxu0 0.0
    %361 = vmatpush1.xpose.msra.mxu0 0.0
    %362 = vmatprep.subr.mxu0 0.0
    %363 = vmatpush1.xpose.msra.mxu0 0.0
    %364 = vmatprep.subr.mxu0 0.0
    %365 = vmatpush1.xpose.msra.mxu0 0.0
    %366 = vmatprep.subr.mxu0 0.0
    %367 = vmatpush1.xpose.msra.mxu0 0.0
    %368 = vmatprep.subr.mxu0 0.0
    %369 = vmatpush1.xpose.msra.mxu0 0.0
    %370 = vmatprep.subr.mxu0 0.0
    %371 = vmatpush1.xpose.msra.mxu0 0.0
    %372 = vmatprep.subr.mxu0 0.0
    %373 = vmatpush1.xpose.msra.mxu0 0.0
    %374 = vmatprep.subr.mxu0 0.0
    %375 = vmatpush1.xpose.msra.mxu0 0.0
    %376 = vmatprep.subr.mxu0 0.0
    %377 = vmatpush1.xpose.msra.mxu0 0.0
    %378 = vmatprep.subr.mxu0 0.0
    %379 = vmatpush1.xpose.msra.mxu0 0.0
    %380 = vmatprep.subr.mxu0 0.0
    %381 = vmatpush1.xpose.msra.mxu0 0.0
    %382 = vmatprep.subr.mxu0 0.0
    %383 = vmatpush1.xpose.msra.mxu0 0.0
    %384 = vmatprep.mubr.f32.mxu0 0.0
    %385 = vmatmul.mubr.f32.gmra.mrb[0].mxu0 %v316
    %v386 = vpop.f32.mrb[0].mxu0
    %v387 = vadd.f32 0.0, %v386
    %v388 = vpop.f32.mrb[0].mxu0
    %389 = vdwg.mxu0
    %390 = vrot.lane.b32.xlu0 %v227, 96
    %v391 = vpop.permute.xlu0 %390
    %v392 = vsel %vm47, %v227, 0
    %v394 = vsel %vm47, %v391, 0
    %396 = vmatprep.subr.mxu0 0.0
    %397 = vmatpush1.xpose.msra.mxu0 %v394
    %398 = vmatprep.subr.mxu0 0.0
    %399 = vmatpush1.xpose.msra.mxu0 0.0
    %400 = vmatprep.subr.mxu0 0.0
    %401 = vmatpush1.xpose.msra.mxu0 0.0
    %402 = vmatprep.subr.mxu0 0.0
    %403 = vmatpush1.xpose.msra.mxu0 0.0
    %404 = vmatprep.subr.mxu0 0.0
    %405 = vmatpush1.xpose.msra.mxu0 0.0
    %406 = vmatprep.subr.mxu0 0.0
    %407 = vmatpush1.xpose.msra.mxu0 0.0
    %408 = vmatprep.subr.mxu0 0.0
    %409 = vmatpush1.xpose.msra.mxu0 0.0
    %410 = vmatprep.subr.mxu0 0.0
    %411 = vmatpush1.xpose.msra.mxu0 0.0
    %412 = vmatprep.subr.mxu0 0.0
    %413 = vmatpush1.xpose.msra.mxu0 0.0
    %414 = vmatprep.subr.mxu0 0.0
    %415 = vmatpush1.xpose.msra.mxu0 0.0
    %416 = vmatprep.subr.mxu0 0.0
    %417 = vmatpush1.xpose.msra.mxu0 0.0
    %418 = vmatprep.subr.mxu0 0.0
    %419 = vmatpush1.xpose.msra.mxu0 0.0
    %420 = vmatprep.subr.mxu0 0.0
    %421 = vmatpush1.xpose.msra.mxu0 0.0
    %422 = vmatprep.subr.mxu0 0.0
    %423 = vmatpush1.xpose.msra.mxu0 0.0
    %424 = vmatprep.subr.mxu0 0.0
    %425 = vmatpush1.xpose.msra.mxu0 0.0
    %426 = vmatprep.subr.mxu0 0.0
    %427 = vmatpush1.xpose.msra.mxu0 0.0
    %428 = vmatprep.subr.mxu0 0.0
    %429 = vmatpush1.xpose.msra.mxu0 0.0
    %430 = vmatprep.subr.mxu0 0.0
    %431 = vmatpush1.xpose.msra.mxu0 0.0
    %432 = vmatprep.subr.mxu0 0.0
    %433 = vmatpush1.xpose.msra.mxu0 0.0
    %434 = vmatprep.subr.mxu0 0.0
    %435 = vmatpush1.xpose.msra.mxu0 0.0
    %436 = vmatprep.subr.mxu0 0.0
    %437 = vmatpush1.xpose.msra.mxu0 0.0
    %438 = vmatprep.subr.mxu0 0.0
    %439 = vmatpush1.xpose.msra.mxu0 0.0
    %440 = vmatprep.subr.mxu0 0.0
    %441 = vmatpush1.xpose.msra.mxu0 0.0
    %442 = vmatprep.subr.mxu0 0.0
    %443 = vmatpush1.xpose.msra.mxu0 0.0
    %444 = vmatprep.subr.mxu0 0.0
    %445 = vmatpush1.xpose.msra.mxu0 0.0
    %446 = vmatprep.subr.mxu0 0.0
    %447 = vmatpush1.xpose.msra.mxu0 0.0
    %448 = vmatprep.subr.mxu0 0.0
    %449 = vmatpush1.xpose.msra.mxu0 0.0
    %450 = vmatprep.subr.mxu0 0.0
    %451 = vmatpush1.xpose.msra.mxu0 0.0
    %452 = vmatprep.subr.mxu0 0.0
    %453 = vmatpush1.xpose.msra.mxu0 0.0
    %454 = vmatprep.subr.mxu0 0.0
    %455 = vmatpush1.xpose.msra.mxu0 0.0
    %456 = vmatprep.subr.mxu0 0.0
    %457 = vmatpush1.xpose.msra.mxu0 0.0
    %458 = vmatprep.subr.mxu0 0.0
    %459 = vmatpush1.xpose.msra.mxu0 0.0
    %460 = vmatprep.mubr.f32.mxu0 0.0
    %461 = vmatmul.mubr.f32.gmra.mrb[0].mxu0 %v392
    %v462 = vpop.f32.mrb[0].mxu0
    %v463 = vadd.f32 0.0, %v462
    %v464 = vpop.f32.mrb[0].mxu0
    %465 = vdwg.mxu0
    %466 = vrot.lane.b32.xlu0 %v229, 96
    %v467 = vpop.permute.xlu0 %466
    %v468 = vsel %vm47, %v229, 0
    %v470 = vsel %vm47, %v467, 0
    %472 = vmatprep.subr.mxu0 0.0
    %473 = vmatpush1.xpose.msra.mxu0 %v470
    %474 = vmatprep.subr.mxu0 0.0
    %475 = vmatpush1.xpose.msra.mxu0 0.0
    %476 = vmatprep.subr.mxu0 0.0
    %477 = vmatpush1.xpose.msra.mxu0 0.0
    %478 = vmatprep.subr.mxu0 0.0
    %479 = vmatpush1.xpose.msra.mxu0 0.0
    %480 = vmatprep.subr.mxu0 0.0
    %481 = vmatpush1.xpose.msra.mxu0 0.0
    %482 = vmatprep.subr.mxu0 0.0
    %483 = vmatpush1.xpose.msra.mxu0 0.0
    %484 = vmatprep.subr.mxu0 0.0
    %485 = vmatpush1.xpose.msra.mxu0 0.0
    %486 = vmatprep.subr.mxu0 0.0
    %487 = vmatpush1.xpose.msra.mxu0 0.0
    %488 = vmatprep.subr.mxu0 0.0
    %489 = vmatpush1.xpose.msra.mxu0 0.0
    %490 = vmatprep.subr.mxu0 0.0
    %491 = vmatpush1.xpose.msra.mxu0 0.0
    %492 = vmatprep.subr.mxu0 0.0
    %493 = vmatpush1.xpose.msra.mxu0 0.0
    %494 = vmatprep.subr.mxu0 0.0
    %495 = vmatpush1.xpose.msra.mxu0 0.0
    %496 = vmatprep.subr.mxu0 0.0
    %497 = vmatpush1.xpose.msra.mxu0 0.0
    %498 = vmatprep.subr.mxu0 0.0
    %499 = vmatpush1.xpose.msra.mxu0 0.0
    %500 = vmatprep.subr.mxu0 0.0
    %501 = vmatpush1.xpose.msra.mxu0 0.0
    %502 = vmatprep.subr.mxu0 0.0
    %503 = vmatpush1.xpose.msra.mxu0 0.0
    %504 = vmatprep.subr.mxu0 0.0
    %505 = vmatpush1.xpose.msra.mxu0 0.0
    %506 = vmatprep.subr.mxu0 0.0
    %507 = vmatpush1.xpose.msra.mxu0 0.0
    %508 = vmatprep.subr.mxu0 0.0
    %509 = vmatpush1.xpose.msra.mxu0 0.0
    %510 = vmatprep.subr.mxu0 0.0
    %511 = vmatpush1.xpose.msra.mxu0 0.0
    %512 = vmatprep.subr.mxu0 0.0
    %513 = vmatpush1.xpose.msra.mxu0 0.0
    %514 = vmatprep.subr.mxu0 0.0
    %515 = vmatpush1.xpose.msra.mxu0 0.0
    %516 = vmatprep.subr.mxu0 0.0
    %517 = vmatpush1.xpose.msra.mxu0 0.0
    %518 = vmatprep.subr.mxu0 0.0
    %519 = vmatpush1.xpose.msra.mxu0 0.0
    %520 = vmatprep.subr.mxu0 0.0
    %521 = vmatpush1.xpose.msra.mxu0 0.0
    %522 = vmatprep.subr.mxu0 0.0
    %523 = vmatpush1.xpose.msra.mxu0 0.0
    %524 = vmatprep.subr.mxu0 0.0
    %525 = vmatpush1.xpose.msra.mxu0 0.0
    %526 = vmatprep.subr.mxu0 0.0
    %527 = vmatpush1.xpose.msra.mxu0 0.0
    %528 = vmatprep.subr.mxu0 0.0
    %529 = vmatpush1.xpose.msra.mxu0 0.0
    %530 = vmatprep.subr.mxu0 0.0
    %531 = vmatpush1.xpose.msra.mxu0 0.0
    %532 = vmatprep.subr.mxu0 0.0
    %533 = vmatpush1.xpose.msra.mxu0 0.0
    %534 = vmatprep.subr.mxu0 0.0
    %535 = vmatpush1.xpose.msra.mxu0 0.0
    %536 = vmatprep.mubr.f32.mxu0 0.0
    %537 = vmatmul.mubr.f32.gmra.mrb[0].mxu0 %v468
    %v538 = vpop.f32.mrb[0].mxu0
    %v539 = vadd.f32 0.0, %v538
    %v540 = vpop.f32.mrb[0].mxu0
    %541 = vdwg.mxu0
    %542 = vrot.lane.b32.xlu0 %v231, 96
    %v543 = vpop.permute.xlu0 %542
    %v544 = vsel %vm47, %v231, 0
    %v546 = vsel %vm47, %v543, 0
    %548 = vmatprep.subr.mxu0 0.0
    %549 = vmatpush1.xpose.msra.mxu0 %v546
    %550 = vmatprep.subr.mxu0 0.0
    %551 = vmatpush1.xpose.msra.mxu0 0.0
    %552 = vmatprep.subr.mxu0 0.0
    %553 = vmatpush1.xpose.msra.mxu0 0.0
    %554 = vmatprep.subr.mxu0 0.0
    %555 = vmatpush1.xpose.msra.mxu0 0.0
    %556 = vmatprep.subr.mxu0 0.0
    %557 = vmatpush1.xpose.msra.mxu0 0.0
    %558 = vmatprep.subr.mxu0 0.0
    %559 = vmatpush1.xpose.msra.mxu0 0.0
    %560 = vmatprep.subr.mxu0 0.0
    %561 = vmatpush1.xpose.msra.mxu0 0.0
    %562 = vmatprep.subr.mxu0 0.0
    %563 = vmatpush1.xpose.msra.mxu0 0.0
    %564 = vmatprep.subr.mxu0 0.0
    %565 = vmatpush1.xpose.msra.mxu0 0.0
    %566 = vmatprep.subr.mxu0 0.0
    %567 = vmatpush1.xpose.msra.mxu0 0.0
    %568 = vmatprep.subr.mxu0 0.0
    %569 = vmatpush1.xpose.msra.mxu0 0.0
    %570 = vmatprep.subr.mxu0 0.0
    %571 = vmatpush1.xpose.msra.mxu0 0.0
    %572 = vmatprep.subr.mxu0 0.0
    %573 = vmatpush1.xpose.msra.mxu0 0.0
    %574 = vmatprep.subr.mxu0 0.0
    %575 = vmatpush1.xpose.msra.mxu0 0.0
    %576 = vmatprep.subr.mxu0 0.0
    %577 = vmatpush1.xpose.msra.mxu0 0.0
    %578 = vmatprep.subr.mxu0 0.0
    %579 = vmatpush1.xpose.msra.mxu0 0.0
    %580 = vmatprep.subr.mxu0 0.0
    %581 = vmatpush1.xpose.msra.mxu0 0.0
    %582 = vmatprep.subr.mxu0 0.0
    %583 = vmatpush1.xpose.msra.mxu0 0.0
    %584 = vmatprep.subr.mxu0 0.0
    %585 = vmatpush1.xpose.msra.mxu0 0.0
    %586 = vmatprep.subr.mxu0 0.0
    %587 = vmatpush1.xpose.msra.mxu0 0.0
    %588 = vmatprep.subr.mxu0 0.0
    %589 = vmatpush1.xpose.msra.mxu0 0.0
    %590 = vmatprep.subr.mxu0 0.0
    %591 = vmatpush1.xpose.msra.mxu0 0.0
    %592 = vmatprep.subr.mxu0 0.0
    %593 = vmatpush1.xpose.msra.mxu0 0.0
    %594 = vmatprep.subr.mxu0 0.0
    %595 = vmatpush1.xpose.msra.mxu0 0.0
    %596 = vmatprep.subr.mxu0 0.0
    %597 = vmatpush1.xpose.msra.mxu0 0.0
    %598 = vmatprep.subr.mxu0 0.0
    %599 = vmatpush1.xpose.msra.mxu0 0.0
    %600 = vmatprep.subr.mxu0 0.0
    %601 = vmatpush1.xpose.msra.mxu0 0.0
    %602 = vmatprep.subr.mxu0 0.0
    %603 = vmatpush1.xpose.msra.mxu0 0.0
    %604 = vmatprep.subr.mxu0 0.0
    %605 = vmatpush1.xpose.msra.mxu0 0.0
    %606 = vmatprep.subr.mxu0 0.0
    %607 = vmatpush1.xpose.msra.mxu0 0.0
    %608 = vmatprep.subr.mxu0 0.0
    %609 = vmatpush1.xpose.msra.mxu0 0.0
    %610 = vmatprep.subr.mxu0 0.0
    %611 = vmatpush1.xpose.msra.mxu0 0.0
    %612 = vmatprep.mubr.f32.mxu0 0.0
    %613 = vmatmul.mubr.f32.gmra.mrb[0].mxu0 %v544
    %v614 = vpop.f32.mrb[0].mxu0
    %v615 = vadd.f32 0.0, %v614
    %v616 = vpop.f32.mrb[0].mxu0
    %617 = vdwg.mxu0
    %618 = vrot.lane.b32.xlu0 %v233, 96
    %v619 = vpop.permute.xlu0 %618
    %v620 = vsel %vm47, %v233, 0
    %v622 = vsel %vm47, %v619, 0
    %624 = vmatprep.subr.mxu0 0.0
    %625 = vmatpush1.xpose.msra.mxu0 %v622
    %626 = vmatprep.subr.mxu0 0.0
    %627 = vmatpush1.xpose.msra.mxu0 0.0
    %628 = vmatprep.subr.mxu0 0.0
    %629 = vmatpush1.xpose.msra.mxu0 0.0
    %630 = vmatprep.subr.mxu0 0.0
    %631 = vmatpush1.xpose.msra.mxu0 0.0
    %632 = vmatprep.subr.mxu0 0.0
    %633 = vmatpush1.xpose.msra.mxu0 0.0
    %634 = vmatprep.subr.mxu0 0.0
    %635 = vmatpush1.xpose.msra.mxu0 0.0
    %636 = vmatprep.subr.mxu0 0.0
    %637 = vmatpush1.xpose.msra.mxu0 0.0
    %638 = vmatprep.subr.mxu0 0.0
    %639 = vmatpush1.xpose.msra.mxu0 0.0
    %640 = vmatprep.subr.mxu0 0.0
    %641 = vmatpush1.xpose.msra.mxu0 0.0
    %642 = vmatprep.subr.mxu0 0.0
    %643 = vmatpush1.xpose.msra.mxu0 0.0
    %644 = vmatprep.subr.mxu0 0.0
    %645 = vmatpush1.xpose.msra.mxu0 0.0
    %646 = vmatprep.subr.mxu0 0.0
    %647 = vmatpush1.xpose.msra.mxu0 0.0
    %648 = vmatprep.subr.mxu0 0.0
    %649 = vmatpush1.xpose.msra.mxu0 0.0
    %650 = vmatprep.subr.mxu0 0.0
    %651 = vmatpush1.xpose.msra.mxu0 0.0
    %652 = vmatprep.subr.mxu0 0.0
    %653 = vmatpush1.xpose.msra.mxu0 0.0
    %654 = vmatprep.subr.mxu0 0.0
    %655 = vmatpush1.xpose.msra.mxu0 0.0
    %656 = vmatprep.subr.mxu0 0.0
    %657 = vmatpush1.xpose.msra.mxu0 0.0
    %658 = vmatprep.subr.mxu0 0.0
    %659 = vmatpush1.xpose.msra.mxu0 0.0
    %660 = vmatprep.subr.mxu0 0.0
    %661 = vmatpush1.xpose.msra.mxu0 0.0
    %662 = vmatprep.subr.mxu0 0.0
    %663 = vmatpush1.xpose.msra.mxu0 0.0
    %664 = vmatprep.subr.mxu0 0.0
    %665 = vmatpush1.xpose.msra.mxu0 0.0
    %666 = vmatprep.subr.mxu0 0.0
    %667 = vmatpush1.xpose.msra.mxu0 0.0
    %668 = vmatprep.subr.mxu0 0.0
    %669 = vmatpush1.xpose.msra.mxu0 0.0
    %670 = vmatprep.subr.mxu0 0.0
    %671 = vmatpush1.xpose.msra.mxu0 0.0
    %672 = vmatprep.subr.mxu0 0.0
    %673 = vmatpush1.xpose.msra.mxu0 0.0
    %674 = vmatprep.subr.mxu0 0.0
    %675 = vmatpush1.xpose.msra.mxu0 0.0
    %676 = vmatprep.subr.mxu0 0.0
    %677 = vmatpush1.xpose.msra.mxu0 0.0
    %678 = vmatprep.subr.mxu0 0.0
    %679 = vmatpush1.xpose.msra.mxu0 0.0
    %680 = vmatprep.subr.mxu0 0.0
    %681 = vmatpush1.xpose.msra.mxu0 0.0
    %682 = vmatprep.subr.mxu0 0.0
    %683 = vmatpush1.xpose.msra.mxu0 0.0
    %684 = vmatprep.subr.mxu0 0.0
    %685 = vmatpush1.xpose.msra.mxu0 0.0
    %686 = vmatprep.subr.mxu0 0.0
    %687 = vmatpush1.xpose.msra.mxu0 0.0
    %688 = vmatprep.mubr.f32.mxu0 0.0
    %689 = vmatmul.mubr.f32.gmra.mrb[0].mxu0 %v620
    %v690 = vpop.f32.mrb[0].mxu0
    %v691 = vadd.f32 0.0, %v690
    %v692 = vpop.f32.mrb[0].mxu0
    %693 = vdwg.mxu0
    %694 = vrot.lane.b32.xlu0 %v235, 96
    %v695 = vpop.permute.xlu0 %694
    %v696 = vsel %vm47, %v235, 0
    %v698 = vsel %vm47, %v695, 0
    %700 = vmatprep.subr.mxu0 0.0
    %701 = vmatpush1.xpose.msra.mxu0 %v698
    %702 = vmatprep.subr.mxu0 0.0
    %703 = vmatpush1.xpose.msra.mxu0 0.0
    %704 = vmatprep.subr.mxu0 0.0
    %705 = vmatpush1.xpose.msra.mxu0 0.0
    %706 = vmatprep.subr.mxu0 0.0
    %707 = vmatpush1.xpose.msra.mxu0 0.0
    %708 = vmatprep.subr.mxu0 0.0
    %709 = vmatpush1.xpose.msra.mxu0 0.0
    %710 = vmatprep.subr.mxu0 0.0
    %711 = vmatpush1.xpose.msra.mxu0 0.0
    %712 = vmatprep.subr.mxu0 0.0
    %713 = vmatpush1.xpose.msra.mxu0 0.0
    %714 = vmatprep.subr.mxu0 0.0
    %715 = vmatpush1.xpose.msra.mxu0 0.0
    %716 = vmatprep.subr.mxu0 0.0
    %717 = vmatpush1.xpose.msra.mxu0 0.0
    %718 = vmatprep.subr.mxu0 0.0
    %719 = vmatpush1.xpose.msra.mxu0 0.0
    %720 = vmatprep.subr.mxu0 0.0
    %721 = vmatpush1.xpose.msra.mxu0 0.0
    %722 = vmatprep.subr.mxu0 0.0
    %723 = vmatpush1.xpose.msra.mxu0 0.0
    %724 = vmatprep.subr.mxu0 0.0
    %725 = vmatpush1.xpose.msra.mxu0 0.0
    %726 = vmatprep.subr.mxu0 0.0
    %727 = vmatpush1.xpose.msra.mxu0 0.0
    %728 = vmatprep.subr.mxu0 0.0
    %729 = vmatpush1.xpose.msra.mxu0 0.0
    %730 = vmatprep.subr.mxu0 0.0
    %731 = vmatpush1.xpose.msra.mxu0 0.0
    %732 = vmatprep.subr.mxu0 0.0
    %733 = vmatpush1.xpose.msra.mxu0 0.0
    %734 = vmatprep.subr.mxu0 0.0
    %735 = vmatpush1.xpose.msra.mxu0 0.0
    %736 = vmatprep.subr.mxu0 0.0
    %737 = vmatpush1.xpose.msra.mxu0 0.0
    %738 = vmatprep.subr.mxu0 0.0
    %739 = vmatpush1.xpose.msra.mxu0 0.0
    %740 = vmatprep.subr.mxu0 0.0
    %741 = vmatpush1.xpose.msra.mxu0 0.0
    %742 = vmatprep.subr.mxu0 0.0
    %743 = vmatpush1.xpose.msra.mxu0 0.0
    %744 = vmatprep.subr.mxu0 0.0
    %745 = vmatpush1.xpose.msra.mxu0 0.0
    %746 = vmatprep.subr.mxu0 0.0
    %747 = vmatpush1.xpose.msra.mxu0 0.0
    %748 = vmatprep.subr.mxu0 0.0
    %749 = vmatpush1.xpose.msra.mxu0 0.0
    %750 = vmatprep.subr.mxu0 0.0
    %751 = vmatpush1.xpose.msra.mxu0 0.0
    %752 = vmatprep.subr.mxu0 0.0
    %753 = vmatpush1.xpose.msra.mxu0 0.0
    %754 = vmatprep.subr.mxu0 0.0
    %755 = vmatpush1.xpose.msra.mxu0 0.0
    %756 = vmatprep.subr.mxu0 0.0
    %757 = vmatpush1.xpose.msra.mxu0 0.0
    %758 = vmatprep.subr.mxu0 0.0
    %759 = vmatpush1.xpose.msra.mxu0 0.0
    %760 = vmatprep.subr.mxu0 0.0
    %761 = vmatpush1.xpose.msra.mxu0 0.0
    %762 = vmatprep.subr.mxu0 0.0
    %763 = vmatpush1.xpose.msra.mxu0 0.0
    %764 = vmatprep.mubr.f32.mxu0 0.0
    %765 = vmatmul.mubr.f32.gmra.mrb[0].mxu0 %v696
    %v766 = vpop.f32.mrb[0].mxu0
    %v767 = vadd.f32 0.0, %v766
    %v768 = vpop.f32.mrb[0].mxu0
    %769 = vdwg.mxu0
    %770 = vrot.lane.b32.xlu0 %v237, 96
    %v771 = vpop.permute.xlu0 %770
    %v772 = vsel %vm47, %v237, 0
    %v774 = vsel %vm47, %v771, 0
    %776 = vmatprep.subr.mxu0 0.0
    %777 = vmatpush1.xpose.msra.mxu0 %v774
    %778 = vmatprep.subr.mxu0 0.0
    %779 = vmatpush1.xpose.msra.mxu0 0.0
    %780 = vmatprep.subr.mxu0 0.0
    %781 = vmatpush1.xpose.msra.mxu0 0.0
    %782 = vmatprep.subr.mxu0 0.0
    %783 = vmatpush1.xpose.msra.mxu0 0.0
    %784 = vmatprep.subr.mxu0 0.0
    %785 = vmatpush1.xpose.msra.mxu0 0.0
    %786 = vmatprep.subr.mxu0 0.0
    %787 = vmatpush1.xpose.msra.mxu0 0.0
    %788 = vmatprep.subr.mxu0 0.0
    %789 = vmatpush1.xpose.msra.mxu0 0.0
    %790 = vmatprep.subr.mxu0 0.0
    %791 = vmatpush1.xpose.msra.mxu0 0.0
    %792 = vmatprep.subr.mxu0 0.0
    %793 = vmatpush1.xpose.msra.mxu0 0.0
    %794 = vmatprep.subr.mxu0 0.0
    %795 = vmatpush1.xpose.msra.mxu0 0.0
    %796 = vmatprep.subr.mxu0 0.0
    %797 = vmatpush1.xpose.msra.mxu0 0.0
    %798 = vmatprep.subr.mxu0 0.0
    %799 = vmatpush1.xpose.msra.mxu0 0.0
    %800 = vmatprep.subr.mxu0 0.0
    %801 = vmatpush1.xpose.msra.mxu0 0.0
    %802 = vmatprep.subr.mxu0 0.0
    %803 = vmatpush1.xpose.msra.mxu0 0.0
    %804 = vmatprep.subr.mxu0 0.0
    %805 = vmatpush1.xpose.msra.mxu0 0.0
    %806 = vmatprep.subr.mxu0 0.0
    %807 = vmatpush1.xpose.msra.mxu0 0.0
    %808 = vmatprep.subr.mxu0 0.0
    %809 = vmatpush1.xpose.msra.mxu0 0.0
    %810 = vmatprep.subr.mxu0 0.0
    %811 = vmatpush1.xpose.msra.mxu0 0.0
    %812 = vmatprep.subr.mxu0 0.0
    %813 = vmatpush1.xpose.msra.mxu0 0.0
    %814 = vmatprep.subr.mxu0 0.0
    %815 = vmatpush1.xpose.msra.mxu0 0.0
    %816 = vmatprep.subr.mxu0 0.0
    %817 = vmatpush1.xpose.msra.mxu0 0.0
    %818 = vmatprep.subr.mxu0 0.0
    %819 = vmatpush1.xpose.msra.mxu0 0.0
    %820 = vmatprep.subr.mxu0 0.0
    %821 = vmatpush1.xpose.msra.mxu0 0.0
    %822 = vmatprep.subr.mxu0 0.0
    %823 = vmatpush1.xpose.msra.mxu0 0.0
    %824 = vmatprep.subr.mxu0 0.0
    %825 = vmatpush1.xpose.msra.mxu0 0.0
    %826 = vmatprep.subr.mxu0 0.0
    %827 = vmatpush1.xpose.msra.mxu0 0.0
    %828 = vmatprep.subr.mxu0 0.0
    %829 = vmatpush1.xpose.msra.mxu0 0.0
    %830 = vmatprep.subr.mxu0 0.0
    %831 = vmatpush1.xpose.msra.mxu0 0.0
    %832 = vmatprep.subr.mxu0 0.0
    %833 = vmatpush1.xpose.msra.mxu0 0.0
    %834 = vmatprep.subr.mxu0 0.0
    %835 = vmatpush1.xpose.msra.mxu0 0.0
    %836 = vmatprep.subr.mxu0 0.0
    %837 = vmatpush1.xpose.msra.mxu0 0.0
    %838 = vmatprep.subr.mxu0 0.0
    %839 = vmatpush1.xpose.msra.mxu0 0.0
    %840 = vmatprep.mubr.f32.mxu0 0.0
    %841 = vmatmul.mubr.f32.gmra.mrb[0].mxu0 %v772
    %v842 = vpop.f32.mrb[0].mxu0
    %v843 = vadd.f32 0.0, %v842
    %v844 = vpop.f32.mrb[0].mxu0
    %845 = vdwg.mxu0
    %v846 = vsel %vm47, %v311, -inf
    %847 = vmax.xlane.f32.xlu0 %v846
    %v848 = vpop.xlane.xlu0 %847
    %v849 = vsel %vm47, %v387, -inf
    %850 = vmax.xlane.f32.xlu0 %v849
    %v851 = vpop.xlane.xlu0 %850
    %v852 = vsel %vm47, %v463, -inf
    %853 = vmax.xlane.f32.xlu0 %v852
    %v854 = vpop.xlane.xlu0 %853
    %v855 = vsel %vm47, %v539, -inf
    %856 = vmax.xlane.f32.xlu0 %v855
    %v857 = vpop.xlane.xlu0 %856
    %v858 = vsel %vm47, %v615, -inf
    %859 = vmax.xlane.f32.xlu0 %v858
    %v860 = vpop.xlane.xlu0 %859
    %v861 = vsel %vm47, %v691, -inf
    %862 = vmax.xlane.f32.xlu0 %v861
    %v863 = vpop.xlane.xlu0 %862
    %v864 = vsel %vm47, %v767, -inf
    %865 = vmax.xlane.f32.xlu0 %v864
    %v866 = vpop.xlane.xlu0 %865
    %v867 = vsel %vm47, %v843, -inf
    %868 = vmax.xlane.f32.xlu0 %v867
    %v869 = vpop.xlane.xlu0 %868
    %v870 = vsub.f32 %v311, %v848
    %v871 = vsub.f32 %v387, %v851
    %v872 = vsub.f32 %v463, %v854
    %v873 = vsub.f32 %v539, %v857
    %v874 = vsub.f32 %v615, %v860
    %v875 = vsub.f32 %v691, %v863
    %v876 = vsub.f32 %v767, %v866
    %v877 = vsub.f32 %v843, %v869
    %v878 = vmul.f32 %v870, 1.442695
    %v879 = vpow.pop %v878
    %v880 = vmul.f32 %v871, 1.442695
    %v881 = vpow.pop %v880
    %v882 = vmul.f32 %v872, 1.442695
    %v883 = vpow.pop %v882
    %v884 = vmul.f32 %v873, 1.442695
    %v885 = vpow.pop %v884
    %v886 = vmul.f32 %v874, 1.442695
    %v887 = vpow.pop %v886
    %v888 = vmul.f32 %v875, 1.442695
    %v889 = vpow.pop %v888
    %v890 = vmul.f32 %v876, 1.442695
    %v891 = vpow.pop %v890
    %v892 = vmul.f32 %v877, 1.442695
    %v893 = vpow.pop %v892
    %v894 = vsel %vm47, %v879, 0.0
    %895 = vadd.xlane.f32.xlu0 %v894
    %v896 = vpop.xlane.xlu0 %895
    %v897 = vsel %vm47, %v881, 0.0
    %898 = vadd.xlane.f32.xlu0 %v897
    %v899 = vpop.xlane.xlu0 %898
    %v900 = vsel %vm47, %v883, 0.0
    %901 = vadd.xlane.f32.xlu0 %v900
    %v902 = vpop.xlane.xlu0 %901
    %v903 = vsel %vm47, %v885, 0.0
    %904 = vadd.xlane.f32.xlu0 %v903
    %v905 = vpop.xlane.xlu0 %904
    %v906 = vsel %vm47, %v887, 0.0
    %907 = vadd.xlane.f32.xlu0 %v906
    %v908 = vpop.xlane.xlu0 %907
    %v909 = vsel %vm47, %v889, 0.0
    %910 = vadd.xlane.f32.xlu0 %v909
    %v911 = vpop.xlane.xlu0 %910
    %v912 = vsel %vm47, %v891, 0.0
    %913 = vadd.xlane.f32.xlu0 %v912
    %v914 = vpop.xlane.xlu0 %913
    %v915 = vsel %vm47, %v893, 0.0
    %916 = vadd.xlane.f32.xlu0 %v915
    %v917 = vpop.xlane.xlu0 %916
    %v918 = vrcp.pop %v896
    %v919 = vmul.f32 %v879, %v918
    %v920 = vrcp.pop %v899
    %v921 = vmul.f32 %v881, %v920
    %v922 = vrcp.pop %v902
    %v923 = vmul.f32 %v883, %v922
    %v924 = vrcp.pop %v905
    %v925 = vmul.f32 %v885, %v924
    %v926 = vrcp.pop %v908
    %v927 = vmul.f32 %v887, %v926
    %v928 = vrcp.pop %v911
    %v929 = vmul.f32 %v889, %v928
    %v930 = vrcp.pop %v914
    %v931 = vmul.f32 %v891, %v930
    %v932 = vrcp.pop %v917
    %v933 = vmul.f32 %v893, %v932
    %934 = vrot.lane.b32.xlu0 %v216, 64
    %v935 = vpop.permute.xlu0 %934
    %v938 = vsel %vm47, %v919, 0
    %940 = vmatprep.subr.mxu0 0.0
    %941 = vmatpush1.msra.mxu0 %v935
    %942 = vmatprep.subr.mxu0 0.0
    %943 = vmatpush1.msra.mxu0 0.0
    %944 = vmatprep.subr.mxu0 0.0
    %945 = vmatpush1.msra.mxu0 0.0
    %946 = vmatprep.subr.mxu0 0.0
    %947 = vmatpush1.msra.mxu0 0.0
    %948 = vmatprep.subr.mxu0 0.0
    %949 = vmatpush1.msra.mxu0 0.0
    %950 = vmatprep.subr.mxu0 0.0
    %951 = vmatpush1.msra.mxu0 0.0
    %952 = vmatprep.subr.mxu0 0.0
    %953 = vmatpush1.msra.mxu0 0.0
    %954 = vmatprep.subr.mxu0 0.0
    %955 = vmatpush1.msra.mxu0 0.0
    %956 = vmatprep.subr.mxu0 0.0
    %957 = vmatpush1.msra.mxu0 0.0
    %958 = vmatprep.subr.mxu0 0.0
    %959 = vmatpush1.msra.mxu0 0.0
    %960 = vmatprep.subr.mxu0 0.0
    %961 = vmatpush1.msra.mxu0 0.0
    %962 = vmatprep.subr.mxu0 0.0
    %963 = vmatpush1.msra.mxu0 0.0
    %964 = vmatprep.subr.mxu0 0.0
    %965 = vmatpush1.msra.mxu0 0.0
    %966 = vmatprep.subr.mxu0 0.0
    %967 = vmatpush1.msra.mxu0 0.0
    %968 = vmatprep.subr.mxu0 0.0
    %969 = vmatpush1.msra.mxu0 0.0
    %970 = vmatprep.subr.mxu0 0.0
    %971 = vmatpush1.msra.mxu0 0.0
    %972 = vmatprep.subr.mxu0 0.0
    %973 = vmatpush1.msra.mxu0 0.0
    %974 = vmatprep.subr.mxu0 0.0
    %975 = vmatpush1.msra.mxu0 0.0
    %976 = vmatprep.subr.mxu0 0.0
    %977 = vmatpush1.msra.mxu0 0.0
    %978 = vmatprep.subr.mxu0 0.0
    %979 = vmatpush1.msra.mxu0 0.0
    %980 = vmatprep.subr.mxu0 0.0
    %981 = vmatpush1.msra.mxu0 0.0
    %982 = vmatprep.subr.mxu0 0.0
    %983 = vmatpush1.msra.mxu0 0.0
    %984 = vmatprep.subr.mxu0 0.0
    %985 = vmatpush1.msra.mxu0 0.0
    %986 = vmatprep.subr.mxu0 0.0
    %987 = vmatpush1.msra.mxu0 0.0
    %988 = vmatprep.subr.mxu0 0.0
    %989 = vmatpush1.msra.mxu0 0.0
    %990 = vmatprep.subr.mxu0 0.0
    %991 = vmatpush1.msra.mxu0 0.0
    %992 = vmatprep.subr.mxu0 0.0
    %993 = vmatpush1.msra.mxu0 0.0
    %994 = vmatprep.subr.mxu0 0.0
    %995 = vmatpush1.msra.mxu0 0.0
    %996 = vmatprep.subr.mxu0 0.0
    %997 = vmatpush1.msra.mxu0 0.0
    %998 = vmatprep.subr.mxu0 0.0
    %999 = vmatpush1.msra.mxu0 0.0
    %1000 = vmatprep.subr.mxu0 0.0
    %1001 = vmatpush1.msra.mxu0 0.0
    %1002 = vmatprep.subr.mxu0 0.0
    %1003 = vmatpush1.msra.mxu0 0.0
    %1004 = vmatprep.mubr.f32.mxu0 0.0
    %1005 = vmatmul.mubr.f32.gmra.mrb[0].mxu0 %v938
    %v1006 = vpop.f32.mrb[0].mxu0
    %v1007 = vadd.f32 0.0, %v1006
    %v1008 = vpop.f32.mrb[0].mxu0
    %1009 = vdwg.mxu0
    %1010 = vrot.lane.b32.xlu0 %v221, 64
    %v1011 = vpop.permute.xlu0 %1010
    %v1014 = vsel %vm47, %v921, 0
    %1016 = vmatprep.subr.mxu0 0.0
    %1017 = vmatpush1.msra.mxu0 %v1011
    %1018 = vmatprep.subr.mxu0 0.0
    %1019 = vmatpush1.msra.mxu0 0.0
    %1020 = vmatprep.subr.mxu0 0.0
    %1021 = vmatpush1.msra.mxu0 0.0
    %1022 = vmatprep.subr.mxu0 0.0
    %1023 = vmatpush1.msra.mxu0 0.0
    %1024 = vmatprep.subr.mxu0 0.0
    %1025 = vmatpush1.msra.mxu0 0.0
    %1026 = vmatprep.subr.mxu0 0.0
    %1027 = vmatpush1.msra.mxu0 0.0
    %1028 = vmatprep.subr.mxu0 0.0
    %1029 = vmatpush1.msra.mxu0 0.0
    %1030 = vmatprep.subr.mxu0 0.0
    %1031 = vmatpush1.msra.mxu0 0.0
    %1032 = vmatprep.subr.mxu0 0.0
    %1033 = vmatpush1.msra.mxu0 0.0
    %1034 = vmatprep.subr.mxu0 0.0
    %1035 = vmatpush1.msra.mxu0 0.0
    %1036 = vmatprep.subr.mxu0 0.0
    %1037 = vmatpush1.msra.mxu0 0.0
    %1038 = vmatprep.subr.mxu0 0.0
    %1039 = vmatpush1.msra.mxu0 0.0
    %1040 = vmatprep.subr.mxu0 0.0
    %1041 = vmatpush1.msra.mxu0 0.0
    %1042 = vmatprep.subr.mxu0 0.0
    %1043 = vmatpush1.msra.mxu0 0.0
    %1044 = vmatprep.subr.mxu0 0.0
    %1045 = vmatpush1.msra.mxu0 0.0
    %1046 = vmatprep.subr.mxu0 0.0
    %1047 = vmatpush1.msra.mxu0 0.0
    %1048 = vmatprep.subr.mxu0 0.0
    %1049 = vmatpush1.msra.mxu0 0.0
    %1050 = vmatprep.subr.mxu0 0.0
    %1051 = vmatpush1.msra.mxu0 0.0
    %1052 = vmatprep.subr.mxu0 0.0
    %1053 = vmatpush1.msra.mxu0 0.0
    %1054 = vmatprep.subr.mxu0 0.0
    %1055 = vmatpush1.msra.mxu0 0.0
    %1056 = vmatprep.subr.mxu0 0.0
    %1057 = vmatpush1.msra.mxu0 0.0
    %1058 = vmatprep.subr.mxu0 0.0
    %1059 = vmatpush1.msra.mxu0 0.0
    %1060 = vmatprep.subr.mxu0 0.0
    %1061 = vmatpush1.msra.mxu0 0.0
    %1062 = vmatprep.subr.mxu0 0.0
    %1063 = vmatpush1.msra.mxu0 0.0
    %1064 = vmatprep.subr.mxu0 0.0
    %1065 = vmatpush1.msra.mxu0 0.0
    %1066 = vmatprep.subr.mxu0 0.0
    %1067 = vmatpush1.msra.mxu0 0.0
    %1068 = vmatprep.subr.mxu0 0.0
    %1069 = vmatpush1.msra.mxu0 0.0
    %1070 = vmatprep.subr.mxu0 0.0
    %1071 = vmatpush1.msra.mxu0 0.0
    %1072 = vmatprep.subr.mxu0 0.0
    %1073 = vmatpush1.msra.mxu0 0.0
    %1074 = vmatprep.subr.mxu0 0.0
    %1075 = vmatpush1.msra.mxu0 0.0
    %1076 = vmatprep.subr.mxu0 0.0
    %1077 = vmatpush1.msra.mxu0 0.0
    %1078 = vmatprep.subr.mxu0 0.0
    %1079 = vmatpush1.msra.mxu0 0.0
    %1080 = vmatprep.mubr.f32.mxu0 0.0
    %1081 = vmatmul.mubr.f32.gmra.mrb[0].mxu0 %v1014
    %v1082 = vpop.f32.mrb[0].mxu0
    %v1083 = vadd.f32 0.0, %v1082
    %v1084 = vpop.f32.mrb[0].mxu0
    %1085 = vdwg.mxu0
    %1086 = vrot.lane.b32.xlu0 %v227, 64
    %v1087 = vpop.permute.xlu0 %1086
    %v1090 = vsel %vm47, %v923, 0
    %1092 = vmatprep.subr.mxu0 0.0
    %1093 = vmatpush1.msra.mxu0 %v1087
    %1094 = vmatprep.subr.mxu0 0.0
    %1095 = vmatpush1.msra.mxu0 0.0
    %1096 = vmatprep.subr.mxu0 0.0
    %1097 = vmatpush1.msra.mxu0 0.0
    %1098 = vmatprep.subr.mxu0 0.0
    %1099 = vmatpush1.msra.mxu0 0.0
    %1100 = vmatprep.subr.mxu0 0.0
    %1101 = vmatpush1.msra.mxu0 0.0
    %1102 = vmatprep.subr.mxu0 0.0
    %1103 = vmatpush1.msra.mxu0 0.0
    %1104 = vmatprep.subr.mxu0 0.0
    %1105 = vmatpush1.msra.mxu0 0.0
    %1106 = vmatprep.subr.mxu0 0.0
    %1107 = vmatpush1.msra.mxu0 0.0
    %1108 = vmatprep.subr.mxu0 0.0
    %1109 = vmatpush1.msra.mxu0 0.0
    %1110 = vmatprep.subr.mxu0 0.0
    %1111 = vmatpush1.msra.mxu0 0.0
    %1112 = vmatprep.subr.mxu0 0.0
    %1113 = vmatpush1.msra.mxu0 0.0
    %1114 = vmatprep.subr.mxu0 0.0
    %1115 = vmatpush1.msra.mxu0 0.0
    %1116 = vmatprep.subr.mxu0 0.0
    %1117 = vmatpush1.msra.mxu0 0.0
    %1118 = vmatprep.subr.mxu0 0.0
    %1119 = vmatpush1.msra.mxu0 0.0
    %1120 = vmatprep.subr.mxu0 0.0
    %1121 = vmatpush1.msra.mxu0 0.0
    %1122 = vmatprep.subr.mxu0 0.0
    %1123 = vmatpush1.msra.mxu0 0.0
    %1124 = vmatprep.subr.mxu0 0.0
    %1125 = vmatpush1.msra.mxu0 0.0
    %1126 = vmatprep.subr.mxu0 0.0
    %1127 = vmatpush1.msra.mxu0 0.0
    %1128 = vmatprep.subr.mxu0 0.0
    %1129 = vmatpush1.msra.mxu0 0.0
    %1130 = vmatprep.subr.mxu0 0.0
    %1131 = vmatpush1.msra.mxu0 0.0
    %1132 = vmatprep.subr.mxu0 0.0
    %1133 = vmatpush1.msra.mxu0 0.0
    %1134 = vmatprep.subr.mxu0 0.0
    %1135 = vmatpush1.msra.mxu0 0.0
    %1136 = vmatprep.subr.mxu0 0.0
    %1137 = vmatpush1.msra.mxu0 0.0
    %1138 = vmatprep.subr.mxu0 0.0
    %1139 = vmatpush1.msra.mxu0 0.0
    %1140 = vmatprep.subr.mxu0 0.0
    %1141 = vmatpush1.msra.mxu0 0.0
    %1142 = vmatprep.subr.mxu0 0.0
    %1143 = vmatpush1.msra.mxu0 0.0
    %1144 = vmatprep.subr.mxu0 0.0
    %1145 = vmatpush1.msra.mxu0 0.0
    %1146 = vmatprep.subr.mxu0 0.0
    %1147 = vmatpush1.msra.mxu0 0.0
    %1148 = vmatprep.subr.mxu0 0.0
    %1149 = vmatpush1.msra.mxu0 0.0
    %1150 = vmatprep.subr.mxu0 0.0
    %1151 = vmatpush1.msra.mxu0 0.0
    %1152 = vmatprep.subr.mxu0 0.0
    %1153 = vmatpush1.msra.mxu0 0.0
    %1154 = vmatprep.subr.mxu0 0.0
    %1155 = vmatpush1.msra.mxu0 0.0
    %1156 = vmatprep.mubr.f32.mxu0 0.0
    %1157 = vmatmul.mubr.f32.gmra.mrb[0].mxu0 %v1090
    %v1158 = vpop.f32.mrb[0].mxu0
    %v1159 = vadd.f32 0.0, %v1158
    %v1160 = vpop.f32.mrb[0].mxu0
    %1161 = vdwg.mxu0
    %1162 = vrot.lane.b32.xlu0 %v229, 64
    %v1163 = vpop.permute.xlu0 %1162
    %v1166 = vsel %vm47, %v925, 0
    %1168 = vmatprep.subr.mxu0 0.0
    %1169 = vmatpush1.msra.mxu0 %v1163
    %1170 = vmatprep.subr.mxu0 0.0
    %1171 = vmatpush1.msra.mxu0 0.0
    %1172 = vmatprep.subr.mxu0 0.0
    %1173 = vmatpush1.msra.mxu0 0.0
    %1174 = vmatprep.subr.mxu0 0.0
    %1175 = vmatpush1.msra.mxu0 0.0
    %1176 = vmatprep.subr.mxu0 0.0
    %1177 = vmatpush1.msra.mxu0 0.0
    %1178 = vmatprep.subr.mxu0 0.0
    %1179 = vmatpush1.msra.mxu0 0.0
    %1180 = vmatprep.subr.mxu0 0.0
    %1181 = vmatpush1.msra.mxu0 0.0
    %1182 = vmatprep.subr.mxu0 0.0
    %1183 = vmatpush1.msra.mxu0 0.0
    %1184 = vmatprep.subr.mxu0 0.0
    %1185 = vmatpush1.msra.mxu0 0.0
    %1186 = vmatprep.subr.mxu0 0.0
    %1187 = vmatpush1.msra.mxu0 0.0
    %1188 = vmatprep.subr.mxu0 0.0
    %1189 = vmatpush1.msra.mxu0 0.0
    %1190 = vmatprep.subr.mxu0 0.0
    %1191 = vmatpush1.msra.mxu0 0.0
    %1192 = vmatprep.subr.mxu0 0.0
    %1193 = vmatpush1.msra.mxu0 0.0
    %1194 = vmatprep.subr.mxu0 0.0
    %1195 = vmatpush1.msra.mxu0 0.0
    %1196 = vmatprep.subr.mxu0 0.0
    %1197 = vmatpush1.msra.mxu0 0.0
    %1198 = vmatprep.subr.mxu0 0.0
    %1199 = vmatpush1.msra.mxu0 0.0
    %1200 = vmatprep.subr.mxu0 0.0
    %1201 = vmatpush1.msra.mxu0 0.0
    %1202 = vmatprep.subr.mxu0 0.0
    %1203 = vmatpush1.msra.mxu0 0.0
    %1204 = vmatprep.subr.mxu0 0.0
    %1205 = vmatpush1.msra.mxu0 0.0
    %1206 = vmatprep.subr.mxu0 0.0
    %1207 = vmatpush1.msra.mxu0 0.0
    %1208 = vmatprep.subr.mxu0 0.0
    %1209 = vmatpush1.msra.mxu0 0.0
    %1210 = vmatprep.subr.mxu0 0.0
    %1211 = vmatpush1.msra.mxu0 0.0
    %1212 = vmatprep.subr.mxu0 0.0
    %1213 = vmatpush1.msra.mxu0 0.0
    %1214 = vmatprep.subr.mxu0 0.0
    %1215 = vmatpush1.msra.mxu0 0.0
    %1216 = vmatprep.subr.mxu0 0.0
    %1217 = vmatpush1.msra.mxu0 0.0
    %1218 = vmatprep.subr.mxu0 0.0
    %1219 = vmatpush1.msra.mxu0 0.0
    %1220 = vmatprep.subr.mxu0 0.0
    %1221 = vmatpush1.msra.mxu0 0.0
    %1222 = vmatprep.subr.mxu0 0.0
    %1223 = vmatpush1.msra.mxu0 0.0
    %1224 = vmatprep.subr.mxu0 0.0
    %1225 = vmatpush1.msra.mxu0 0.0
    %1226 = vmatprep.subr.mxu0 0.0
    %1227 = vmatpush1.msra.mxu0 0.0
    %1228 = vmatprep.subr.mxu0 0.0
    %1229 = vmatpush1.msra.mxu0 0.0
    %1230 = vmatprep.subr.mxu0 0.0
    %1231 = vmatpush1.msra.mxu0 0.0
    %1232 = vmatprep.mubr.f32.mxu0 0.0
    %1233 = vmatmul.mubr.f32.gmra.mrb[0].mxu0 %v1166
    %v1234 = vpop.f32.mrb[0].mxu0
    %v1235 = vadd.f32 0.0, %v1234
    %v1236 = vpop.f32.mrb[0].mxu0
    %1237 = vdwg.mxu0
    %1238 = vrot.lane.b32.xlu0 %v231, 64
    %v1239 = vpop.permute.xlu0 %1238
    %v1242 = vsel %vm47, %v927, 0
    %1244 = vmatprep.subr.mxu0 0.0
    %1245 = vmatpush1.msra.mxu0 %v1239
    %1246 = vmatprep.subr.mxu0 0.0
    %1247 = vmatpush1.msra.mxu0 0.0
    %1248 = vmatprep.subr.mxu0 0.0
    %1249 = vmatpush1.msra.mxu0 0.0
    %1250 = vmatprep.subr.mxu0 0.0
    %1251 = vmatpush1.msra.mxu0 0.0
    %1252 = vmatprep.subr.mxu0 0.0
    %1253 = vmatpush1.msra.mxu0 0.0
    %1254 = vmatprep.subr.mxu0 0.0
    %1255 = vmatpush1.msra.mxu0 0.0
    %1256 = vmatprep.subr.mxu0 0.0
    %1257 = vmatpush1.msra.mxu0 0.0
    %1258 = vmatprep.subr.mxu0 0.0
    %1259 = vmatpush1.msra.mxu0 0.0
    %1260 = vmatprep.subr.mxu0 0.0
    %1261 = vmatpush1.msra.mxu0 0.0
    %1262 = vmatprep.subr.mxu0 0.0
    %1263 = vmatpush1.msra.mxu0 0.0
    %1264 = vmatprep.subr.mxu0 0.0
    %1265 = vmatpush1.msra.mxu0 0.0
    %1266 = vmatprep.subr.mxu0 0.0
    %1267 = vmatpush1.msra.mxu0 0.0
    %1268 = vmatprep.subr.mxu0 0.0
    %1269 = vmatpush1.msra.mxu0 0.0
    %1270 = vmatprep.subr.mxu0 0.0
    %1271 = vmatpush1.msra.mxu0 0.0
    %1272 = vmatprep.subr.mxu0 0.0
    %1273 = vmatpush1.msra.mxu0 0.0
    %1274 = vmatprep.subr.mxu0 0.0
    %1275 = vmatpush1.msra.mxu0 0.0
    %1276 = vmatprep.subr.mxu0 0.0
    %1277 = vmatpush1.msra.mxu0 0.0
    %1278 = vmatprep.subr.mxu0 0.0
    %1279 = vmatpush1.msra.mxu0 0.0
    %1280 = vmatprep.subr.mxu0 0.0
    %1281 = vmatpush1.msra.mxu0 0.0
    %1282 = vmatprep.subr.mxu0 0.0
    %1283 = vmatpush1.msra.mxu0 0.0
    %1284 = vmatprep.subr.mxu0 0.0
    %1285 = vmatpush1.msra.mxu0 0.0
    %1286 = vmatprep.subr.mxu0 0.0
    %1287 = vmatpush1.msra.mxu0 0.0
    %1288 = vmatprep.subr.mxu0 0.0
    %1289 = vmatpush1.msra.mxu0 0.0
    %1290 = vmatprep.subr.mxu0 0.0
    %1291 = vmatpush1.msra.mxu0 0.0
    %1292 = vmatprep.subr.mxu0 0.0
    %1293 = vmatpush1.msra.mxu0 0.0
    %1294 = vmatprep.subr.mxu0 0.0
    %1295 = vmatpush1.msra.mxu0 0.0
    %1296 = vmatprep.subr.mxu0 0.0
    %1297 = vmatpush1.msra.mxu0 0.0
    %1298 = vmatprep.subr.mxu0 0.0
    %1299 = vmatpush1.msra.mxu0 0.0
    %1300 = vmatprep.subr.mxu0 0.0
    %1301 = vmatpush1.msra.mxu0 0.0
    %1302 = vmatprep.subr.mxu0 0.0
    %1303 = vmatpush1.msra.mxu0 0.0
    %1304 = vmatprep.subr.mxu0 0.0
    %1305 = vmatpush1.msra.mxu0 0.0
    %1306 = vmatprep.subr.mxu0 0.0
    %1307 = vmatpush1.msra.mxu0 0.0
    %1308 = vmatprep.mubr.f32.mxu0 0.0
    %1309 = vmatmul.mubr.f32.gmra.mrb[0].mxu0 %v1242
    %v1310 = vpop.f32.mrb[0].mxu0
    %v1311 = vadd.f32 0.0, %v1310
    %v1312 = vpop.f32.mrb[0].mxu0
    %1313 = vdwg.mxu0
    %1314 = vrot.lane.b32.xlu0 %v233, 64
    %v1315 = vpop.permute.xlu0 %1314
    %v1318 = vsel %vm47, %v929, 0
    %1320 = vmatprep.subr.mxu0 0.0
    %1321 = vmatpush1.msra.mxu0 %v1315
    %1322 = vmatprep.subr.mxu0 0.0
    %1323 = vmatpush1.msra.mxu0 0.0
    %1324 = vmatprep.subr.mxu0 0.0
    %1325 = vmatpush1.msra.mxu0 0.0
    %1326 = vmatprep.subr.mxu0 0.0
    %1327 = vmatpush1.msra.mxu0 0.0
    %1328 = vmatprep.subr.mxu0 0.0
    %1329 = vmatpush1.msra.mxu0 0.0
    %1330 = vmatprep.subr.mxu0 0.0
    %1331 = vmatpush1.msra.mxu0 0.0
    %1332 = vmatprep.subr.mxu0 0.0
    %1333 = vmatpush1.msra.mxu0 0.0
    %1334 = vmatprep.subr.mxu0 0.0
    %1335 = vmatpush1.msra.mxu0 0.0
    %1336 = vmatprep.subr.mxu0 0.0
    %1337 = vmatpush1.msra.mxu0 0.0
    %1338 = vmatprep.subr.mxu0 0.0
    %1339 = vmatpush1.msra.mxu0 0.0
    %1340 = vmatprep.subr.mxu0 0.0
    %1341 = vmatpush1.msra.mxu0 0.0
    %1342 = vmatprep.subr.mxu0 0.0
    %1343 = vmatpush1.msra.mxu0 0.0
    %1344 = vmatprep.subr.mxu0 0.0
    %1345 = vmatpush1.msra.mxu0 0.0
    %1346 = vmatprep.subr.mxu0 0.0
    %1347 = vmatpush1.msra.mxu0 0.0
    %1348 = vmatprep.subr.mxu0 0.0
    %1349 = vmatpush1.msra.mxu0 0.0
    %1350 = vmatprep.subr.mxu0 0.0
    %1351 = vmatpush1.msra.mxu0 0.0
    %1352 = vmatprep.subr.mxu0 0.0
    %1353 = vmatpush1.msra.mxu0 0.0
    %1354 = vmatprep.subr.mxu0 0.0
    %1355 = vmatpush1.msra.mxu0 0.0
    %1356 = vmatprep.subr.mxu0 0.0
    %1357 = vmatpush1.msra.mxu0 0.0
    %1358 = vmatprep.subr.mxu0 0.0
    %1359 = vmatpush1.msra.mxu0 0.0
    %1360 = vmatprep.subr.mxu0 0.0
    %1361 = vmatpush1.msra.mxu0 0.0
    %1362 = vmatprep.subr.mxu0 0.0
    %1363 = vmatpush1.msra.mxu0 0.0
    %1364 = vmatprep.subr.mxu0 0.0
    %1365 = vmatpush1.msra.mxu0 0.0
    %1366 = vmatprep.subr.mxu0 0.0
    %1367 = vmatpush1.msra.mxu0 0.0
    %1368 = vmatprep.subr.mxu0 0.0
    %1369 = vmatpush1.msra.mxu0 0.0
    %1370 = vmatprep.subr.mxu0 0.0
    %1371 = vmatpush1.msra.mxu0 0.0
    %1372 = vmatprep.subr.mxu0 0.0
    %1373 = vmatpush1.msra.mxu0 0.0
    %1374 = vmatprep.subr.mxu0 0.0
    %1375 = vmatpush1.msra.mxu0 0.0
    %1376 = vmatprep.subr.mxu0 0.0
    %1377 = vmatpush1.msra.mxu0 0.0
    %1378 = vmatprep.subr.mxu0 0.0
    %1379 = vmatpush1.msra.mxu0 0.0
    %1380 = vmatprep.subr.mxu0 0.0
    %1381 = vmatpush1.msra.mxu0 0.0
    %1382 = vmatprep.subr.mxu0 0.0
    %1383 = vmatpush1.msra.mxu0 0.0
    %1384 = vmatprep.mubr.f32.mxu0 0.0
    %1385 = vmatmul.mubr.f32.gmra.mrb[0].mxu0 %v1318
    %v1386 = vpop.f32.mrb[0].mxu0
    %v1387 = vadd.f32 0.0, %v1386
    %v1388 = vpop.f32.mrb[0].mxu0
    %1389 = vdwg.mxu0
    %1390 = vrot.lane.b32.xlu0 %v235, 64
    %v1391 = vpop.permute.xlu0 %1390
    %v1394 = vsel %vm47, %v931, 0
    %1396 = vmatprep.subr.mxu0 0.0
    %1397 = vmatpush1.msra.mxu0 %v1391
    %1398 = vmatprep.subr.mxu0 0.0
    %1399 = vmatpush1.msra.mxu0 0.0
    %1400 = vmatprep.subr.mxu0 0.0
    %1401 = vmatpush1.msra.mxu0 0.0
    %1402 = vmatprep.subr.mxu0 0.0
    %1403 = vmatpush1.msra.mxu0 0.0
    %1404 = vmatprep.subr.mxu0 0.0
    %1405 = vmatpush1.msra.mxu0 0.0
    %1406 = vmatprep.subr.mxu0 0.0
    %1407 = vmatpush1.msra.mxu0 0.0
    %1408 = vmatprep.subr.mxu0 0.0
    %1409 = vmatpush1.msra.mxu0 0.0
    %1410 = vmatprep.subr.mxu0 0.0
    %1411 = vmatpush1.msra.mxu0 0.0
    %1412 = vmatprep.subr.mxu0 0.0
    %1413 = vmatpush1.msra.mxu0 0.0
    %1414 = vmatprep.subr.mxu0 0.0
    %1415 = vmatpush1.msra.mxu0 0.0
    %1416 = vmatprep.subr.mxu0 0.0
    %1417 = vmatpush1.msra.mxu0 0.0
    %1418 = vmatprep.subr.mxu0 0.0
    %1419 = vmatpush1.msra.mxu0 0.0
    %1420 = vmatprep.subr.mxu0 0.0
    %1421 = vmatpush1.msra.mxu0 0.0
    %1422 = vmatprep.subr.mxu0 0.0
    %1423 = vmatpush1.msra.mxu0 0.0
    %1424 = vmatprep.subr.mxu0 0.0
    %1425 = vmatpush1.msra.mxu0 0.0
    %1426 = vmatprep.subr.mxu0 0.0
    %1427 = vmatpush1.msra.mxu0 0.0
    %1428 = vmatprep.subr.mxu0 0.0
    %1429 = vmatpush1.msra.mxu0 0.0
    %1430 = vmatprep.subr.mxu0 0.0
    %1431 = vmatpush1.msra.mxu0 0.0
    %1432 = vmatprep.subr.mxu0 0.0
    %1433 = vmatpush1.msra.mxu0 0.0
    %1434 = vmatprep.subr.mxu0 0.0
    %1435 = vmatpush1.msra.mxu0 0.0
    %1436 = vmatprep.subr.mxu0 0.0
    %1437 = vmatpush1.msra.mxu0 0.0
    %1438 = vmatprep.subr.mxu0 0.0
    %1439 = vmatpush1.msra.mxu0 0.0
    %1440 = vmatprep.subr.mxu0 0.0
    %1441 = vmatpush1.msra.mxu0 0.0
    %1442 = vmatprep.subr.mxu0 0.0
    %1443 = vmatpush1.msra.mxu0 0.0
    %1444 = vmatprep.subr.mxu0 0.0
    %1445 = vmatpush1.msra.mxu0 0.0
    %1446 = vmatprep.subr.mxu0 0.0
    %1447 = vmatpush1.msra.mxu0 0.0
    %1448 = vmatprep.subr.mxu0 0.0
    %1449 = vmatpush1.msra.mxu0 0.0
    %1450 = vmatprep.subr.mxu0 0.0
    %1451 = vmatpush1.msra.mxu0 0.0
    %1452 = vmatprep.subr.mxu0 0.0
    %1453 = vmatpush1.msra.mxu0 0.0
    %1454 = vmatprep.subr.mxu0 0.0
    %1455 = vmatpush1.msra.mxu0 0.0
    %1456 = vmatprep.subr.mxu0 0.0
    %1457 = vmatpush1.msra.mxu0 0.0
    %1458 = vmatprep.subr.mxu0 0.0
    %1459 = vmatpush1.msra.mxu0 0.0
    %1460 = vmatprep.mubr.f32.mxu0 0.0
    %1461 = vmatmul.mubr.f32.gmra.mrb[0].mxu0 %v1394
    %v1462 = vpop.f32.mrb[0].mxu0
    %v1463 = vadd.f32 0.0, %v1462
    %v1464 = vpop.f32.mrb[0].mxu0
    %1465 = vdwg.mxu0
    %1466 = vrot.lane.b32.xlu0 %v237, 64
    %v1467 = vpop.permute.xlu0 %1466
    %v1470 = vsel %vm47, %v933, 0
    %1472 = vmatprep.subr.mxu0 0.0
    %1473 = vmatpush1.msra.mxu0 %v1467
    %1474 = vmatprep.subr.mxu0 0.0
    %1475 = vmatpush1.msra.mxu0 0.0
    %1476 = vmatprep.subr.mxu0 0.0
    %1477 = vmatpush1.msra.mxu0 0.0
    %1478 = vmatprep.subr.mxu0 0.0
    %1479 = vmatpush1.msra.mxu0 0.0
    %1480 = vmatprep.subr.mxu0 0.0
    %1481 = vmatpush1.msra.mxu0 0.0
    %1482 = vmatprep.subr.mxu0 0.0
    %1483 = vmatpush1.msra.mxu0 0.0
    %1484 = vmatprep.subr.mxu0 0.0
    %1485 = vmatpush1.msra.mxu0 0.0
    %1486 = vmatprep.subr.mxu0 0.0
    %1487 = vmatpush1.msra.mxu0 0.0
    %1488 = vmatprep.subr.mxu0 0.0
    %1489 = vmatpush1.msra.mxu0 0.0
    %1490 = vmatprep.subr.mxu0 0.0
    %1491 = vmatpush1.msra.mxu0 0.0
    %1492 = vmatprep.subr.mxu0 0.0
    %1493 = vmatpush1.msra.mxu0 0.0
    %1494 = vmatprep.subr.mxu0 0.0
    %1495 = vmatpush1.msra.mxu0 0.0
    %1496 = vmatprep.subr.mxu0 0.0
    %1497 = vmatpush1.msra.mxu0 0.0
    %1498 = vmatprep.subr.mxu0 0.0
    %1499 = vmatpush1.msra.mxu0 0.0
    %1500 = vmatprep.subr.mxu0 0.0
    %1501 = vmatpush1.msra.mxu0 0.0
    %1502 = vmatprep.subr.mxu0 0.0
    %1503 = vmatpush1.msra.mxu0 0.0
    %1504 = vmatprep.subr.mxu0 0.0
    %1505 = vmatpush1.msra.mxu0 0.0
    %1506 = vmatprep.subr.mxu0 0.0
    %1507 = vmatpush1.msra.mxu0 0.0
    %1508 = vmatprep.subr.mxu0 0.0
    %1509 = vmatpush1.msra.mxu0 0.0
    %1510 = vmatprep.subr.mxu0 0.0
    %1511 = vmatpush1.msra.mxu0 0.0
    %1512 = vmatprep.subr.mxu0 0.0
    %1513 = vmatpush1.msra.mxu0 0.0
    %1514 = vmatprep.subr.mxu0 0.0
    %1515 = vmatpush1.msra.mxu0 0.0
    %1516 = vmatprep.subr.mxu0 0.0
    %1517 = vmatpush1.msra.mxu0 0.0
    %1518 = vmatprep.subr.mxu0 0.0
    %1519 = vmatpush1.msra.mxu0 0.0
    %1520 = vmatprep.subr.mxu0 0.0
    %1521 = vmatpush1.msra.mxu0 0.0
    %1522 = vmatprep.subr.mxu0 0.0
    %1523 = vmatpush1.msra.mxu0 0.0
    %1524 = vmatprep.subr.mxu0 0.0
    %1525 = vmatpush1.msra.mxu0 0.0
    %1526 = vmatprep.subr.mxu0 0.0
    %1527 = vmatpush1.msra.mxu0 0.0
    %1528 = vmatprep.subr.mxu0 0.0
    %1529 = vmatpush1.msra.mxu0 0.0
    %1530 = vmatprep.subr.mxu0 0.0
    %1531 = vmatpush1.msra.mxu0 0.0
    %1532 = vmatprep.subr.mxu0 0.0
    %1533 = vmatpush1.msra.mxu0 0.0
    %1534 = vmatprep.subr.mxu0 0.0
    %1535 = vmatpush1.msra.mxu0 0.0
    %1536 = vmatprep.mubr.f32.mxu0 0.0
    %1537 = vmatmul.mubr.f32.gmra.mrb[0].mxu0 %v1470
    %v1538 = vpop.f32.mrb[0].mxu0
    %v1539 = vadd.f32 0.0, %v1538
    %v1540 = vpop.f32.mrb[0].mxu0
    %1541 = vdwg.mxu0
    %1544 = vrot.lane.b32.xlu0 %v1159, 8
    %v1545 = vpop.permute.xlu0 %1544
    %1546 = vrot.lane.b32.xlu0 %v1235, 8
    %v1547 = vpop.permute.xlu0 %1546
    %1552 = vrot.lane.b32.xlu0 %v1311, 16
    %v1553 = vpop.permute.xlu0 %1552
    %1554 = vrot.lane.b32.xlu0 %v1387, 16
    %v1555 = vpop.permute.xlu0 %1554
    %1560 = vrot.lane.b32.xlu0 %v1463, 24
    %v1561 = vpop.permute.xlu0 %1560
    %1562 = vrot.lane.b32.xlu0 %v1539, 24
    %v1563 = vpop.permute.xlu0 %1562
    %v1566 = vsel %vm47, %v1007, %v1545
    %v1567 = vsel %vm47, %v1083, %v1547
    %vm1568 = vcmask 130048
    %v1569 = vsel %vm1568, %v1566, %v1553
    %v1570 = vsel %vm1568, %v1567, %v1555
    %vm1571 = vcmask 195584
    %v1572 = vsel %vm1571, %v1569, %v1561
    %v1573 = vsel %vm1571, %v1570, %v1563
    %v1574 = vld [vmem:[#allocation4 + $0x48] sm:$0xff]
    %v1575 = vld [vmem:[#allocation4 + $0x50] sm:$0xff]
    %v1576 = vld [vmem:[#allocation4 + $0x58] sm:$0xff]
    %v1577 = vld [vmem:[#allocation4 + $0x60] sm:$0xff]
    %v1578 = vld [vmem:[#allocation4 + $0x68] sm:$0x1]
    %v1579 = vlaneseq
    %v1580 = vshrl.u32 %v1579, 7
    %v1581 = vsub.s32 0, %v1580
    %v1582 = vrot.slane %v1578, %v1581
    %v1584 = vsel %vm142, %v1572, 0
    %v1587 = vsel %vm142, %v1573, 0
    %1589 = vmatprep.subr.mxu0 0.0
    %1590 = vmatpush1.msra.mxu0 %v1574
    %1591 = vmatprep.subr.mxu0 0.0
    %1592 = vmatpush1.msra.mxu0 %v1575
    %1593 = vmatprep.subr.mxu0 0.0
    %1594 = vmatpush1.msra.mxu0 %v1576
    %1595 = vmatprep.subr.mxu0 0.0
    %1596 = vmatpush1.msra.mxu0 %v1577
    %1597 = vmatprep.subr.mxu0 0.0
    %1598 = vmatpush1.msra.mxu0 0.0
    %1599 = vmatprep.subr.mxu0 0.0
    %1600 = vmatpush1.msra.mxu0 0.0
    %1601 = vmatprep.subr.mxu0 0.0
    %1602 = vmatpush1.msra.mxu0 0.0
    %1603 = vmatprep.subr.mxu0 0.0
    %1604 = vmatpush1.msra.mxu0 0.0
    %1605 = vmatprep.subr.mxu0 0.0
    %1606 = vmatpush1.msra.mxu0 0.0
    %1607 = vmatprep.subr.mxu0 0.0
    %1608 = vmatpush1.msra.mxu0 0.0
    %1609 = vmatprep.subr.mxu0 0.0
    %1610 = vmatpush1.msra.mxu0 0.0
    %1611 = vmatprep.subr.mxu0 0.0
    %1612 = vmatpush1.msra.mxu0 0.0
    %1613 = vmatprep.subr.mxu0 0.0
    %1614 = vmatpush1.msra.mxu0 0.0
    %1615 = vmatprep.subr.mxu0 0.0
    %1616 = vmatpush1.msra.mxu0 0.0
    %1617 = vmatprep.subr.mxu0 0.0
    %1618 = vmatpush1.msra.mxu0 0.0
    %1619 = vmatprep.subr.mxu0 0.0
    %1620 = vmatpush1.msra.mxu0 0.0
    %1621 = vmatprep.subr.mxu0 0.0
    %1622 = vmatpush1.msra.mxu0 0.0
    %1623 = vmatprep.subr.mxu0 0.0
    %1624 = vmatpush1.msra.mxu0 0.0
    %1625 = vmatprep.subr.mxu0 0.0
    %1626 = vmatpush1.msra.mxu0 0.0
    %1627 = vmatprep.subr.mxu0 0.0
    %1628 = vmatpush1.msra.mxu0 0.0
    %1629 = vmatprep.subr.mxu0 0.0
    %1630 = vmatpush1.msra.mxu0 0.0
    %1631 = vmatprep.subr.mxu0 0.0
    %1632 = vmatpush1.msra.mxu0 0.0
    %1633 = vmatprep.subr.mxu0 0.0
    %1634 = vmatpush1.msra.mxu0 0.0
    %1635 = vmatprep.subr.mxu0 0.0
    %1636 = vmatpush1.msra.mxu0 0.0
    %1637 = vmatprep.subr.mxu0 0.0
    %1638 = vmatpush1.msra.mxu0 0.0
    %1639 = vmatprep.subr.mxu0 0.0
    %1640 = vmatpush1.msra.mxu0 0.0
    %1641 = vmatprep.subr.mxu0 0.0
    %1642 = vmatpush1.msra.mxu0 0.0
    %1643 = vmatprep.subr.mxu0 0.0
    %1644 = vmatpush1.msra.mxu0 0.0
    %1645 = vmatprep.subr.mxu0 0.0
    %1646 = vmatpush1.msra.mxu0 0.0
    %1647 = vmatprep.subr.mxu0 0.0
    %1648 = vmatpush1.msra.mxu0 0.0
    %1649 = vmatprep.subr.mxu0 0.0
    %1650 = vmatpush1.msra.mxu0 0.0
    %1651 = vmatprep.subr.mxu0 0.0
    %1652 = vmatpush1.msra.mxu0 0.0
    %1653 = vmatprep.mubr.f32.mxu0 0.0
    %1654 = vmatmul.mubr.f32.gmra.mrb[0].mxu0 %v1584
    %v1655 = vpop.f32.mrb[0].mxu0
    %v1656 = vadd.f32 %v1582, %v1655
    %v1657 = vpop.f32.mrb[0].mxu0
    %1658 = vmatprep.mubr.f32.mxu0 0.0
    %1659 = vmatmul.mubr.f32.gmra.mrb[0].mxu0 %v1587
    %v1660 = vpop.f32.mrb[0].mxu0
    %v1661 = vadd.f32 %v1582, %v1660
    %v1662 = vpop.f32.mrb[0].mxu0
    %1663 = vdwg.mxu0
    %v1664 = vadd.f32 %v131, %v1656
    %v1665 = vadd.f32 %v132, %v1661
    %v1666 = vld [vmem:[#allocation4 + $0x70] sm:$0x1]
    %v1667 = vld [vmem:[#allocation4 + $0x78] sm:$0x1]
    %v1668 = vsel %vm142, %v1664, 0.0
    %1669 = vadd.xlane.f32.xlu0 %v1668
    %v1670 = vpop.xlane.xlu0 %1669
    %v1671 = vsel %vm142, %v1665, 0.0
    %1672 = vadd.xlane.f32.xlu0 %v1671
    %v1673 = vpop.xlane.xlu0 %1672
    %v1674 = vrcp.pop 32.0
    %v1675 = vmul.f32 %v1670, %v1674
    %v1676 = vmul.f32 %v1673, %v1674
    %v1677 = vsub.f32 %v1664, %v1675
    %v1678 = vsub.f32 %v1665, %v1676
    %v1679 = vmul.f32 %v1677, %v1677
    %v1680 = vmul.f32 %v1678, %v1678
    %v1681 = vsel %vm142, %v1679, 0.0
    %1682 = vadd.xlane.f32.xlu0 %v1681
    %v1683 = vpop.xlane.xlu0 %1682
    %v1684 = vsel %vm142, %v1680, 0.0
    %1685 = vadd.xlane.f32.xlu0 %v1684
    %v1686 = vpop.xlane.xlu0 %1685
    %v1687 = vmul.f32 %v1683, %v1674
    %v1688 = vmul.f32 %v1686, %v1674
    %v1689 = vadd.f32 %v1687, 1e-05
    %v1690 = vadd.f32 %v1688, 1e-05
    %v1691 = vrsqrt.pop %v1689
    %v1692 = vrsqrt.pop %v1690
    %v1693 = vmul.f32 %v1677, %v1691
    %v1694 = vmul.f32 %v1678, %v1692
    %v1695 = vlaneseq
    %v1696 = vshrl.u32 %v1695, 7
    %v1697 = vsub.s32 0, %v1696
    %v1698 = vrot.slane %v1666, %v1697
    %v1699 = vmul.f32 %v1693, %v1698
    %v1700 = vmul.f32 %v1694, %v1698
    %v1701 = vlaneseq
    %v1702 = vshrl.u32 %v1701, 7
    %v1703 = vsub.s32 0, %v1702
    %v1704 = vrot.slane %v1667, %v1703
    %v1705 = vadd.f32 %v1699, %v1704
    %v1706 = vadd.f32 %v1700, %v1704
    %v1707 = vld [vmem:[#allocation4 + $0x80] sm:$0xff]
    %v1708 = vld [vmem:[#allocation4 + $0x88] sm:$0xff]
    %v1709 = vld [vmem:[#allocation4 + $0x90] sm:$0xff]
    %v1710 = vld [vmem:[#allocation4 + $0x98] sm:$0xff]
    %v1711 = vld [vmem:[#allocation4 + $0xa0] sm:$0x1]
    %v1712 = vlaneseq
    %v1713 = vshrl.u32 %v1712, 7
    %v1714 = vsub.s32 0, %v1713
    %v1715 = vrot.slane %v1711, %v1714
    %v1717 = vsel %vm142, %v1705, 0
    %v1720 = vsel %vm142, %v1706, 0
    %1722 = vmatprep.subr.mxu0 0.0
    %1723 = vmatpush1.msra.mxu0 %v1707
    %1724 = vmatprep.subr.mxu0 0.0
    %1725 = vmatpush1.msra.mxu0 %v1708
    %1726 = vmatprep.subr.mxu0 0.0
    %1727 = vmatpush1.msra.mxu0 %v1709
    %1728 = vmatprep.subr.mxu0 0.0
    %1729 = vmatpush1.msra.mxu0 %v1710
    %1730 = vmatprep.subr.mxu0 0.0
    %1731 = vmatpush1.msra.mxu0 0.0
    %1732 = vmatprep.subr.mxu0 0.0
    %1733 = vmatpush1.msra.mxu0 0.0
    %1734 = vmatprep.subr.mxu0 0.0
    %1735 = vmatpush1.msra.mxu0 0.0
    %1736 = vmatprep.subr.mxu0 0.0
    %1737 = vmatpush1.msra.mxu0 0.0
    %1738 = vmatprep.subr.mxu0 0.0
    %1739 = vmatpush1.msra.mxu0 0.0
    %1740 = vmatprep.subr.mxu0 0.0
    %1741 = vmatpush1.msra.mxu0 0.0
    %1742 = vmatprep.subr.mxu0 0.0
    %1743 = vmatpush1.msra.mxu0 0.0
    %1744 = vmatprep.subr.mxu0 0.0
    %1745 = vmatpush1.msra.mxu0 0.0
    %1746 = vmatprep.subr.mxu0 0.0
    %1747 = vmatpush1.msra.mxu0 0.0
    %1748 = vmatprep.subr.mxu0 0.0
    %1749 = vmatpush1.msra.mxu0 0.0
    %1750 = vmatprep.subr.mxu0 0.0
    %1751 = vmatpush1.msra.mxu0 0.0
    %1752 = vmatprep.subr.mxu0 0.0
    %1753 = vmatpush1.msra.mxu0 0.0
    %1754 = vmatprep.subr.mxu0 0.0
    %1755 = vmatpush1.msra.mxu0 0.0
    %1756 = vmatprep.subr.mxu0 0.0
    %1757 = vmatpush1.msra.mxu0 0.0
    %1758 = vmatprep.subr.mxu0 0.0
    %1759 = vmatpush1.msra.mxu0 0.0
    %1760 = vmatprep.subr.mxu0 0.0
    %1761 = vmatpush1.msra.mxu0 0.0
    %1762 = vmatprep.subr.mxu0 0.0
    %1763 = vmatpush1.msra.mxu0 0.0
    %1764 = vmatprep.subr.mxu0 0.0
    %1765 = vmatpush1.msra.mxu0 0.0
    %1766 = vmatprep.subr.mxu0 0.0
    %1767 = vmatpush1.msra.mxu0 0.0
    %1768 = vmatprep.subr.mxu0 0.0
    %1769 = vmatpush1.msra.mxu0 0.0
    %1770 = vmatprep.subr.mxu0 0.0
    %1771 = vmatpush1.msra.mxu0 0.0
    %1772 = vmatprep.subr.mxu0 0.0
    %1773 = vmatpush1.msra.mxu0 0.0
    %1774 = vmatprep.subr.mxu0 0.0
    %1775 = vmatpush1.msra.mxu0 0.0
    %1776 = vmatprep.subr.mxu0 0.0
    %1777 = vmatpush1.msra.mxu0 0.0
    %1778 = vmatprep.subr.mxu0 0.0
    %1779 = vmatpush1.msra.mxu0 0.0
    %1780 = vmatprep.subr.mxu0 0.0
    %1781 = vmatpush1.msra.mxu0 0.0
    %1782 = vmatprep.subr.mxu0 0.0
    %1783 = vmatpush1.msra.mxu0 0.0
    %1784 = vmatprep.subr.mxu0 0.0
    %1785 = vmatpush1.msra.mxu0 0.0
    %1786 = vmatprep.mubr.f32.mxu0 0.0
    %1787 = vmatmul.mubr.f32.gmra.mrb[0].mxu0 %v1717
    %v1788 = vpop.f32.mrb[0].mxu0
    %v1789 = vadd.f32 %v1715, %v1788
    %v1790 = vpop.f32.mrb[0].mxu0
    %1791 = vmatprep.mubr.f32.mxu0 0.0
    %1792 = vmatmul.mubr.f32.gmra.mrb[0].mxu0 %v1720
    %v1793 = vpop.f32.mrb[0].mxu0
    %v1794 = vadd.f32 %v1715, %v1793
    %v1795 = vpop.f32.mrb[0].mxu0
    %1796 = vdwg.mxu0
    %v1797 = vmax.f32 %v1789, 0.0
    %v1798 = vmax.f32 %v1794, 0.0
    %v1799 = vld [vmem:[#allocation4 + $0xa8] sm:$0xff]
    %v1800 = vld [vmem:[#allocation4 + $0xb0] sm:$0xff]
    %v1801 = vld [vmem:[#allocation4 + $0xb8] sm:$0xff]
    %v1802 = vld [vmem:[#allocation4 + $0xc0] sm:$0xff]
    %v1803 = vld [vmem:[#allocation4 + $0xc8] sm:$0xff]
    %v1804 = vld [vmem:[#allocation4 + $0xd0] sm:$0xff]
    %v1805 = vld [vmem:[#allocation4 + $0xd8] sm:$0xff]
    %v1806 = vld [vmem:[#allocation4 + $0xe0] sm:$0xff]
    %v1807 = vld [vmem:[#allocation4 + $0xe8] sm:$0xff]
    %v1808 = vld [vmem:[#allocation4 + $0xf0] sm:$0xff]
    %v1809 = vld [vmem:[#allocation4 + $0xf8] sm:$0xff]
    %v1810 = vld [vmem:[#allocation4 + $0x100] sm:$0xff]
    %v1811 = vld [vmem:[#allocation4 + $0x108] sm:$0xff]
    %v1812 = vld [vmem:[#allocation4 + $0x110] sm:$0xff]
    %v1813 = vld [vmem:[#allocation4 + $0x118] sm:$0xff]
    %v1814 = vld [vmem:[#allocation4 + $0x120] sm:$0xff]
    %v1815 = vld [vmem:[#allocation4 + $0x128] sm:$0x1]
    %v1816 = vlaneseq
    %v1817 = vshrl.u32 %v1816, 7
    %v1818 = vsub.s32 0, %v1817
    %v1819 = vrot.slane %v1815, %v1818
    %1820 = vmatprep.subr.mxu0 0.0
    %1821 = vmatpush1.msra.mxu0 %v1799
    %1822 = vmatprep.subr.mxu0 0.0
    %1823 = vmatpush1.msra.mxu0 %v1800
    %1824 = vmatprep.subr.mxu0 0.0
    %1825 = vmatpush1.msra.mxu0 %v1801
    %1826 = vmatprep.subr.mxu0 0.0
    %1827 = vmatpush1.msra.mxu0 %v1802
    %1828 = vmatprep.subr.mxu0 0.0
    %1829 = vmatpush1.msra.mxu0 %v1803
    %1830 = vmatprep.subr.mxu0 0.0
    %1831 = vmatpush1.msra.mxu0 %v1804
    %1832 = vmatprep.subr.mxu0 0.0
    %1833 = vmatpush1.msra.mxu0 %v1805
    %1834 = vmatprep.subr.mxu0 0.0
    %1835 = vmatpush1.msra.mxu0 %v1806
    %1836 = vmatprep.subr.mxu0 0.0
    %1837 = vmatpush1.msra.mxu0 %v1807
    %1838 = vmatprep.subr.mxu0 0.0
    %1839 = vmatpush1.msra.mxu0 %v1808
    %1840 = vmatprep.subr.mxu0 0.0
    %1841 = vmatpush1.msra.mxu0 %v1809
    %1842 = vmatprep.subr.mxu0 0.0
    %1843 = vmatpush1.msra.mxu0 %v1810
    %1844 = vmatprep.subr.mxu0 0.0
    %1845 = vmatpush1.msra.mxu0 %v1811
    %1846 = vmatprep.subr.mxu0 0.0
    %1847 = vmatpush1.msra.mxu0 %v1812
    %1848 = vmatprep.subr.mxu0 0.0
    %1849 = vmatpush1.msra.mxu0 %v1813
    %1850 = vmatprep.subr.mxu0 0.0
    %1851 = vmatpush1.msra.mxu0 %v1814
    %1852 = vmatprep.subr.mxu0 0.0
    %1853 = vmatpush1.msra.mxu0 0.0
    %1854 = vmatprep.subr.mxu0 0.0
    %1855 = vmatpush1.msra.mxu0 0.0
    %1856 = vmatprep.subr.mxu0 0.0
    %1857 = vmatpush1.msra.mxu0 0.0
    %1858 = vmatprep.subr.mxu0 0.0
    %1859 = vmatpush1.msra.mxu0 0.0
    %1860 = vmatprep.subr.mxu0 0.0
    %1861 = vmatpush1.msra.mxu0 0.0
    %1862 = vmatprep.subr.mxu0 0.0
    %1863 = vmatpush1.msra.mxu0 0.0
    %1864 = vmatprep.subr.mxu0 0.0
    %1865 = vmatpush1.msra.mxu0 0.0
    %1866 = vmatprep.subr.mxu0 0.0
    %1867 = vmatpush1.msra.mxu0 0.0
    %1868 = vmatprep.subr.mxu0 0.0
    %1869 = vmatpush1.msra.mxu0 0.0
    %1870 = vmatprep.subr.mxu0 0.0
    %1871 = vmatpush1.msra.mxu0 0.0
    %1872 = vmatprep.subr.mxu0 0.0
    %1873 = vmatpush1.msra.mxu0 0.0
    %1874 = vmatprep.subr.mxu0 0.0
    %1875 = vmatpush1.msra.mxu0 0.0
    %1876 = vmatprep.subr.mxu0 0.0
    %1877 = vmatpush1.msra.mxu0 0.0
    %1878 = vmatprep.subr.mxu0 0.0
    %1879 = vmatpush1.msra.mxu0 0.0
    %1880 = vmatprep.subr.mxu0 0.0
    %1881 = vmatpush1.msra.mxu0 0.0
    %1882 = vmatprep.subr.mxu0 0.0
    %1883 = vmatpush1.msra.mxu0 0.0
    %1884 = vmatprep.mubr.f32.mxu0 0.0
    %1885 = vmatmul.mubr.f32.gmra.mrb[0].mxu0 %v1797
    %v1886 = vpop.f32.mrb[0].mxu0
    %v1887 = vadd.f32 %v1819, %v1886
    %v1888 = vpop.f32.mrb[0].mxu0
    %1889 = vmatprep.mubr.f32.mxu0 0.0
    %1890 = vmatmul.mubr.f32.gmra.mrb[0].mxu0 %v1798
    %v1891 = vpop.f32.mrb[0].mxu0
    %v1892 = vadd.f32 %v1819, %v1891
    %v1893 = vpop.f32.mrb[0].mxu0
    %1894 = vdwg.mxu0
    %v1895 = vadd.f32 %v1705, %v1887
    %v1896 = vadd.f32 %v1706, %v1892
    %v1897 = vld [vmem:[#allocation4 + $0x130] sm:$0x1]
    %v1898 = vld [vmem:[#allocation4 + $0x138] sm:$0x1]
    %v1899 = vsel %vm142, %v1895, 0.0
    %1900 = vadd.xlane.f32.xlu0 %v1899
    %v1901 = vpop.xlane.xlu0 %1900
    %v1902 = vsel %vm142, %v1896, 0.0
    %1903 = vadd.xlane.f32.xlu0 %v1902
    %v1904 = vpop.xlane.xlu0 %1903
    %v1905 = vmul.f32 %v1901, %v1674
    %v1906 = vmul.f32 %v1904, %v1674
    %v1907 = vsub.f32 %v1895, %v1905
    %v1908 = vsub.f32 %v1896, %v1906
    %v1909 = vmul.f32 %v1907, %v1907
    %v1910 = vmul.f32 %v1908, %v1908
    %v1911 = vsel %vm142, %v1909, 0.0
    %1912 = vadd.xlane.f32.xlu0 %v1911
    %v1913 = vpop.xlane.xlu0 %1912
    %v1914 = vsel %vm142, %v1910, 0.0
    %1915 = vadd.xlane.f32.xlu0 %v1914
    %v1916 = vpop.xlane.xlu0 %1915
    %v1917 = vmul.f32 %v1913, %v1674
    %v1918 = vmul.f32 %v1916, %v1674
    %v1919 = vadd.f32 %v1917, 1e-05
    %v1920 = vadd.f32 %v1918, 1e-05
    %v1921 = vrsqrt.pop %v1919
    %v1922 = vrsqrt.pop %v1920
    %v1923 = vmul.f32 %v1907, %v1921
    %v1924 = vmul.f32 %v1908, %v1922
    %v1925 = vlaneseq
    %v1926 = vshrl.u32 %v1925, 7
    %v1927 = vsub.s32 0, %v1926
    %v1928 = vrot.slane %v1897, %v1927
    %v1929 = vmul.f32 %v1923, %v1928
    %v1930 = vmul.f32 %v1924, %v1928
    %v1931 = vlaneseq
    %v1932 = vshrl.u32 %v1931, 7
    %v1933 = vsub.s32 0, %v1932
    %v1934 = vrot.slane %v1898, %v1933
    %v1935 = vadd.f32 %v1929, %v1934
    %v1936 = vadd.f32 %v1930, %v1934
    %v1937 = vld [vmem:[#allocation4 + $0x140] sm:$0xff]
    %v1938 = vld [vmem:[#allocation4 + $0x148] sm:$0xff]
    %v1939 = vld [vmem:[#allocation4 + $0x150] sm:$0xff]
    %v1940 = vld [vmem:[#allocation4 + $0x158] sm:$0xff]
    %v1941 = vld [vmem:[#allocation4 + $0x160] sm:$0x1]
    %v1942 = vlaneseq
    %v1943 = vshrl.u32 %v1942, 7
    %v1944 = vsub.s32 0, %v1943
    %v1945 = vrot.slane %v1941, %v1944
    %v1947 = vsel %vm142, %v1935, 0
    %v1950 = vsel %vm142, %v1936, 0
    %1952 = vmatprep.subr.mxu0 0.0
    %1953 = vmatpush1.msra.mxu0 %v1937
    %1954 = vmatprep.subr.mxu0 0.0
    %1955 = vmatpush1.msra.mxu0 %v1938
    %1956 = vmatprep.subr.mxu0 0.0
    %1957 = vmatpush1.msra.mxu0 %v1939
    %1958 = vmatprep.subr.mxu0 0.0
    %1959 = vmatpush1.msra.mxu0 %v1940
    %1960 = vmatprep.subr.mxu0 0.0
    %1961 = vmatpush1.msra.mxu0 0.0
    %1962 = vmatprep.subr.mxu0 0.0
    %1963 = vmatpush1.msra.mxu0 0.0
    %1964 = vmatprep.subr.mxu0 0.0
    %1965 = vmatpush1.msra.mxu0 0.0
    %1966 = vmatprep.subr.mxu0 0.0
    %1967 = vmatpush1.msra.mxu0 0.0
    %1968 = vmatprep.subr.mxu0 0.0
    %1969 = vmatpush1.msra.mxu0 0.0
    %1970 = vmatprep.subr.mxu0 0.0
    %1971 = vmatpush1.msra.mxu0 0.0
    %1972 = vmatprep.subr.mxu0 0.0
    %1973 = vmatpush1.msra.mxu0 0.0
    %1974 = vmatprep.subr.mxu0 0.0
    %1975 = vmatpush1.msra.mxu0 0.0
    %1976 = vmatprep.subr.mxu0 0.0
    %1977 = vmatpush1.msra.mxu0 0.0
    %1978 = vmatprep.subr.mxu0 0.0
    %1979 = vmatpush1.msra.mxu0 0.0
    %1980 = vmatprep.subr.mxu0 0.0
    %1981 = vmatpush1.msra.mxu0 0.0
    %1982 = vmatprep.subr.mxu0 0.0
    %1983 = vmatpush1.msra.mxu0 0.0
    %1984 = vmatprep.subr.mxu0 0.0
    %1985 = vmatpush1.msra.mxu0 0.0
    %1986 = vmatprep.subr.mxu0 0.0
    %1987 = vmatpush1.msra.mxu0 0.0
    %1988 = vmatprep.subr.mxu0 0.0
    %1989 = vmatpush1.msra.mxu0 0.0
    %1990 = vmatprep.subr.mxu0 0.0
    %1991 = vmatpush1.msra.mxu0 0.0
    %1992 = vmatprep.subr.mxu0 0.0
    %1993 = vmatpush1.msra.mxu0 0.0
    %1994 = vmatprep.subr.mxu0 0.0
    %1995 = vmatpush1.msra.mxu0 0.0
    %1996 = vmatprep.subr.mxu0 0.0
    %1997 = vmatpush1.msra.mxu0 0.0
    %1998 = vmatprep.subr.mxu0 0.0
    %1999 = vmatpush1.msra.mxu0 0.0
    %2000 = vmatprep.subr.mxu0 0.0
    %2001 = vmatpush1.msra.mxu0 0.0
    %2002 = vmatprep.subr.mxu0 0.0
    %2003 = vmatpush1.msra.mxu0 0.0
    %2004 = vmatprep.subr.mxu0 0.0
    %2005 = vmatpush1.msra.mxu0 0.0
    %2006 = vmatprep.subr.mxu0 0.0
    %2007 = vmatpush1.msra.mxu0 0.0
    %2008 = vmatprep.subr.mxu0 0.0
    %2009 = vmatpush1.msra.mxu0 0.0
    %2010 = vmatprep.subr.mxu0 0.0
    %2011 = vmatpush1.msra.mxu0 0.0
    %2012 = vmatprep.subr.mxu0 0.0
    %2013 = vmatpush1.msra.mxu0 0.0
    %2014 = vmatprep.subr.mxu0 0.0
    %2015 = vmatpush1.msra.mxu0 0.0
    %2016 = vmatprep.mubr.f32.mxu0 0.0
    %2017 = vmatmul.mubr.f32.gmra.mrb[0].mxu0 %v1947
    %v2018 = vpop.f32.mrb[0].mxu0
    %v2019 = vadd.f32 %v1945, %v2018
    %v2020 = vpop.f32.mrb[0].mxu0
    %2021 = vmatprep.mubr.f32.mxu0 0.0
    %2022 = vmatmul.mubr.f32.gmra.mrb[0].mxu0 %v1950
    %v2023 = vpop.f32.mrb[0].mxu0
    %v2024 = vadd.f32 %v1945, %v2023
    %v2025 = vpop.f32.mrb[0].mxu0
    %2026 = vdwg.mxu0
    %2029 = vrot.lane.b32.xlu0 %v2019, 120
    %v2030 = vpop.permute.xlu0 %2029
    %2031 = vrot.lane.b32.xlu0 %v2024, 120
    %v2032 = vpop.permute.xlu0 %2031
    %2033 = vrot.lane.b32.xlu0 %v2019, 112
    %v2034 = vpop.permute.xlu0 %2033
    %2035 = vrot.lane.b32.xlu0 %v2024, 112
    %v2036 = vpop.permute.xlu0 %2035
    %2037 = vrot.lane.b32.xlu0 %v2019, 104
    %v2038 = vpop.permute.xlu0 %2037
    %2039 = vrot.lane.b32.xlu0 %v2024, 104
    %v2040 = vpop.permute.xlu0 %2039
    %2041 = vrot.lane.b32.xlu0 %v2019, 96
    %v2042 = vpop.permute.xlu0 %2041
    %v2043 = vsel %vm47, %v2019, 0
    %v2045 = vsel %vm47, %v2042, 0
    %2047 = vmatprep.subr.mxu0 0.0
    %2048 = vmatpush1.xpose.msra.mxu0 %v2045
    %2049 = vmatprep.subr.mxu0 0.0
    %2050 = vmatpush1.xpose.msra.mxu0 0.0
    %2051 = vmatprep.subr.mxu0 0.0
    %2052 = vmatpush1.xpose.msra.mxu0 0.0
    %2053 = vmatprep.subr.mxu0 0.0
    %2054 = vmatpush1.xpose.msra.mxu0 0.0
    %2055 = vmatprep.subr.mxu0 0.0
    %2056 = vmatpush1.xpose.msra.mxu0 0.0
    %2057 = vmatprep.subr.mxu0 0.0
    %2058 = vmatpush1.xpose.msra.mxu0 0.0
    %2059 = vmatprep.subr.mxu0 0.0
    %2060 = vmatpush1.xpose.msra.mxu0 0.0
    %2061 = vmatprep.subr.mxu0 0.0
    %2062 = vmatpush1.xpose.msra.mxu0 0.0
    %2063 = vmatprep.subr.mxu0 0.0
    %2064 = vmatpush1.xpose.msra.mxu0 0.0
    %2065 = vmatprep.subr.mxu0 0.0
    %2066 = vmatpush1.xpose.msra.mxu0 0.0
    %2067 = vmatprep.subr.mxu0 0.0
    %2068 = vmatpush1.xpose.msra.mxu0 0.0
    %2069 = vmatprep.subr.mxu0 0.0
    %2070 = vmatpush1.xpose.msra.mxu0 0.0
    %2071 = vmatprep.subr.mxu0 0.0
    %2072 = vmatpush1.xpose.msra.mxu0 0.0
    %2073 = vmatprep.subr.mxu0 0.0
    %2074 = vmatpush1.xpose.msra.mxu0 0.0
    %2075 = vmatprep.subr.mxu0 0.0
    %2076 = vmatpush1.xpose.msra.mxu0 0.0
    %2077 = vmatprep.subr.mxu0 0.0
    %2078 = vmatpush1.xpose.msra.mxu0 0.0
    %2079 = vmatprep.subr.mxu0 0.0
    %2080 = vmatpush1.xpose.msra.mxu0 0.0
    %2081 = vmatprep.subr.mxu0 0.0
    %2082 = vmatpush1.xpose.msra.mxu0 0.0
    %2083 = vmatprep.subr.mxu0 0.0
    %2084 = vmatpush1.xpose.msra.mxu0 0.0
    %2085 = vmatprep.subr.mxu0 0.0
    %2086 = vmatpush1.xpose.msra.mxu0 0.0
    %2087 = vmatprep.subr.mxu0 0.0
    %2088 = vmatpush1.xpose.msra.mxu0 0.0
    %2089 = vmatprep.subr.mxu0 0.0
    %2090 = vmatpush1.xpose.msra.mxu0 0.0
    %2091 = vmatprep.subr.mxu0 0.0
    %2092 = vmatpush1.xpose.msra.mxu0 0.0
    %2093 = vmatprep.subr.mxu0 0.0
    %2094 = vmatpush1.xpose.msra.mxu0 0.0
    %2095 = vmatprep.subr.mxu0 0.0
    %2096 = vmatpush1.xpose.msra.mxu0 0.0
    %2097 = vmatprep.subr.mxu0 0.0
    %2098 = vmatpush1.xpose.msra.mxu0 0.0
    %2099 = vmatprep.subr.mxu0 0.0
    %2100 = vmatpush1.xpose.msra.mxu0 0.0
    %2101 = vmatprep.subr.mxu0 0.0
    %2102 = vmatpush1.xpose.msra.mxu0 0.0
    %2103 = vmatprep.subr.mxu0 0.0
    %2104 = vmatpush1.xpose.msra.mxu0 0.0
    %2105 = vmatprep.subr.mxu0 0.0
    %2106 = vmatpush1.xpose.msra.mxu0 0.0
    %2107 = vmatprep.subr.mxu0 0.0
    %2108 = vmatpush1.xpose.msra.mxu0 0.0
    %2109 = vmatprep.subr.mxu0 0.0
    %2110 = vmatpush1.xpose.msra.mxu0 0.0
    %2111 = vmatprep.mubr.f32.mxu0 0.0
    %2112 = vmatmul.mubr.f32.gmra.mrb[0].mxu0 %v2043
    %v2113 = vpop.f32.mrb[0].mxu0
    %v2114 = vadd.f32 0.0, %v2113
    %v2115 = vpop.f32.mrb[0].mxu0
    %2116 = vdwg.mxu0
    %2117 = vrot.lane.b32.xlu0 %v2024, 96
    %v2118 = vpop.permute.xlu0 %2117
    %v2119 = vsel %vm47, %v2024, 0
    %v2121 = vsel %vm47, %v2118, 0
    %2123 = vmatprep.subr.mxu0 0.0
    %2124 = vmatpush1.xpose.msra.mxu0 %v2121
    %2125 = vmatprep.subr.mxu0 0.0
    %2126 = vmatpush1.xpose.msra.mxu0 0.0
    %2127 = vmatprep.subr.mxu0 0.0
    %2128 = vmatpush1.xpose.msra.mxu0 0.0
    %2129 = vmatprep.subr.mxu0 0.0
    %2130 = vmatpush1.xpose.msra.mxu0 0.0
    %2131 = vmatprep.subr.mxu0 0.0
    %2132 = vmatpush1.xpose.msra.mxu0 0.0
    %2133 = vmatprep.subr.mxu0 0.0
    %2134 = vmatpush1.xpose.msra.mxu0 0.0
    %2135 = vmatprep.subr.mxu0 0.0
    %2136 = vmatpush1.xpose.msra.mxu0 0.0
    %2137 = vmatprep.subr.mxu0 0.0
    %2138 = vmatpush1.xpose.msra.mxu0 0.0
    %2139 = vmatprep.subr.mxu0 0.0
    %2140 = vmatpush1.xpose.msra.mxu0 0.0
    %2141 = vmatprep.subr.mxu0 0.0
    %2142 = vmatpush1.xpose.msra.mxu0 0.0
    %2143 = vmatprep.subr.mxu0 0.0
    %2144 = vmatpush1.xpose.msra.mxu0 0.0
    %2145 = vmatprep.subr.mxu0 0.0
    %2146 = vmatpush1.xpose.msra.mxu0 0.0
    %2147 = vmatprep.subr.mxu0 0.0
    %2148 = vmatpush1.xpose.msra.mxu0 0.0
    %2149 = vmatprep.subr.mxu0 0.0
    %2150 = vmatpush1.xpose.msra.mxu0 0.0
    %2151 = vmatprep.subr.mxu0 0.0
    %2152 = vmatpush1.xpose.msra.mxu0 0.0
    %2153 = vmatprep.subr.mxu0 0.0
    %2154 = vmatpush1.xpose.msra.mxu0 0.0
    %2155 = vmatprep.subr.mxu0 0.0
    %2156 = vmatpush1.xpose.msra.mxu0 0.0
    %2157 = vmatprep.subr.mxu0 0.0
    %2158 = vmatpush1.xpose.msra.mxu0 0.0
    %2159 = vmatprep.subr.mxu0 0.0
    %2160 = vmatpush1.xpose.msra.mxu0 0.0
    %2161 = vmatprep.subr.mxu0 0.0
    %2162 = vmatpush1.xpose.msra.mxu0 0.0
    %2163 = vmatprep.subr.mxu0 0.0
    %2164 = vmatpush1.xpose.msra.mxu0 0.0
    %2165 = vmatprep.subr.mxu0 0.0
    %2166 = vmatpush1.xpose.msra.mxu0 0.0
    %2167 = vmatprep.subr.mxu0 0.0
    %2168 = vmatpush1.xpose.msra.mxu0 0.0
    %2169 = vmatprep.subr.mxu0 0.0
    %2170 = vmatpush1.xpose.msra.mxu0 0.0
    %2171 = vmatprep.subr.mxu0 0.0
    %2172 = vmatpush1.xpose.msra.mxu0 0.0
    %2173 = vmatprep.subr.mxu0 0.0
    %2174 = vmatpush1.xpose.msra.mxu0 0.0
    %2175 = vmatprep.subr.mxu0 0.0
    %2176 = vmatpush1.xpose.msra.mxu0 0.0
    %2177 = vmatprep.subr.mxu0 0.0
    %2178 = vmatpush1.xpose.msra.mxu0 0.0
    %2179 = vmatprep.subr.mxu0 0.0
    %2180 = vmatpush1.xpose.msra.mxu0 0.0
    %2181 = vmatprep.subr.mxu0 0.0
    %2182 = vmatpush1.xpose.msra.mxu0 0.0
    %2183 = vmatprep.subr.mxu0 0.0
    %2184 = vmatpush1.xpose.msra.mxu0 0.0
    %2185 = vmatprep.subr.mxu0 0.0
    %2186 = vmatpush1.xpose.msra.mxu0 0.0
    %2187 = vmatprep.mubr.f32.mxu0 0.0
    %2188 = vmatmul.mubr.f32.gmra.mrb[0].mxu0 %v2119
    %v2189 = vpop.f32.mrb[0].mxu0
    %v2190 = vadd.f32 0.0, %v2189
    %v2191 = vpop.f32.mrb[0].mxu0
    %2192 = vdwg.mxu0
    %2193 = vrot.lane.b32.xlu0 %v2030, 96
    %v2194 = vpop.permute.xlu0 %2193
    %v2195 = vsel %vm47, %v2030, 0
    %v2197 = vsel %vm47, %v2194, 0
    %2199 = vmatprep.subr.mxu0 0.0
    %2200 = vmatpush1.xpose.msra.mxu0 %v2197
    %2201 = vmatprep.subr.mxu0 0.0
    %2202 = vmatpush1.xpose.msra.mxu0 0.0
    %2203 = vmatprep.subr.mxu0 0.0
    %2204 = vmatpush1.xpose.msra.mxu0 0.0
    %2205 = vmatprep.subr.mxu0 0.0
    %2206 = vmatpush1.xpose.msra.mxu0 0.0
    %2207 = vmatprep.subr.mxu0 0.0
    %2208 = vmatpush1.xpose.msra.mxu0 0.0
    %2209 = vmatprep.subr.mxu0 0.0
    %2210 = vmatpush1.xpose.msra.mxu0 0.0
    %2211 = vmatprep.subr.mxu0 0.0
    %2212 = vmatpush1.xpose.msra.mxu0 0.0
    %2213 = vmatprep.subr.mxu0 0.0
    %2214 = vmatpush1.xpose.msra.mxu0 0.0
    %2215 = vmatprep.subr.mxu0 0.0
    %2216 = vmatpush1.xpose.msra.mxu0 0.0
    %2217 = vmatprep.subr.mxu0 0.0
    %2218 = vmatpush1.xpose.msra.mxu0 0.0
    %2219 = vmatprep.subr.mxu0 0.0
    %2220 = vmatpush1.xpose.msra.mxu0 0.0
    %2221 = vmatprep.subr.mxu0 0.0
    %2222 = vmatpush1.xpose.msra.mxu0 0.0
    %2223 = vmatprep.subr.mxu0 0.0
    %2224 = vmatpush1.xpose.msra.mxu0 0.0
    %2225 = vmatprep.subr.mxu0 0.0
    %2226 = vmatpush1.xpose.msra.mxu0 0.0
    %2227 = vmatprep.subr.mxu0 0.0
    %2228 = vmatpush1.xpose.msra.mxu0 0.0
    %2229 = vmatprep.subr.mxu0 0.0
    %2230 = vmatpush1.xpose.msra.mxu0 0.0
    %2231 = vmatprep.subr.mxu0 0.0
    %2232 = vmatpush1.xpose.msra.mxu0 0.0
    %2233 = vmatprep.subr.mxu0 0.0
    %2234 = vmatpush1.xpose.msra.mxu0 0.0
    %2235 = vmatprep.subr.mxu0 0.0
    %2236 = vmatpush1.xpose.msra.mxu0 0.0
    %2237 = vmatprep.subr.mxu0 0.0
    %2238 = vmatpush1.xpose.msra.mxu0 0.0
    %2239 = vmatprep.subr.mxu0 0.0
    %2240 = vmatpush1.xpose.msra.mxu0 0.0
    %2241 = vmatprep.subr.mxu0 0.0
    %2242 = vmatpush1.xpose.msra.mxu0 0.0
    %2243 = vmatprep.subr.mxu0 0.0
    %2244 = vmatpush1.xpose.msra.mxu0 0.0
    %2245 = vmatprep.subr.mxu0 0.0
    %2246 = vmatpush1.xpose.msra.mxu0 0.0
    %2247 = vmatprep.subr.mxu0 0.0
    %2248 = vmatpush1.xpose.msra.mxu0 0.0
    %2249 = vmatprep.subr.mxu0 0.0
    %2250 = vmatpush1.xpose.msra.mxu0 0.0
    %2251 = vmatprep.subr.mxu0 0.0
    %2252 = vmatpush1.xpose.msra.mxu0 0.0
    %2253 = vmatprep.subr.mxu0 0.0
    %2254 = vmatpush1.xpose.msra.mxu0 0.0
    %2255 = vmatprep.subr.mxu0 0.0
    %2256 = vmatpush1.xpose.msra.mxu0 0.0
    %2257 = vmatprep.subr.mxu0 0.0
    %2258 = vmatpush1.xpose.msra.mxu0 0.0
    %2259 = vmatprep.subr.mxu0 0.0
    %2260 = vmatpush1.xpose.msra.mxu0 0.0
    %2261 = vmatprep.subr.mxu0 0.0
    %2262 = vmatpush1.xpose.msra.mxu0 0.0
    %2263 = vmatprep.mubr.f32.mxu0 0.0
    %2264 = vmatmul.mubr.f32.gmra.mrb[0].mxu0 %v2195
    %v2265 = vpop.f32.mrb[0].mxu0
    %v2266 = vadd.f32 0.0, %v2265
    %v2267 = vpop.f32.mrb[0].mxu0
    %2268 = vdwg.mxu0
    %2269 = vrot.lane.b32.xlu0 %v2032, 96
    %v2270 = vpop.permute.xlu0 %2269
    %v2271 = vsel %vm47, %v2032, 0
    %v2273 = vsel %vm47, %v2270, 0
    %2275 = vmatprep.subr.mxu0 0.0
    %2276 = vmatpush1.xpose.msra.mxu0 %v2273
    %2277 = vmatprep.subr.mxu0 0.0
    %2278 = vmatpush1.xpose.msra.mxu0 0.0
    %2279 = vmatprep.subr.mxu0 0.0
    %2280 = vmatpush1.xpose.msra.mxu0 0.0
    %2281 = vmatprep.subr.mxu0 0.0
    %2282 = vmatpush1.xpose.msra.mxu0 0.0
    %2283 = vmatprep.subr.mxu0 0.0
    %2284 = vmatpush1.xpose.msra.mxu0 0.0
    %2285 = vmatprep.subr.mxu0 0.0
    %2286 = vmatpush1.xpose.msra.mxu0 0.0
    %2287 = vmatprep.subr.mxu0 0.0
    %2288 = vmatpush1.xpose.msra.mxu0 0.0
    %2289 = vmatprep.subr.mxu0 0.0
    %2290 = vmatpush1.xpose.msra.mxu0 0.0
    %2291 = vmatprep.subr.mxu0 0.0
    %2292 = vmatpush1.xpose.msra.mxu0 0.0
    %2293 = vmatprep.subr.mxu0 0.0
    %2294 = vmatpush1.xpose.msra.mxu0 0.0
    %2295 = vmatprep.subr.mxu0 0.0
    %2296 = vmatpush1.xpose.msra.mxu0 0.0
    %2297 = vmatprep.subr.mxu0 0.0
    %2298 = vmatpush1.xpose.msra.mxu0 0.0
    %2299 = vmatprep.subr.mxu0 0.0
    %2300 = vmatpush1.xpose.msra.mxu0 0.0
    %2301 = vmatprep.subr.mxu0 0.0
    %2302 = vmatpush1.xpose.msra.mxu0 0.0
    %2303 = vmatprep.subr.mxu0 0.0
    %2304 = vmatpush1.xpose.msra.mxu0 0.0
    %2305 = vmatprep.subr.mxu0 0.0
    %2306 = vmatpush1.xpose.msra.mxu0 0.0
    %2307 = vmatprep.subr.mxu0 0.0
    %2308 = vmatpush1.xpose.msra.mxu0 0.0
    %2309 = vmatprep.subr.mxu0 0.0
    %2310 = vmatpush1.xpose.msra.mxu0 0.0
    %2311 = vmatprep.subr.mxu0 0.0
    %2312 = vmatpush1.xpose.msra.mxu0 0.0
    %2313 = vmatprep.subr.mxu0 0.0
    %2314 = vmatpush1.xpose.msra.mxu0 0.0
    %2315 = vmatprep.subr.mxu0 0.0
    %2316 = vmatpush1.xpose.msra.mxu0 0.0
    %2317 = vmatprep.subr.mxu0 0.0
    %2318 = vmatpush1.xpose.msra.mxu0 0.0
    %2319 = vmatprep.subr.mxu0 0.0
    %2320 = vmatpush1.xpose.msra.mxu0 0.0
    %2321 = vmatprep.subr.mxu0 0.0
    %2322 = vmatpush1.xpose.msra.mxu0 0.0
    %2323 = vmatprep.subr.mxu0 0.0
    %2324 = vmatpush1.xpose.msra.mxu0 0.0
    %2325 = vmatprep.subr.mxu0 0.0
    %2326 = vmatpush1.xpose.msra.mxu0 0.0
    %2327 = vmatprep.subr.mxu0 0.0
    %2328 = vmatpush1.xpose.msra.mxu0 0.0
    %2329 = vmatprep.subr.mxu0 0.0
    %2330 = vmatpush1.xpose.msra.mxu0 0.0
    %2331 = vmatprep.subr.mxu0 0.0
    %2332 = vmatpush1.xpose.msra.mxu0 0.0
    %2333 = vmatprep.subr.mxu0 0.0
    %2334 = vmatpush1.xpose.msra.mxu0 0.0
    %2335 = vmatprep.subr.mxu0 0.0
    %2336 = vmatpush1.xpose.msra.mxu0 0.0
    %2337 = vmatprep.subr.mxu0 0.0
    %2338 = vmatpush1.xpose.msra.mxu0 0.0
    %2339 = vmatprep.mubr.f32.mxu0 0.0
    %2340 = vmatmul.mubr.f32.gmra.mrb[0].mxu0 %v2271
    %v2341 = vpop.f32.mrb[0].mxu0
    %v2342 = vadd.f32 0.0, %v2341
    %v2343 = vpop.f32.mrb[0].mxu0
    %2344 = vdwg.mxu0
    %2345 = vrot.lane.b32.xlu0 %v2034, 96
    %v2346 = vpop.permute.xlu0 %2345
    %v2347 = vsel %vm47, %v2034, 0
    %v2349 = vsel %vm47, %v2346, 0
    %2351 = vmatprep.subr.mxu0 0.0
    %2352 = vmatpush1.xpose.msra.mxu0 %v2349
    %2353 = vmatprep.subr.mxu0 0.0
    %2354 = vmatpush1.xpose.msra.mxu0 0.0
    %2355 = vmatprep.subr.mxu0 0.0
    %2356 = vmatpush1.xpose.msra.mxu0 0.0
    %2357 = vmatprep.subr.mxu0 0.0
    %2358 = vmatpush1.xpose.msra.mxu0 0.0
    %2359 = vmatprep.subr.mxu0 0.0
    %2360 = vmatpush1.xpose.msra.mxu0 0.0
    %2361 = vmatprep.subr.mxu0 0.0
    %2362 = vmatpush1.xpose.msra.mxu0 0.0
    %2363 = vmatprep.subr.mxu0 0.0
    %2364 = vmatpush1.xpose.msra.mxu0 0.0
    %2365 = vmatprep.subr.mxu0 0.0
    %2366 = vmatpush1.xpose.msra.mxu0 0.0
    %2367 = vmatprep.subr.mxu0 0.0
    %2368 = vmatpush1.xpose.msra.mxu0 0.0
    %2369 = vmatprep.subr.mxu0 0.0
    %2370 = vmatpush1.xpose.msra.mxu0 0.0
    %2371 = vmatprep.subr.mxu0 0.0
    %2372 = vmatpush1.xpose.msra.mxu0 0.0
    %2373 = vmatprep.subr.mxu0 0.0
    %2374 = vmatpush1.xpose.msra.mxu0 0.0
    %2375 = vmatprep.subr.mxu0 0.0
    %2376 = vmatpush1.xpose.msra.mxu0 0.0
    %2377 = vmatprep.subr.mxu0 0.0
    %2378 = vmatpush1.xpose.msra.mxu0 0.0
    %2379 = vmatprep.subr.mxu0 0.0
    %2380 = vmatpush1.xpose.msra.mxu0 0.0
    %2381 = vmatprep.subr.mxu0 0.0
    %2382 = vmatpush1.xpose.msra.mxu0 0.0
    %2383 = vmatprep.subr.mxu0 0.0
    %2384 = vmatpush1.xpose.msra.mxu0 0.0
    %2385 = vmatprep.subr.mxu0 0.0
    %2386 = vmatpush1.xpose.msra.mxu0 0.0
    %2387 = vmatprep.subr.mxu0 0.0
    %2388 = vmatpush1.xpose.msra.mxu0 0.0
    %2389 = vmatprep.subr.mxu0 0.0
    %2390 = vmatpush1.xpose.msra.mxu0 0.0
    %2391 = vmatprep.subr.mxu0 0.0
    %2392 = vmatpush1.xpose.msra.mxu0 0.0
    %2393 = vmatprep.subr.mxu0 0.0
    %2394 = vmatpush1.xpose.msra.mxu0 0.0
    %2395 = vmatprep.subr.mxu0 0.0
    %2396 = vmatpush1.xpose.msra.mxu0 0.0
    %2397 = vmatprep.subr.mxu0 0.0
    %2398 = vmatpush1.xpose.msra.mxu0 0.0
    %2399 = vmatprep.subr.mxu0 0.0
    %2400 = vmatpush1.xpose.msra.mxu0 0.0
    %2401 = vmatprep.subr.mxu0 0.0
    %2402 = vmatpush1.xpose.msra.mxu0 0.0
    %2403 = vmatprep.subr.mxu0 0.0
    %2404 = vmatpush1.xpose.msra.mxu0 0.0
    %2405 = vmatprep.subr.mxu0 0.0
    %2406 = vmatpush1.xpose.msra.mxu0 0.0
    %2407 = vmatprep.subr.mxu0 0.0
    %2408 = vmatpush1.xpose.msra.mxu0 0.0
    %2409 = vmatprep.subr.mxu0 0.0
    %2410 = vmatpush1.xpose.msra.mxu0 0.0
    %2411 = vmatprep.subr.mxu0 0.0
    %2412 = vmatpush1.xpose.msra.mxu0 0.0
    %2413 = vmatprep.subr.mxu0 0.0
    %2414 = vmatpush1.xpose.msra.mxu0 0.0
    %2415 = vmatprep.mubr.f32.mxu0 0.0
    %2416 = vmatmul.mubr.f32.gmra.mrb[0].mxu0 %v2347
    %v2417 = vpop.f32.mrb[0].mxu0
    %v2418 = vadd.f32 0.0, %v2417
    %v2419 = vpop.f32.mrb[0].mxu0
    %2420 = vdwg.mxu0
    %2421 = vrot.lane.b32.xlu0 %v2036, 96
    %v2422 = vpop.permute.xlu0 %2421
    %v2423 = vsel %vm47, %v2036, 0
    %v2425 = vsel %vm47, %v2422, 0
    %2427 = vmatprep.subr.mxu0 0.0
    %2428 = vmatpush1.xpose.msra.mxu0 %v2425
    %2429 = vmatprep.subr.mxu0 0.0
    %2430 = vmatpush1.xpose.msra.mxu0 0.0
    %2431 = vmatprep.subr.mxu0 0.0
    %2432 = vmatpush1.xpose.msra.mxu0 0.0
    %2433 = vmatprep.subr.mxu0 0.0
    %2434 = vmatpush1.xpose.msra.mxu0 0.0
    %2435 = vmatprep.subr.mxu0 0.0
    %2436 = vmatpush1.xpose.msra.mxu0 0.0
    %2437 = vmatprep.subr.mxu0 0.0
    %2438 = vmatpush1.xpose.msra.mxu0 0.0
    %2439 = vmatprep.subr.mxu0 0.0
    %2440 = vmatpush1.xpose.msra.mxu0 0.0
    %2441 = vmatprep.subr.mxu0 0.0
    %2442 = vmatpush1.xpose.msra.mxu0 0.0
    %2443 = vmatprep.subr.mxu0 0.0
    %2444 = vmatpush1.xpose.msra.mxu0 0.0
    %2445 = vmatprep.subr.mxu0 0.0
    %2446 = vmatpush1.xpose.msra.mxu0 0.0
    %2447 = vmatprep.subr.mxu0 0.0
    %2448 = vmatpush1.xpose.msra.mxu0 0.0
    %2449 = vmatprep.subr.mxu0 0.0
    %2450 = vmatpush1.xpose.msra.mxu0 0.0
    %2451 = vmatprep.subr.mxu0 0.0
    %2452 = vmatpush1.xpose.msra.mxu0 0.0
    %2453 = vmatprep.subr.mxu0 0.0
    %2454 = vmatpush1.xpose.msra.mxu0 0.0
    %2455 = vmatprep.subr.mxu0 0.0
    %2456 = vmatpush1.xpose.msra.mxu0 0.0
    %2457 = vmatprep.subr.mxu0 0.0
    %2458 = vmatpush1.xpose.msra.mxu0 0.0
    %2459 = vmatprep.subr.mxu0 0.0
    %2460 = vmatpush1.xpose.msra.mxu0 0.0
    %2461 = vmatprep.subr.mxu0 0.0
    %2462 = vmatpush1.xpose.msra.mxu0 0.0
    %2463 = vmatprep.subr.mxu0 0.0
    %2464 = vmatpush1.xpose.msra.mxu0 0.0
    %2465 = vmatprep.subr.mxu0 0.0
    %2466 = vmatpush1.xpose.msra.mxu0 0.0
    %2467 = vmatprep.subr.mxu0 0.0
    %2468 = vmatpush1.xpose.msra.mxu0 0.0
    %2469 = vmatprep.subr.mxu0 0.0
    %2470 = vmatpush1.xpose.msra.mxu0 0.0
    %2471 = vmatprep.subr.mxu0 0.0
    %2472 = vmatpush1.xpose.msra.mxu0 0.0
    %2473 = vmatprep.subr.mxu0 0.0
    %2474 = vmatpush1.xpose.msra.mxu0 0.0
    %2475 = vmatprep.subr.mxu0 0.0
    %2476 = vmatpush1.xpose.msra.mxu0 0.0
    %2477 = vmatprep.subr.mxu0 0.0
    %2478 = vmatpush1.xpose.msra.mxu0 0.0
    %2479 = vmatprep.subr.mxu0 0.0
    %2480 = vmatpush1.xpose.msra.mxu0 0.0
    %2481 = vmatprep.subr.mxu0 0.0
    %2482 = vmatpush1.xpose.msra.mxu0 0.0
    %2483 = vmatprep.subr.mxu0 0.0
    %2484 = vmatpush1.xpose.msra.mxu0 0.0
    %2485 = vmatprep.subr.mxu0 0.0
    %2486 = vmatpush1.xpose.msra.mxu0 0.0
    %2487 = vmatprep.subr.mxu0 0.0
    %2488 = vmatpush1.xpose.msra.mxu0 0.0
    %2489 = vmatprep.subr.mxu0 0.0
    %2490 = vmatpush1.xpose.msra.mxu0 0.0
    %2491 = vmatprep.mubr.f32.mxu0 0.0
    %2492 = vmatmul.mubr.f32.gmra.mrb[0].mxu0 %v2423
    %v2493 = vpop.f32.mrb[0].mxu0
    %v2494 = vadd.f32 0.0, %v2493
    %v2495 = vpop.f32.mrb[0].mxu0
    %2496 = vdwg.mxu0
    %2497 = vrot.lane.b32.xlu0 %v2038, 96
    %v2498 = vpop.permute.xlu0 %2497
    %v2499 = vsel %vm47, %v2038, 0
    %v2501 = vsel %vm47, %v2498, 0
    %2503 = vmatprep.subr.mxu0 0.0
    %2504 = vmatpush1.xpose.msra.mxu0 %v2501
    %2505 = vmatprep.subr.mxu0 0.0
    %2506 = vmatpush1.xpose.msra.mxu0 0.0
    %2507 = vmatprep.subr.mxu0 0.0
    %2508 = vmatpush1.xpose.msra.mxu0 0.0
    %2509 = vmatprep.subr.mxu0 0.0
    %2510 = vmatpush1.xpose.msra.mxu0 0.0
    %2511 = vmatprep.subr.mxu0 0.0
    %2512 = vmatpush1.xpose.msra.mxu0 0.0
    %2513 = vmatprep.subr.mxu0 0.0
    %2514 = vmatpush1.xpose.msra.mxu0 0.0
    %2515 = vmatprep.subr.mxu0 0.0
    %2516 = vmatpush1.xpose.msra.mxu0 0.0
    %2517 = vmatprep.subr.mxu0 0.0
    %2518 = vmatpush1.xpose.msra.mxu0 0.0
    %2519 = vmatprep.subr.mxu0 0.0
    %2520 = vmatpush1.xpose.msra.mxu0 0.0
    %2521 = vmatprep.subr.mxu0 0.0
    %2522 = vmatpush1.xpose.msra.mxu0 0.0
    %2523 = vmatprep.subr.mxu0 0.0
    %2524 = vmatpush1.xpose.msra.mxu0 0.0
    %2525 = vmatprep.subr.mxu0 0.0
    %2526 = vmatpush1.xpose.msra.mxu0 0.0
    %2527 = vmatprep.subr.mxu0 0.0
    %2528 = vmatpush1.xpose.msra.mxu0 0.0
    %2529 = vmatprep.subr.mxu0 0.0
    %2530 = vmatpush1.xpose.msra.mxu0 0.0
    %2531 = vmatprep.subr.mxu0 0.0
    %2532 = vmatpush1.xpose.msra.mxu0 0.0
    %2533 = vmatprep.subr.mxu0 0.0
    %2534 = vmatpush1.xpose.msra.mxu0 0.0
    %2535 = vmatprep.subr.mxu0 0.0
    %2536 = vmatpush1.xpose.msra.mxu0 0.0
    %2537 = vmatprep.subr.mxu0 0.0
    %2538 = vmatpush1.xpose.msra.mxu0 0.0
    %2539 = vmatprep.subr.mxu0 0.0
    %2540 = vmatpush1.xpose.msra.mxu0 0.0
    %2541 = vmatprep.subr.mxu0 0.0
    %2542 = vmatpush1.xpose.msra.mxu0 0.0
    %2543 = vmatprep.subr.mxu0 0.0
    %2544 = vmatpush1.xpose.msra.mxu0 0.0
    %2545 = vmatprep.subr.mxu0 0.0
    %2546 = vmatpush1.xpose.msra.mxu0 0.0
    %2547 = vmatprep.subr.mxu0 0.0
    %2548 = vmatpush1.xpose.msra.mxu0 0.0
    %2549 = vmatprep.subr.mxu0 0.0
    %2550 = vmatpush1.xpose.msra.mxu0 0.0
    %2551 = vmatprep.subr.mxu0 0.0
    %2552 = vmatpush1.xpose.msra.mxu0 0.0
    %2553 = vmatprep.subr.mxu0 0.0
    %2554 = vmatpush1.xpose.msra.mxu0 0.0
    %2555 = vmatprep.subr.mxu0 0.0
    %2556 = vmatpush1.xpose.msra.mxu0 0.0
    %2557 = vmatprep.subr.mxu0 0.0
    %2558 = vmatpush1.xpose.msra.mxu0 0.0
    %2559 = vmatprep.subr.mxu0 0.0
    %2560 = vmatpush1.xpose.msra.mxu0 0.0
    %2561 = vmatprep.subr.mxu0 0.0
    %2562 = vmatpush1.xpose.msra.mxu0 0.0
    %2563 = vmatprep.subr.mxu0 0.0
    %2564 = vmatpush1.xpose.msra.mxu0 0.0
    %2565 = vmatprep.subr.mxu0 0.0
    %2566 = vmatpush1.xpose.msra.mxu0 0.0
    %2567 = vmatprep.mubr.f32.mxu0 0.0
    %2568 = vmatmul.mubr.f32.gmra.mrb[0].mxu0 %v2499
    %v2569 = vpop.f32.mrb[0].mxu0
    %v2570 = vadd.f32 0.0, %v2569
    %v2571 = vpop.f32.mrb[0].mxu0
    %2572 = vdwg.mxu0
    %2573 = vrot.lane.b32.xlu0 %v2040, 96
    %v2574 = vpop.permute.xlu0 %2573
    %v2575 = vsel %vm47, %v2040, 0
    %v2577 = vsel %vm47, %v2574, 0
    %2579 = vmatprep.subr.mxu0 0.0
    %2580 = vmatpush1.xpose.msra.mxu0 %v2577
    %2581 = vmatprep.subr.mxu0 0.0
    %2582 = vmatpush1.xpose.msra.mxu0 0.0
    %2583 = vmatprep.subr.mxu0 0.0
    %2584 = vmatpush1.xpose.msra.mxu0 0.0
    %2585 = vmatprep.subr.mxu0 0.0
    %2586 = vmatpush1.xpose.msra.mxu0 0.0
    %2587 = vmatprep.subr.mxu0 0.0
    %2588 = vmatpush1.xpose.msra.mxu0 0.0
    %2589 = vmatprep.subr.mxu0 0.0
    %2590 = vmatpush1.xpose.msra.mxu0 0.0
    %2591 = vmatprep.subr.mxu0 0.0
    %2592 = vmatpush1.xpose.msra.mxu0 0.0
    %2593 = vmatprep.subr.mxu0 0.0
    %2594 = vmatpush1.xpose.msra.mxu0 0.0
    %2595 = vmatprep.subr.mxu0 0.0
    %2596 = vmatpush1.xpose.msra.mxu0 0.0
    %2597 = vmatprep.subr.mxu0 0.0
    %2598 = vmatpush1.xpose.msra.mxu0 0.0
    %2599 = vmatprep.subr.mxu0 0.0
    %2600 = vmatpush1.xpose.msra.mxu0 0.0
    %2601 = vmatprep.subr.mxu0 0.0
    %2602 = vmatpush1.xpose.msra.mxu0 0.0
    %2603 = vmatprep.subr.mxu0 0.0
    %2604 = vmatpush1.xpose.msra.mxu0 0.0
    %2605 = vmatprep.subr.mxu0 0.0
    %2606 = vmatpush1.xpose.msra.mxu0 0.0
    %2607 = vmatprep.subr.mxu0 0.0
    %2608 = vmatpush1.xpose.msra.mxu0 0.0
    %2609 = vmatprep.subr.mxu0 0.0
    %2610 = vmatpush1.xpose.msra.mxu0 0.0
    %2611 = vmatprep.subr.mxu0 0.0
    %2612 = vmatpush1.xpose.msra.mxu0 0.0
    %2613 = vmatprep.subr.mxu0 0.0
    %2614 = vmatpush1.xpose.msra.mxu0 0.0
    %2615 = vmatprep.subr.mxu0 0.0
    %2616 = vmatpush1.xpose.msra.mxu0 0.0
    %2617 = vmatprep.subr.mxu0 0.0
    %2618 = vmatpush1.xpose.msra.mxu0 0.0
    %2619 = vmatprep.subr.mxu0 0.0
    %2620 = vmatpush1.xpose.msra.mxu0 0.0
    %2621 = vmatprep.subr.mxu0 0.0
    %2622 = vmatpush1.xpose.msra.mxu0 0.0
    %2623 = vmatprep.subr.mxu0 0.0
    %2624 = vmatpush1.xpose.msra.mxu0 0.0
    %2625 = vmatprep.subr.mxu0 0.0
    %2626 = vmatpush1.xpose.msra.mxu0 0.0
    %2627 = vmatprep.subr.mxu0 0.0
    %2628 = vmatpush1.xpose.msra.mxu0 0.0
    %2629 = vmatprep.subr.mxu0 0.0
    %2630 = vmatpush1.xpose.msra.mxu0 0.0
    %2631 = vmatprep.subr.mxu0 0.0
    %2632 = vmatpush1.xpose.msra.mxu0 0.0
    %2633 = vmatprep.subr.mxu0 0.0
    %2634 = vmatpush1.xpose.msra.mxu0 0.0
    %2635 = vmatprep.subr.mxu0 0.0
    %2636 = vmatpush1.xpose.msra.mxu0 0.0
    %2637 = vmatprep.subr.mxu0 0.0
    %2638 = vmatpush1.xpose.msra.mxu0 0.0
    %2639 = vmatprep.subr.mxu0 0.0
    %2640 = vmatpush1.xpose.msra.mxu0 0.0
    %2641 = vmatprep.subr.mxu0 0.0
    %2642 = vmatpush1.xpose.msra.mxu0 0.0
    %2643 = vmatprep.mubr.f32.mxu0 0.0
    %2644 = vmatmul.mubr.f32.gmra.mrb[0].mxu0 %v2575
    %v2645 = vpop.f32.mrb[0].mxu0
    %v2646 = vadd.f32 0.0, %v2645
    %v2647 = vpop.f32.mrb[0].mxu0
    %2648 = vdwg.mxu0
    %v2649 = vsel %vm47, %v2114, -inf
    %2650 = vmax.xlane.f32.xlu0 %v2649
    %v2651 = vpop.xlane.xlu0 %2650
    %v2652 = vsel %vm47, %v2190, -inf
    %2653 = vmax.xlane.f32.xlu0 %v2652
    %v2654 = vpop.xlane.xlu0 %2653
    %v2655 = vsel %vm47, %v2266, -inf
    %2656 = vmax.xlane.f32.xlu0 %v2655
    %v2657 = vpop.xlane.xlu0 %2656
    %v2658 = vsel %vm47, %v2342, -inf
    %2659 = vmax.xlane.f32.xlu0 %v2658
    %v2660 = vpop.xlane.xlu0 %2659
    %v2661 = vsel %vm47, %v2418, -inf
    %2662 = vmax.xlane.f32.xlu0 %v2661
    %v2663 = vpop.xlane.xlu0 %2662
    %v2664 = vsel %vm47, %v2494, -inf
    %2665 = vmax.xlane.f32.xlu0 %v2664
    %v2666 = vpop.xlane.xlu0 %2665
    %v2667 = vsel %vm47, %v2570, -inf
    %2668 = vmax.xlane.f32.xlu0 %v2667
    %v2669 = vpop.xlane.xlu0 %2668
    %v2670 = vsel %vm47, %v2646, -inf
    %2671 = vmax.xlane.f32.xlu0 %v2670
    %v2672 = vpop.xlane.xlu0 %2671
    %v2673 = vsub.f32 %v2114, %v2651
    %v2674 = vsub.f32 %v2190, %v2654
    %v2675 = vsub.f32 %v2266, %v2657
    %v2676 = vsub.f32 %v2342, %v2660
    %v2677 = vsub.f32 %v2418, %v2663
    %v2678 = vsub.f32 %v2494, %v2666
    %v2679 = vsub.f32 %v2570, %v2669
    %v2680 = vsub.f32 %v2646, %v2672
    %v2681 = vmul.f32 %v2673, 1.442695
    %v2682 = vpow.pop %v2681
    %v2683 = vmul.f32 %v2674, 1.442695
    %v2684 = vpow.pop %v2683
    %v2685 = vmul.f32 %v2675, 1.442695
    %v2686 = vpow.pop %v2685
    %v2687 = vmul.f32 %v2676, 1.442695
    %v2688 = vpow.pop %v2687
    %v2689 = vmul.f32 %v2677, 1.442695
    %v2690 = vpow.pop %v2689
    %v2691 = vmul.f32 %v2678, 1.442695
    %v2692 = vpow.pop %v2691
    %v2693 = vmul.f32 %v2679, 1.442695
    %v2694 = vpow.pop %v2693
    %v2695 = vmul.f32 %v2680, 1.442695
    %v2696 = vpow.pop %v2695
    %v2697 = vsel %vm47, %v2682, 0.0
    %2698 = vadd.xlane.f32.xlu0 %v2697
    %v2699 = vpop.xlane.xlu0 %2698
    %v2700 = vsel %vm47, %v2684, 0.0
    %2701 = vadd.xlane.f32.xlu0 %v2700
    %v2702 = vpop.xlane.xlu0 %2701
    %v2703 = vsel %vm47, %v2686, 0.0
    %2704 = vadd.xlane.f32.xlu0 %v2703
    %v2705 = vpop.xlane.xlu0 %2704
    %v2706 = vsel %vm47, %v2688, 0.0
    %2707 = vadd.xlane.f32.xlu0 %v2706
    %v2708 = vpop.xlane.xlu0 %2707
    %v2709 = vsel %vm47, %v2690, 0.0
    %2710 = vadd.xlane.f32.xlu0 %v2709
    %v2711 = vpop.xlane.xlu0 %2710
    %v2712 = vsel %vm47, %v2692, 0.0
    %2713 = vadd.xlane.f32.xlu0 %v2712
    %v2714 = vpop.xlane.xlu0 %2713
    %v2715 = vsel %vm47, %v2694, 0.0
    %2716 = vadd.xlane.f32.xlu0 %v2715
    %v2717 = vpop.xlane.xlu0 %2716
    %v2718 = vsel %vm47, %v2696, 0.0
    %2719 = vadd.xlane.f32.xlu0 %v2718
    %v2720 = vpop.xlane.xlu0 %2719
    %v2721 = vrcp.pop %v2699
    %v2722 = vmul.f32 %v2682, %v2721
    %v2723 = vrcp.pop %v2702
    %v2724 = vmul.f32 %v2684, %v2723
    %v2725 = vrcp.pop %v2705
    %v2726 = vmul.f32 %v2686, %v2725
    %v2727 = vrcp.pop %v2708
    %v2728 = vmul.f32 %v2688, %v2727
    %v2729 = vrcp.pop %v2711
    %v2730 = vmul.f32 %v2690, %v2729
    %v2731 = vrcp.pop %v2714
    %v2732 = vmul.f32 %v2692, %v2731
    %v2733 = vrcp.pop %v2717
    %v2734 = vmul.f32 %v2694, %v2733
    %v2735 = vrcp.pop %v2720
    %v2736 = vmul.f32 %v2696, %v2735
    %2737 = vrot.lane.b32.xlu0 %v2019, 64
    %v2738 = vpop.permute.xlu0 %2737
    %v2741 = vsel %vm47, %v2722, 0
    %2743 = vmatprep.subr.mxu0 0.0
    %2744 = vmatpush1.msra.mxu0 %v2738
    %2745 = vmatprep.subr.mxu0 0.0
    %2746 = vmatpush1.msra.mxu0 0.0
    %2747 = vmatprep.subr.mxu0 0.0
    %2748 = vmatpush1.msra.mxu0 0.0
    %2749 = vmatprep.subr.mxu0 0.0
    %2750 = vmatpush1.msra.mxu0 0.0
    %2751 = vmatprep.subr.mxu0 0.0
    %2752 = vmatpush1.msra.mxu0 0.0
    %2753 = vmatprep.subr.mxu0 0.0
    %2754 = vmatpush1.msra.mxu0 0.0
    %2755 = vmatprep.subr.mxu0 0.0
    %2756 = vmatpush1.msra.mxu0 0.0
    %2757 = vmatprep.subr.mxu0 0.0
    %2758 = vmatpush1.msra.mxu0 0.0
    %2759 = vmatprep.subr.mxu0 0.0
    %2760 = vmatpush1.msra.mxu0 0.0
    %2761 = vmatprep.subr.mxu0 0.0
    %2762 = vmatpush1.msra.mxu0 0.0
    %2763 = vmatprep.subr.mxu0 0.0
    %2764 = vmatpush1.msra.mxu0 0.0
    %2765 = vmatprep.subr.mxu0 0.0
    %2766 = vmatpush1.msra.mxu0 0.0
    %2767 = vmatprep.subr.mxu0 0.0
    %2768 = vmatpush1.msra.mxu0 0.0
    %2769 = vmatprep.subr.mxu0 0.0
    %2770 = vmatpush1.msra.mxu0 0.0
    %2771 = vmatprep.subr.mxu0 0.0
    %2772 = vmatpush1.msra.mxu0 0.0
    %2773 = vmatprep.subr.mxu0 0.0
    %2774 = vmatpush1.msra.mxu0 0.0
    %2775 = vmatprep.subr.mxu0 0.0
    %2776 = vmatpush1.msra.mxu0 0.0
    %2777 = vmatprep.subr.mxu0 0.0
    %2778 = vmatpush1.msra.mxu0 0.0
    %2779 = vmatprep.subr.mxu0 0.0
    %2780 = vmatpush1.msra.mxu0 0.0
    %2781 = vmatprep.subr.mxu0 0.0
    %2782 = vmatpush1.msra.mxu0 0.0
    %2783 = vmatprep.subr.mxu0 0.0
    %2784 = vmatpush1.msra.mxu0 0.0
    %2785 = vmatprep.subr.mxu0 0.0
    %2786 = vmatpush1.msra.mxu0 0.0
    %2787 = vmatprep.subr.mxu0 0.0
    %2788 = vmatpush1.msra.mxu0 0.0
    %2789 = vmatprep.subr.mxu0 0.0
    %2790 = vmatpush1.msra.mxu0 0.0
    %2791 = vmatprep.subr.mxu0 0.0
    %2792 = vmatpush1.msra.mxu0 0.0
    %2793 = vmatprep.subr.mxu0 0.0
    %2794 = vmatpush1.msra.mxu0 0.0
    %2795 = vmatprep.subr.mxu0 0.0
    %2796 = vmatpush1.msra.mxu0 0.0
    %2797 = vmatprep.subr.mxu0 0.0
    %2798 = vmatpush1.msra.mxu0 0.0
    %2799 = vmatprep.subr.mxu0 0.0
    %2800 = vmatpush1.msra.mxu0 0.0
    %2801 = vmatprep.subr.mxu0 0.0
    %2802 = vmatpush1.msra.mxu0 0.0
    %2803 = vmatprep.subr.mxu0 0.0
    %2804 = vmatpush1.msra.mxu0 0.0
    %2805 = vmatprep.subr.mxu0 0.0
    %2806 = vmatpush1.msra.mxu0 0.0
    %2807 = vmatprep.mubr.f32.mxu0 0.0
    %2808 = vmatmul.mubr.f32.gmra.mrb[0].mxu0 %v2741
    %v2809 = vpop.f32.mrb[0].mxu0
    %v2810 = vadd.f32 0.0, %v2809
    %v2811 = vpop.f32.mrb[0].mxu0
    %2812 = vdwg.mxu0
    %2813 = vrot.lane.b32.xlu0 %v2024, 64
    %v2814 = vpop.permute.xlu0 %2813
    %v2817 = vsel %vm47, %v2724, 0
    %2819 = vmatprep.subr.mxu0 0.0
    %2820 = vmatpush1.msra.mxu0 %v2814
    %2821 = vmatprep.subr.mxu0 0.0
    %2822 = vmatpush1.msra.mxu0 0.0
    %2823 = vmatprep.subr.mxu0 0.0
    %2824 = vmatpush1.msra.mxu0 0.0
    %2825 = vmatprep.subr.mxu0 0.0
    %2826 = vmatpush1.msra.mxu0 0.0
    %2827 = vmatprep.subr.mxu0 0.0
    %2828 = vmatpush1.msra.mxu0 0.0
    %2829 = vmatprep.subr.mxu0 0.0
    %2830 = vmatpush1.msra.mxu0 0.0
    %2831 = vmatprep.subr.mxu0 0.0
    %2832 = vmatpush1.msra.mxu0 0.0
    %2833 = vmatprep.subr.mxu0 0.0
    %2834 = vmatpush1.msra.mxu0 0.0
    %2835 = vmatprep.subr.mxu0 0.0
    %2836 = vmatpush1.msra.mxu0 0.0
    %2837 = vmatprep.subr.mxu0 0.0
    %2838 = vmatpush1.msra.mxu0 0.0
    %2839 = vmatprep.subr.mxu0 0.0
    %2840 = vmatpush1.msra.mxu0 0.0
    %2841 = vmatprep.subr.mxu0 0.0
    %2842 = vmatpush1.msra.mxu0 0.0
    %2843 = vmatprep.subr.mxu0 0.0
    %2844 = vmatpush1.msra.mxu0 0.0
    %2845 = vmatprep.subr.mxu0 0.0
    %2846 = vmatpush1.msra.mxu0 0.0
    %2847 = vmatprep.subr.mxu0 0.0
    %2848 = vmatpush1.msra.mxu0 0.0
    %2849 = vmatprep.subr.mxu0 0.0
    %2850 = vmatpush1.msra.mxu0 0.0
    %2851 = vmatprep.subr.mxu0 0.0
    %2852 = vmatpush1.msra.mxu0 0.0
    %2853 = vmatprep.subr.mxu0 0.0
    %2854 = vmatpush1.msra.mxu0 0.0
    %2855 = vmatprep.subr.mxu0 0.0
    %2856 = vmatpush1.msra.mxu0 0.0
    %2857 = vmatprep.subr.mxu0 0.0
    %2858 = vmatpush1.msra.mxu0 0.0
    %2859 = vmatprep.subr.mxu0 0.0
    %2860 = vmatpush1.msra.mxu0 0.0
    %2861 = vmatprep.subr.mxu0 0.0
    %2862 = vmatpush1.msra.mxu0 0.0
    %2863 = vmatprep.subr.mxu0 0.0
    %2864 = vmatpush1.msra.mxu0 0.0
    %2865 = vmatprep.subr.mxu0 0.0
    %2866 = vmatpush1.msra.mxu0 0.0
    %2867 = vmatprep.subr.mxu0 0.0
    %2868 = vmatpush1.msra.mxu0 0.0
    %2869 = vmatprep.subr.mxu0 0.0
    %2870 = vmatpush1.msra.mxu0 0.0
    %2871 = vmatprep.subr.mxu0 0.0
    %2872 = vmatpush1.msra.mxu0 0.0
    %2873 = vmatprep.subr.mxu0 0.0
    %2874 = vmatpush1.msra.mxu0 0.0
    %2875 = vmatprep.subr.mxu0 0.0
    %2876 = vmatpush1.msra.mxu0 0.0
    %2877 = vmatprep.subr.mxu0 0.0
    %2878 = vmatpush1.msra.mxu0 0.0
    %2879 = vmatprep.subr.mxu0 0.0
    %2880 = vmatpush1.msra.mxu0 0.0
    %2881 = vmatprep.subr.mxu0 0.0
    %2882 = vmatpush1.msra.mxu0 0.0
    %2883 = vmatprep.mubr.f32.mxu0 0.0
    %2884 = vmatmul.mubr.f32.gmra.mrb[0].mxu0 %v2817
    %v2885 = vpop.f32.mrb[0].mxu0
    %v2886 = vadd.f32 0.0, %v2885
    %v2887 = vpop.f32.mrb[0].mxu0
    %2888 = vdwg.mxu0
    %2889 = vrot.lane.b32.xlu0 %v2030, 64
    %v2890 = vpop.permute.xlu0 %2889
    %v2893 = vsel %vm47, %v2726, 0
    %2895 = vmatprep.subr.mxu0 0.0
    %2896 = vmatpush1.msra.mxu0 %v2890
    %2897 = vmatprep.subr.mxu0 0.0
    %2898 = vmatpush1.msra.mxu0 0.0
    %2899 = vmatprep.subr.mxu0 0.0
    %2900 = vmatpush1.msra.mxu0 0.0
    %2901 = vmatprep.subr.mxu0 0.0
    %2902 = vmatpush1.msra.mxu0 0.0
    %2903 = vmatprep.subr.mxu0 0.0
    %2904 = vmatpush1.msra.mxu0 0.0
    %2905 = vmatprep.subr.mxu0 0.0
    %2906 = vmatpush1.msra.mxu0 0.0
    %2907 = vmatprep.subr.mxu0 0.0
    %2908 = vmatpush1.msra.mxu0 0.0
    %2909 = vmatprep.subr.mxu0 0.0
    %2910 = vmatpush1.msra.mxu0 0.0
    %2911 = vmatprep.subr.mxu0 0.0
    %2912 = vmatpush1.msra.mxu0 0.0
    %2913 = vmatprep.subr.mxu0 0.0
    %2914 = vmatpush1.msra.mxu0 0.0
    %2915 = vmatprep.subr.mxu0 0.0
    %2916 = vmatpush1.msra.mxu0 0.0
    %2917 = vmatprep.subr.mxu0 0.0
    %2918 = vmatpush1.msra.mxu0 0.0
    %2919 = vmatprep.subr.mxu0 0.0
    %2920 = vmatpush1.msra.mxu0 0.0
    %2921 = vmatprep.subr.mxu0 0.0
    %2922 = vmatpush1.msra.mxu0 0.0
    %2923 = vmatprep.subr.mxu0 0.0
    %2924 = vmatpush1.msra.mxu0 0.0
    %2925 = vmatprep.subr.mxu0 0.0
    %2926 = vmatpush1.msra.mxu0 0.0
    %2927 = vmatprep.subr.mxu0 0.0
    %2928 = vmatpush1.msra.mxu0 0.0
    %2929 = vmatprep.subr.mxu0 0.0
    %2930 = vmatpush1.msra.mxu0 0.0
    %2931 = vmatprep.subr.mxu0 0.0
    %2932 = vmatpush1.msra.mxu0 0.0
    %2933 = vmatprep.subr.mxu0 0.0
    %2934 = vmatpush1.msra.mxu0 0.0
    %2935 = vmatprep.subr.mxu0 0.0
    %2936 = vmatpush1.msra.mxu0 0.0
    %2937 = vmatprep.subr.mxu0 0.0
    %2938 = vmatpush1.msra.mxu0 0.0
    %2939 = vmatprep.subr.mxu0 0.0
    %2940 = vmatpush1.msra.mxu0 0.0
    %2941 = vmatprep.subr.mxu0 0.0
    %2942 = vmatpush1.msra.mxu0 0.0
    %2943 = vmatprep.subr.mxu0 0.0
    %2944 = vmatpush1.msra.mxu0 0.0
    %2945 = vmatprep.subr.mxu0 0.0
    %2946 = vmatpush1.msra.mxu0 0.0
    %2947 = vmatprep.subr.mxu0 0.0
    %2948 = vmatpush1.msra.mxu0 0.0
    %2949 = vmatprep.subr.mxu0 0.0
    %2950 = vmatpush1.msra.mxu0 0.0
    %2951 = vmatprep.subr.mxu0 0.0
    %2952 = vmatpush1.msra.mxu0 0.0
    %2953 = vmatprep.subr.mxu0 0.0
    %2954 = vmatpush1.msra.mxu0 0.0
    %2955 = vmatprep.subr.mxu0 0.0
    %2956 = vmatpush1.msra.mxu0 0.0
    %2957 = vmatprep.subr.mxu0 0.0
    %2958 = vmatpush1.msra.mxu0 0.0
    %2959 = vmatprep.mubr.f32.mxu0 0.0
    %2960 = vmatmul.mubr.f32.gmra.mrb[0].mxu0 %v2893
    %v2961 = vpop.f32.mrb[0].mxu0
    %v2962 = vadd.f32 0.0, %v2961
    %v2963 = vpop.f32.mrb[0].mxu0
    %2964 = vdwg.mxu0
    %2965 = vrot.lane.b32.xlu0 %v2032, 64
    %v2966 = vpop.permute.xlu0 %2965
    %v2969 = vsel %vm47, %v2728, 0
    %2971 = vmatprep.subr.mxu0 0.0
    %2972 = vmatpush1.msra.mxu0 %v2966
    %2973 = vmatprep.subr.mxu0 0.0
    %2974 = vmatpush1.msra.mxu0 0.0
    %2975 = vmatprep.subr.mxu0 0.0
    %2976 = vmatpush1.msra.mxu0 0.0
    %2977 = vmatprep.subr.mxu0 0.0
    %2978 = vmatpush1.msra.mxu0 0.0
    %2979 = vmatprep.subr.mxu0 0.0
    %2980 = vmatpush1.msra.mxu0 0.0
    %2981 = vmatprep.subr.mxu0 0.0
    %2982 = vmatpush1.msra.mxu0 0.0
    %2983 = vmatprep.subr.mxu0 0.0
    %2984 = vmatpush1.msra.mxu0 0.0
    %2985 = vmatprep.subr.mxu0 0.0
    %2986 = vmatpush1.msra.mxu0 0.0
    %2987 = vmatprep.subr.mxu0 0.0
    %2988 = vmatpush1.msra.mxu0 0.0
    %2989 = vmatprep.subr.mxu0 0.0
    %2990 = vmatpush1.msra.mxu0 0.0
    %2991 = vmatprep.subr.mxu0 0.0
    %2992 = vmatpush1.msra.mxu0 0.0
    %2993 = vmatprep.subr.mxu0 0.0
    %2994 = vmatpush1.msra.mxu0 0.0
    %2995 = vmatprep.subr.mxu0 0.0
    %2996 = vmatpush1.msra.mxu0 0.0
    %2997 = vmatprep.subr.mxu0 0.0
    %2998 = vmatpush1.msra.mxu0 0.0
    %2999 = vmatprep.subr.mxu0 0.0
    %3000 = vmatpush1.msra.mxu0 0.0
    %3001 = vmatprep.subr.mxu0 0.0
    %3002 = vmatpush1.msra.mxu0 0.0
    %3003 = vmatprep.subr.mxu0 0.0
    %3004 = vmatpush1.msra.mxu0 0.0
    %3005 = vmatprep.subr.mxu0 0.0
    %3006 = vmatpush1.msra.mxu0 0.0
    %3007 = vmatprep.subr.mxu0 0.0
    %3008 = vmatpush1.msra.mxu0 0.0
    %3009 = vmatprep.subr.mxu0 0.0
    %3010 = vmatpush1.msra.mxu0 0.0
    %3011 = vmatprep.subr.mxu0 0.0
    %3012 = vmatpush1.msra.mxu0 0.0
    %3013 = vmatprep.subr.mxu0 0.0
    %3014 = vmatpush1.msra.mxu0 0.0
    %3015 = vmatprep.subr.mxu0 0.0
    %3016 = vmatpush1.msra.mxu0 0.0
    %3017 = vmatprep.subr.mxu0 0.0
    %3018 = vmatpush1.msra.mxu0 0.0
    %3019 = vmatprep.subr.mxu0 0.0
    %3020 = vmatpush1.msra.mxu0 0.0
    %3021 = vmatprep.subr.mxu0 0.0
    %3022 = vmatpush1.msra.mxu0 0.0
    %3023 = vmatprep.subr.mxu0 0.0
    %3024 = vmatpush1.msra.mxu0 0.0
    %3025 = vmatprep.subr.mxu0 0.0
    %3026 = vmatpush1.msra.mxu0 0.0
    %3027 = vmatprep.subr.mxu0 0.0
    %3028 = vmatpush1.msra.mxu0 0.0
    %3029 = vmatprep.subr.mxu0 0.0
    %3030 = vmatpush1.msra.mxu0 0.0
    %3031 = vmatprep.subr.mxu0 0.0
    %3032 = vmatpush1.msra.mxu0 0.0
    %3033 = vmatprep.subr.mxu0 0.0
    %3034 = vmatpush1.msra.mxu0 0.0
    %3035 = vmatprep.mubr.f32.mxu0 0.0
    %3036 = vmatmul.mubr.f32.gmra.mrb[0].mxu0 %v2969
    %v3037 = vpop.f32.mrb[0].mxu0
    %v3038 = vadd.f32 0.0, %v3037
    %v3039 = vpop.f32.mrb[0].mxu0
    %3040 = vdwg.mxu0
    %3041 = vrot.lane.b32.xlu0 %v2034, 64
    %v3042 = vpop.permute.xlu0 %3041
    %v3045 = vsel %vm47, %v2730, 0
    %3047 = vmatprep.subr.mxu0 0.0
    %3048 = vmatpush1.msra.mxu0 %v3042
    %3049 = vmatprep.subr.mxu0 0.0
    %3050 = vmatpush1.msra.mxu0 0.0
    %3051 = vmatprep.subr.mxu0 0.0
    %3052 = vmatpush1.msra.mxu0 0.0
    %3053 = vmatprep.subr.mxu0 0.0
    %3054 = vmatpush1.msra.mxu0 0.0
    %3055 = vmatprep.subr.mxu0 0.0
    %3056 = vmatpush1.msra.mxu0 0.0
    %3057 = vmatprep.subr.mxu0 0.0
    %3058 = vmatpush1.msra.mxu0 0.0
    %3059 = vmatprep.subr.mxu0 0.0
    %3060 = vmatpush1.msra.mxu0 0.0
    %3061 = vmatprep.subr.mxu0 0.0
    %3062 = vmatpush1.msra.mxu0 0.0
    %3063 = vmatprep.subr.mxu0 0.0
    %3064 = vmatpush1.msra.mxu0 0.0
    %3065 = vmatprep.subr.mxu0 0.0
    %3066 = vmatpush1.msra.mxu0 0.0
    %3067 = vmatprep.subr.mxu0 0.0
    %3068 = vmatpush1.msra.mxu0 0.0
    %3069 = vmatprep.subr.mxu0 0.0
    %3070 = vmatpush1.msra.mxu0 0.0
    %3071 = vmatprep.subr.mxu0 0.0
    %3072 = vmatpush1.msra.mxu0 0.0
    %3073 = vmatprep.subr.mxu0 0.0
    %3074 = vmatpush1.msra.mxu0 0.0
    %3075 = vmatprep.subr.mxu0 0.0
    %3076 = vmatpush1.msra.mxu0 0.0
    %3077 = vmatprep.subr.mxu0 0.0
    %3078 = vmatpush1.msra.mxu0 0.0
    %3079 = vmatprep.subr.mxu0 0.0
    %3080 = vmatpush1.msra.mxu0 0.0
    %3081 = vmatprep.subr.mxu0 0.0
    %3082 = vmatpush1.msra.mxu0 0.0
    %3083 = vmatprep.subr.mxu0 0.0
    %3084 = vmatpush1.msra.mxu0 0.0
    %3085 = vmatprep.subr.mxu0 0.0
    %3086 = vmatpush1.msra.mxu0 0.0
    %3087 = vmatprep.subr.mxu0 0.0
    %3088 = vmatpush1.msra.mxu0 0.0
    %3089 = vmatprep.subr.mxu0 0.0
    %3090 = vmatpush1.msra.mxu0 0.0
    %3091 = vmatprep.subr.mxu0 0.0
    %3092 = vmatpush1.msra.mxu0 0.0
    %3093 = vmatprep.subr.mxu0 0.0
    %3094 = vmatpush1.msra.mxu0 0.0
    %3095 = vmatprep.subr.mxu0 0.0
    %3096 = vmatpush1.msra.mxu0 0.0
    %3097 = vmatprep.subr.mxu0 0.0
    %3098 = vmatpush1.msra.mxu0 0.0
    %3099 = vmatprep.subr.mxu0 0.0
    %3100 = vmatpush1.msra.mxu0 0.0
    %3101 = vmatprep.subr.mxu0 0.0
    %3102 = vmatpush1.msra.mxu0 0.0
    %3103 = vmatprep.subr.mxu0 0.0
    %3104 = vmatpush1.msra.mxu0 0.0
    %3105 = vmatprep.subr.mxu0 0.0
    %3106 = vmatpush1.msra.mxu0 0.0
    %3107 = vmatprep.subr.mxu0 0.0
    %3108 = vmatpush1.msra.mxu0 0.0
    %3109 = vmatprep.subr.mxu0 0.0
    %3110 = vmatpush1.msra.mxu0 0.0
    %3111 = vmatprep.mubr.f32.mxu0 0.0
    %3112 = vmatmul.mubr.f32.gmra.mrb[0].mxu0 %v3045
    %v3113 = vpop.f32.mrb[0].mxu0
    %v3114 = vadd.f32 0.0, %v3113
    %v3115 = vpop.f32.mrb[0].mxu0
    %3116 = vdwg.mxu0
    %3117 = vrot.lane.b32.xlu0 %v2036, 64
    %v3118 = vpop.permute.xlu0 %3117
    %v3121 = vsel %vm47, %v2732, 0
    %3123 = vmatprep.subr.mxu0 0.0
    %3124 = vmatpush1.msra.mxu0 %v3118
    %3125 = vmatprep.subr.mxu0 0.0
    %3126 = vmatpush1.msra.mxu0 0.0
    %3127 = vmatprep.subr.mxu0 0.0
    %3128 = vmatpush1.msra.mxu0 0.0
    %3129 = vmatprep.subr.mxu0 0.0
    %3130 = vmatpush1.msra.mxu0 0.0
    %3131 = vmatprep.subr.mxu0 0.0
    %3132 = vmatpush1.msra.mxu0 0.0
    %3133 = vmatprep.subr.mxu0 0.0
    %3134 = vmatpush1.msra.mxu0 0.0
    %3135 = vmatprep.subr.mxu0 0.0
    %3136 = vmatpush1.msra.mxu0 0.0
    %3137 = vmatprep.subr.mxu0 0.0
    %3138 = vmatpush1.msra.mxu0 0.0
    %3139 = vmatprep.subr.mxu0 0.0
    %3140 = vmatpush1.msra.mxu0 0.0
    %3141 = vmatprep.subr.mxu0 0.0
    %3142 = vmatpush1.msra.mxu0 0.0
    %3143 = vmatprep.subr.mxu0 0.0
    %3144 = vmatpush1.msra.mxu0 0.0
    %3145 = vmatprep.subr.mxu0 0.0
    %3146 = vmatpush1.msra.mxu0 0.0
    %3147 = vmatprep.subr.mxu0 0.0
    %3148 = vmatpush1.msra.mxu0 0.0
    %3149 = vmatprep.subr.mxu0 0.0
    %3150 = vmatpush1.msra.mxu0 0.0
    %3151 = vmatprep.subr.mxu0 0.0
    %3152 = vmatpush1.msra.mxu0 0.0
    %3153 = vmatprep.subr.mxu0 0.0
    %3154 = vmatpush1.msra.mxu0 0.0
    %3155 = vmatprep.subr.mxu0 0.0
    %3156 = vmatpush1.msra.mxu0 0.0
    %3157 = vmatprep.subr.mxu0 0.0
    %3158 = vmatpush1.msra.mxu0 0.0
    %3159 = vmatprep.subr.mxu0 0.0
    %3160 = vmatpush1.msra.mxu0 0.0
    %3161 = vmatprep.subr.mxu0 0.0
    %3162 = vmatpush1.msra.mxu0 0.0
    %3163 = vmatprep.subr.mxu0 0.0
    %3164 = vmatpush1.msra.mxu0 0.0
    %3165 = vmatprep.subr.mxu0 0.0
    %3166 = vmatpush1.msra.mxu0 0.0
    %3167 = vmatprep.subr.mxu0 0.0
    %3168 = vmatpush1.msra.mxu0 0.0
    %3169 = vmatprep.subr.mxu0 0.0
    %3170 = vmatpush1.msra.mxu0 0.0
    %3171 = vmatprep.subr.mxu0 0.0
    %3172 = vmatpush1.msra.mxu0 0.0
    %3173 = vmatprep.subr.mxu0 0.0
    %3174 = vmatpush1.msra.mxu0 0.0
    %3175 = vmatprep.subr.mxu0 0.0
    %3176 = vmatpush1.msra.mxu0 0.0
    %3177 = vmatprep.subr.mxu0 0.0
    %3178 = vmatpush1.msra.mxu0 0.0
    %3179 = vmatprep.subr.mxu0 0.0
    %3180 = vmatpush1.msra.mxu0 0.0
    %3181 = vmatprep.subr.mxu0 0.0
    %3182 = vmatpush1.msra.mxu0 0.0
    %3183 = vmatprep.subr.mxu0 0.0
    %3184 = vmatpush1.msra.mxu0 0.0
    %3185 = vmatprep.subr.mxu0 0.0
    %3186 = vmatpush1.msra.mxu0 0.0
    %3187 = vmatprep.mubr.f32.mxu0 0.0
    %3188 = vmatmul.mubr.f32.gmra.mrb[0].mxu0 %v3121
    %v3189 = vpop.f32.mrb[0].mxu0
    %v3190 = vadd.f32 0.0, %v3189
    %v3191 = vpop.f32.mrb[0].mxu0
    %3192 = vdwg.mxu0
    %3193 = vrot.lane.b32.xlu0 %v2038, 64
    %v3194 = vpop.permute.xlu0 %3193
    %v3197 = vsel %vm47, %v2734, 0
    %3199 = vmatprep.subr.mxu0 0.0
    %3200 = vmatpush1.msra.mxu0 %v3194
    %3201 = vmatprep.subr.mxu0 0.0
    %3202 = vmatpush1.msra.mxu0 0.0
    %3203 = vmatprep.subr.mxu0 0.0
    %3204 = vmatpush1.msra.mxu0 0.0
    %3205 = vmatprep.subr.mxu0 0.0
    %3206 = vmatpush1.msra.mxu0 0.0
    %3207 = vmatprep.subr.mxu0 0.0
    %3208 = vmatpush1.msra.mxu0 0.0
    %3209 = vmatprep.subr.mxu0 0.0
    %3210 = vmatpush1.msra.mxu0 0.0
    %3211 = vmatprep.subr.mxu0 0.0
    %3212 = vmatpush1.msra.mxu0 0.0
    %3213 = vmatprep.subr.mxu0 0.0
    %3214 = vmatpush1.msra.mxu0 0.0
    %3215 = vmatprep.subr.mxu0 0.0
    %3216 = vmatpush1.msra.mxu0 0.0
    %3217 = vmatprep.subr.mxu0 0.0
    %3218 = vmatpush1.msra.mxu0 0.0
    %3219 = vmatprep.subr.mxu0 0.0
    %3220 = vmatpush1.msra.mxu0 0.0
    %3221 = vmatprep.subr.mxu0 0.0
    %3222 = vmatpush1.msra.mxu0 0.0
    %3223 = vmatprep.subr.mxu0 0.0
    %3224 = vmatpush1.msra.mxu0 0.0
    %3225 = vmatprep.subr.mxu0 0.0
    %3226 = vmatpush1.msra.mxu0 0.0
    %3227 = vmatprep.subr.mxu0 0.0
    %3228 = vmatpush1.msra.mxu0 0.0
    %3229 = vmatprep.subr.mxu0 0.0
    %3230 = vmatpush1.msra.mxu0 0.0
    %3231 = vmatprep.subr.mxu0 0.0
    %3232 = vmatpush1.msra.mxu0 0.0
    %3233 = vmatprep.subr.mxu0 0.0
    %3234 = vmatpush1.msra.mxu0 0.0
    %3235 = vmatprep.subr.mxu0 0.0
    %3236 = vmatpush1.msra.mxu0 0.0
    %3237 = vmatprep.subr.mxu0 0.0
    %3238 = vmatpush1.msra.mxu0 0.0
    %3239 = vmatprep.subr.mxu0 0.0
    %3240 = vmatpush1.msra.mxu0 0.0
    %3241 = vmatprep.subr.mxu0 0.0
    %3242 = vmatpush1.msra.mxu0 0.0
    %3243 = vmatprep.subr.mxu0 0.0
    %3244 = vmatpush1.msra.mxu0 0.0
    %3245 = vmatprep.subr.mxu0 0.0
    %3246 = vmatpush1.msra.mxu0 0.0
    %3247 = vmatprep.subr.mxu0 0.0
    %3248 = vmatpush1.msra.mxu0 0.0
    %3249 = vmatprep.subr.mxu0 0.0
    %3250 = vmatpush1.msra.mxu0 0.0
    %3251 = vmatprep.subr.mxu0 0.0
    %3252 = vmatpush1.msra.mxu0 0.0
    %3253 = vmatprep.subr.mxu0 0.0
    %3254 = vmatpush1.msra.mxu0 0.0
    %3255 = vmatprep.subr.mxu0 0.0
    %3256 = vmatpush1.msra.mxu0 0.0
    %3257 = vmatprep.subr.mxu0 0.0
    %3258 = vmatpush1.msra.mxu0 0.0
    %3259 = vmatprep.subr.mxu0 0.0
    %3260 = vmatpush1.msra.mxu0 0.0
    %3261 = vmatprep.subr.mxu0 0.0
    %3262 = vmatpush1.msra.mxu0 0.0
    %3263 = vmatprep.mubr.f32.mxu0 0.0
    %3264 = vmatmul.mubr.f32.gmra.mrb[0].mxu0 %v3197
    %v3265 = vpop.f32.mrb[0].mxu0
    %v3266 = vadd.f32 0.0, %v3265
    %v3267 = vpop.f32.mrb[0].mxu0
    %3268 = vdwg.mxu0
    %3269 = vrot.lane.b32.xlu0 %v2040, 64
    %v3270 = vpop.permute.xlu0 %3269
    %v3273 = vsel %vm47, %v2736, 0
    %3275 = vmatprep.subr.mxu0 0.0
    %3276 = vmatpush1.msra.mxu0 %v3270
    %3277 = vmatprep.subr.mxu0 0.0
    %3278 = vmatpush1.msra.mxu0 0.0
    %3279 = vmatprep.subr.mxu0 0.0
    %3280 = vmatpush1.msra.mxu0 0.0
    %3281 = vmatprep.subr.mxu0 0.0
    %3282 = vmatpush1.msra.mxu0 0.0
    %3283 = vmatprep.subr.mxu0 0.0
    %3284 = vmatpush1.msra.mxu0 0.0
    %3285 = vmatprep.subr.mxu0 0.0
    %3286 = vmatpush1.msra.mxu0 0.0
    %3287 = vmatprep.subr.mxu0 0.0
    %3288 = vmatpush1.msra.mxu0 0.0
    %3289 = vmatprep.subr.mxu0 0.0
    %3290 = vmatpush1.msra.mxu0 0.0
    %3291 = vmatprep.subr.mxu0 0.0
    %3292 = vmatpush1.msra.mxu0 0.0
    %3293 = vmatprep.subr.mxu0 0.0
    %3294 = vmatpush1.msra.mxu0 0.0
    %3295 = vmatprep.subr.mxu0 0.0
    %3296 = vmatpush1.msra.mxu0 0.0
    %3297 = vmatprep.subr.mxu0 0.0
    %3298 = vmatpush1.msra.mxu0 0.0
    %3299 = vmatprep.subr.mxu0 0.0
    %3300 = vmatpush1.msra.mxu0 0.0
    %3301 = vmatprep.subr.mxu0 0.0
    %3302 = vmatpush1.msra.mxu0 0.0
    %3303 = vmatprep.subr.mxu0 0.0
    %3304 = vmatpush1.msra.mxu0 0.0
    %3305 = vmatprep.subr.mxu0 0.0
    %3306 = vmatpush1.msra.mxu0 0.0
    %3307 = vmatprep.subr.mxu0 0.0
    %3308 = vmatpush1.msra.mxu0 0.0
    %3309 = vmatprep.subr.mxu0 0.0
    %3310 = vmatpush1.msra.mxu0 0.0
    %3311 = vmatprep.subr.mxu0 0.0
    %3312 = vmatpush1.msra.mxu0 0.0
    %3313 = vmatprep.subr.mxu0 0.0
    %3314 = vmatpush1.msra.mxu0 0.0
    %3315 = vmatprep.subr.mxu0 0.0
    %3316 = vmatpush1.msra.mxu0 0.0
    %3317 = vmatprep.subr.mxu0 0.0
    %3318 = vmatpush1.msra.mxu0 0.0
    %3319 = vmatprep.subr.mxu0 0.0
    %3320 = vmatpush1.msra.mxu0 0.0
    %3321 = vmatprep.subr.mxu0 0.0
    %3322 = vmatpush1.msra.mxu0 0.0
    %3323 = vmatprep.subr.mxu0 0.0
    %3324 = vmatpush1.msra.mxu0 0.0
    %3325 = vmatprep.subr.mxu0 0.0
    %3326 = vmatpush1.msra.mxu0 0.0
    %3327 = vmatprep.subr.mxu0 0.0
    %3328 = vmatpush1.msra.mxu0 0.0
    %3329 = vmatprep.subr.mxu0 0.0
    %3330 = vmatpush1.msra.mxu0 0.0
    %3331 = vmatprep.subr.mxu0 0.0
    %3332 = vmatpush1.msra.mxu0 0.0
    %3333 = vmatprep.subr.mxu0 0.0
    %3334 = vmatpush1.msra.mxu0 0.0
    %3335 = vmatprep.subr.mxu0 0.0
    %3336 = vmatpush1.msra.mxu0 0.0
    %3337 = vmatprep.subr.mxu0 0.0
    %3338 = vmatpush1.msra.mxu0 0.0
    %3339 = vmatprep.mubr.f32.mxu0 0.0
    %3340 = vmatmul.mubr.f32.gmra.mrb[0].mxu0 %v3273
    %v3341 = vpop.f32.mrb[0].mxu0
    %v3342 = vadd.f32 0.0, %v3341
    %v3343 = vpop.f32.mrb[0].mxu0
    %3344 = vdwg.mxu0
    %3347 = vrot.lane.b32.xlu0 %v2962, 8
    %v3348 = vpop.permute.xlu0 %3347
    %3349 = vrot.lane.b32.xlu0 %v3038, 8
    %v3350 = vpop.permute.xlu0 %3349
    %3355 = vrot.lane.b32.xlu0 %v3114, 16
    %v3356 = vpop.permute.xlu0 %3355
    %3357 = vrot.lane.b32.xlu0 %v3190, 16
    %v3358 = vpop.permute.xlu0 %3357
    %3363 = vrot.lane.b32.xlu0 %v3266, 24
    %v3364 = vpop.permute.xlu0 %3363
    %3365 = vrot.lane.b32.xlu0 %v3342, 24
    %v3366 = vpop.permute.xlu0 %3365
    %v3369 = vsel %vm47, %v2810, %v3348
    %v3370 = vsel %vm47, %v2886, %v3350
    %v3371 = vsel %vm1568, %v3369, %v3356
    %v3372 = vsel %vm1568, %v3370, %v3358
    %v3373 = vsel %vm1571, %v3371, %v3364
    %v3374 = vsel %vm1571, %v3372, %v3366
    %v3375 = vld [vmem:[#allocation4 + $0x168] sm:$0xff]
    %v3376 = vld [vmem:[#allocation4 + $0x170] sm:$0xff]
    %v3377 = vld [vmem:[#allocation4 + $0x178] sm:$0xff]
    %v3378 = vld [vmem:[#allocation4 + $0x180] sm:$0xff]
    %v3379 = vld [vmem:[#allocation4 + $0x188] sm:$0x1]
    %v3380 = vlaneseq
    %v3381 = vshrl.u32 %v3380, 7
    %v3382 = vsub.s32 0, %v3381
    %v3383 = vrot.slane %v3379, %v3382
    %v3385 = vsel %vm142, %v3373, 0
    %v3388 = vsel %vm142, %v3374, 0
    %3390 = vmatprep.subr.mxu0 0.0
    %3391 = vmatpush1.msra.mxu0 %v3375
    %3392 = vmatprep.subr.mxu0 0.0
    %3393 = vmatpush1.msra.mxu0 %v3376
    %3394 = vmatprep.subr.mxu0 0.0
    %3395 = vmatpush1.msra.mxu0 %v3377
    %3396 = vmatprep.subr.mxu0 0.0
    %3397 = vmatpush1.msra.mxu0 %v3378
    %3398 = vmatprep.subr.mxu0 0.0
    %3399 = vmatpush1.msra.mxu0 0.0
    %3400 = vmatprep.subr.mxu0 0.0
    %3401 = vmatpush1.msra.mxu0 0.0
    %3402 = vmatprep.subr.mxu0 0.0
    %3403 = vmatpush1.msra.mxu0 0.0
    %3404 = vmatprep.subr.mxu0 0.0
    %3405 = vmatpush1.msra.mxu0 0.0
    %3406 = vmatprep.subr.mxu0 0.0
    %3407 = vmatpush1.msra.mxu0 0.0
    %3408 = vmatprep.subr.mxu0 0.0
    %3409 = vmatpush1.msra.mxu0 0.0
    %3410 = vmatprep.subr.mxu0 0.0
    %3411 = vmatpush1.msra.mxu0 0.0
    %3412 = vmatprep.subr.mxu0 0.0
    %3413 = vmatpush1.msra.mxu0 0.0
    %3414 = vmatprep.subr.mxu0 0.0
    %3415 = vmatpush1.msra.mxu0 0.0
    %3416 = vmatprep.subr.mxu0 0.0
    %3417 = vmatpush1.msra.mxu0 0.0
    %3418 = vmatprep.subr.mxu0 0.0
    %3419 = vmatpush1.msra.mxu0 0.0
    %3420 = vmatprep.subr.mxu0 0.0
    %3421 = vmatpush1.msra.mxu0 0.0
    %3422 = vmatprep.subr.mxu0 0.0
    %3423 = vmatpush1.msra.mxu0 0.0
    %3424 = vmatprep.subr.mxu0 0.0
    %3425 = vmatpush1.msra.mxu0 0.0
    %3426 = vmatprep.subr.mxu0 0.0
    %3427 = vmatpush1.msra.mxu0 0.0
    %3428 = vmatprep.subr.mxu0 0.0
    %3429 = vmatpush1.msra.mxu0 0.0
    %3430 = vmatprep.subr.mxu0 0.0
    %3431 = vmatpush1.msra.mxu0 0.0
    %3432 = vmatprep.subr.mxu0 0.0
    %3433 = vmatpush1.msra.mxu0 0.0
    %3434 = vmatprep.subr.mxu0 0.0
    %3435 = vmatpush1.msra.mxu0 0.0
    %3436 = vmatprep.subr.mxu0 0.0
    %3437 = vmatpush1.msra.mxu0 0.0
    %3438 = vmatprep.subr.mxu0 0.0
    %3439 = vmatpush1.msra.mxu0 0.0
    %3440 = vmatprep.subr.mxu0 0.0
    %3441 = vmatpush1.msra.mxu0 0.0
    %3442 = vmatprep.subr.mxu0 0.0
    %3443 = vmatpush1.msra.mxu0 0.0
    %3444 = vmatprep.subr.mxu0 0.0
    %3445 = vmatpush1.msra.mxu0 0.0
    %3446 = vmatprep.subr.mxu0 0.0
    %3447 = vmatpush1.msra.mxu0 0.0
    %3448 = vmatprep.subr.mxu0 0.0
    %3449 = vmatpush1.msra.mxu0 0.0
    %3450 = vmatprep.subr.mxu0 0.0
    %3451 = vmatpush1.msra.mxu0 0.0
    %3452 = vmatprep.subr.mxu0 0.0
    %3453 = vmatpush1.msra.mxu0 0.0
    %3454 = vmatprep.mubr.f32.mxu0 0.0
    %3455 = vmatmul.mubr.f32.gmra.mrb[0].mxu0 %v3385
    %v3456 = vpop.f32.mrb[0].mxu0
    %v3457 = vadd.f32 %v3383, %v3456
    %v3458 = vpop.f32.mrb[0].mxu0
    %3459 = vmatprep.mubr.f32.mxu0 0.0
    %3460 = vmatmul.mubr.f32.gmra.mrb[0].mxu0 %v3388
    %v3461 = vpop.f32.mrb[0].mxu0
    %v3462 = vadd.f32 %v3383, %v3461
    %v3463 = vpop.f32.mrb[0].mxu0
    %3464 = vdwg.mxu0
    %v3465 = vadd.f32 %v1935, %v3457
    %v3466 = vadd.f32 %v1936, %v3462
    %v3467 = vld [vmem:[#allocation4 + $0x190] sm:$0x1]
    %v3468 = vld [vmem:[#allocation4 + $0x198] sm:$0x1]
    %v3469 = vsel %vm142, %v3465, 0.0
    %3470 = vadd.xlane.f32.xlu0 %v3469
    %v3471 = vpop.xlane.xlu0 %3470
    %v3472 = vsel %vm142, %v3466, 0.0
    %3473 = vadd.xlane.f32.xlu0 %v3472
    %v3474 = vpop.xlane.xlu0 %3473
    %v3475 = vmul.f32 %v3471, %v1674
    %v3476 = vmul.f32 %v3474, %v1674
    %v3477 = vsub.f32 %v3465, %v3475
    %v3478 = vsub.f32 %v3466, %v3476
    %v3479 = vmul.f32 %v3477, %v3477
    %v3480 = vmul.f32 %v3478, %v3478
    %v3481 = vsel %vm142, %v3479, 0.0
    %3482 = vadd.xlane.f32.xlu0 %v3481
    %v3483 = vpop.xlane.xlu0 %3482
    %v3484 = vsel %vm142, %v3480, 0.0
    %3485 = vadd.xlane.f32.xlu0 %v3484
    %v3486 = vpop.xlane.xlu0 %3485
    %v3487 = vmul.f32 %v3483, %v1674
    %v3488 = vmul.f32 %v3486, %v1674
    %v3489 = vadd.f32 %v3487, 1e-05
    %v3490 = vadd.f32 %v3488, 1e-05
    %v3491 = vrsqrt.pop %v3489
    %v3492 = vrsqrt.pop %v3490
    %v3493 = vmul.f32 %v3477, %v3491
    %v3494 = vmul.f32 %v3478, %v3492
    %v3495 = vlaneseq
    %v3496 = vshrl.u32 %v3495, 7
    %v3497 = vsub.s32 0, %v3496
    %v3498 = vrot.slane %v3467, %v3497
    %v3499 = vmul.f32 %v3493, %v3498
    %v3500 = vmul.f32 %v3494, %v3498
    %v3501 = vlaneseq
    %v3502 = vshrl.u32 %v3501, 7
    %v3503 = vsub.s32 0, %v3502
    %v3504 = vrot.slane %v3468, %v3503
    %v3505 = vadd.f32 %v3499, %v3504
    %v3506 = vadd.f32 %v3500, %v3504
    %v3507 = vld [vmem:[#allocation4 + $0x1a0] sm:$0xff]
    %v3508 = vld [vmem:[#allocation4 + $0x1a8] sm:$0xff]
    %v3509 = vld [vmem:[#allocation4 + $0x1b0] sm:$0xff]
    %v3510 = vld [vmem:[#allocation4 + $0x1b8] sm:$0xff]
    %v3511 = vld [vmem:[#allocation4 + $0x1c0] sm:$0x1]
    %v3512 = vlaneseq
    %v3513 = vshrl.u32 %v3512, 7
    %v3514 = vsub.s32 0, %v3513
    %v3515 = vrot.slane %v3511, %v3514
    %v3517 = vsel %vm142, %v3505, 0
    %v3520 = vsel %vm142, %v3506, 0
    %3522 = vmatprep.subr.mxu0 0.0
    %3523 = vmatpush1.msra.mxu0 %v3507
    %3524 = vmatprep.subr.mxu0 0.0
    %3525 = vmatpush1.msra.mxu0 %v3508
    %3526 = vmatprep.subr.mxu0 0.0
    %3527 = vmatpush1.msra.mxu0 %v3509
    %3528 = vmatprep.subr.mxu0 0.0
    %3529 = vmatpush1.msra.mxu0 %v3510
    %3530 = vmatprep.subr.mxu0 0.0
    %3531 = vmatpush1.msra.mxu0 0.0
    %3532 = vmatprep.subr.mxu0 0.0
    %3533 = vmatpush1.msra.mxu0 0.0
    %3534 = vmatprep.subr.mxu0 0.0
    %3535 = vmatpush1.msra.mxu0 0.0
    %3536 = vmatprep.subr.mxu0 0.0
    %3537 = vmatpush1.msra.mxu0 0.0
    %3538 = vmatprep.subr.mxu0 0.0
    %3539 = vmatpush1.msra.mxu0 0.0
    %3540 = vmatprep.subr.mxu0 0.0
    %3541 = vmatpush1.msra.mxu0 0.0
    %3542 = vmatprep.subr.mxu0 0.0
    %3543 = vmatpush1.msra.mxu0 0.0
    %3544 = vmatprep.subr.mxu0 0.0
    %3545 = vmatpush1.msra.mxu0 0.0
    %3546 = vmatprep.subr.mxu0 0.0
    %3547 = vmatpush1.msra.mxu0 0.0
    %3548 = vmatprep.subr.mxu0 0.0
    %3549 = vmatpush1.msra.mxu0 0.0
    %3550 = vmatprep.subr.mxu0 0.0
    %3551 = vmatpush1.msra.mxu0 0.0
    %3552 = vmatprep.subr.mxu0 0.0
    %3553 = vmatpush1.msra.mxu0 0.0
    %3554 = vmatprep.subr.mxu0 0.0
    %3555 = vmatpush1.msra.mxu0 0.0
    %3556 = vmatprep.subr.mxu0 0.0
    %3557 = vmatpush1.msra.mxu0 0.0
    %3558 = vmatprep.subr.mxu0 0.0
    %3559 = vmatpush1.msra.mxu0 0.0
    %3560 = vmatprep.subr.mxu0 0.0
    %3561 = vmatpush1.msra.mxu0 0.0
    %3562 = vmatprep.subr.mxu0 0.0
    %3563 = vmatpush1.msra.mxu0 0.0
    %3564 = vmatprep.subr.mxu0 0.0
    %3565 = vmatpush1.msra.mxu0 0.0
    %3566 = vmatprep.subr.mxu0 0.0
    %3567 = vmatpush1.msra.mxu0 0.0
    %3568 = vmatprep.subr.mxu0 0.0
    %3569 = vmatpush1.msra.mxu0 0.0
    %3570 = vmatprep.subr.mxu0 0.0
    %3571 = vmatpush1.msra.mxu0 0.0
    %3572 = vmatprep.subr.mxu0 0.0
    %3573 = vmatpush1.msra.mxu0 0.0
    %3574 = vmatprep.subr.mxu0 0.0
    %3575 = vmatpush1.msra.mxu0 0.0
    %3576 = vmatprep.subr.mxu0 0.0
    %3577 = vmatpush1.msra.mxu0 0.0
    %3578 = vmatprep.subr.mxu0 0.0
    %3579 = vmatpush1.msra.mxu0 0.0
    %3580 = vmatprep.subr.mxu0 0.0
    %3581 = vmatpush1.msra.mxu0 0.0
    %3582 = vmatprep.subr.mxu0 0.0
    %3583 = vmatpush1.msra.mxu0 0.0
    %3584 = vmatprep.subr.mxu0 0.0
    %3585 = vmatpush1.msra.mxu0 0.0
    %3586 = vmatprep.mubr.f32.mxu0 0.0
    %3587 = vmatmul.mubr.f32.gmra.mrb[0].mxu0 %v3517
    %v3588 = vpop.f32.mrb[0].mxu0
    %v3589 = vadd.f32 %v3515, %v3588
    %v3590 = vpop.f32.mrb[0].mxu0
    %3591 = vmatprep.mubr.f32.mxu0 0.0
    %3592 = vmatmul.mubr.f32.gmra.mrb[0].mxu0 %v3520
    %v3593 = vpop.f32.mrb[0].mxu0
    %v3594 = vadd.f32 %v3515, %v3593
    %v3595 = vpop.f32.mrb[0].mxu0
    %3596 = vdwg.mxu0
    %v3597 = vmax.f32 %v3589, 0.0
    %v3598 = vmax.f32 %v3594, 0.0
    %v3599 = vld [vmem:[#allocation4 + $0x1c8] sm:$0xff]
    %v3600 = vld [vmem:[#allocation4 + $0x1d0] sm:$0xff]
    %v3601 = vld [vmem:[#allocation4 + $0x1d8] sm:$0xff]
    %v3602 = vld [vmem:[#allocation4 + $0x1e0] sm:$0xff]
    %v3603 = vld [vmem:[#allocation4 + $0x1e8] sm:$0xff]
    %v3604 = vld [vmem:[#allocation4 + $0x1f0] sm:$0xff]
    %v3605 = vld [vmem:[#allocation4 + $0x1f8] sm:$0xff]
    %v3606 = vld [vmem:[#allocation4 + $0x200] sm:$0xff]
    %v3607 = vld [vmem:[#allocation4 + $0x208] sm:$0xff]
    %v3608 = vld [vmem:[#allocation4 + $0x210] sm:$0xff]
    %v3609 = vld [vmem:[#allocation4 + $0x218] sm:$0xff]
    %v3610 = vld [vmem:[#allocation4 + $0x220] sm:$0xff]
    %v3611 = vld [vmem:[#allocation4 + $0x228] sm:$0xff]
    %v3612 = vld [vmem:[#allocation4 + $0x230] sm:$0xff]
    %v3613 = vld [vmem:[#allocation4 + $0x238] sm:$0xff]
    %v3614 = vld [vmem:[#allocation4 + $0x240] sm:$0xff]
    %v3615 = vld [vmem:[#allocation4 + $0x248] sm:$0x1]
    %v3616 = vlaneseq
    %v3617 = vshrl.u32 %v3616, 7
    %v3618 = vsub.s32 0, %v3617
    %v3619 = vrot.slane %v3615, %v3618
    %3620 = vmatprep.subr.mxu0 0.0
    %3621 = vmatpush1.msra.mxu0 %v3599
    %3622 = vmatprep.subr.mxu0 0.0
    %3623 = vmatpush1.msra.mxu0 %v3600
    %3624 = vmatprep.subr.mxu0 0.0
    %3625 = vmatpush1.msra.mxu0 %v3601
    %3626 = vmatprep.subr.mxu0 0.0
    %3627 = vmatpush1.msra.mxu0 %v3602
    %3628 = vmatprep.subr.mxu0 0.0
    %3629 = vmatpush1.msra.mxu0 %v3603
    %3630 = vmatprep.subr.mxu0 0.0
    %3631 = vmatpush1.msra.mxu0 %v3604
    %3632 = vmatprep.subr.mxu0 0.0
    %3633 = vmatpush1.msra.mxu0 %v3605
    %3634 = vmatprep.subr.mxu0 0.0
    %3635 = vmatpush1.msra.mxu0 %v3606
    %3636 = vmatprep.subr.mxu0 0.0
    %3637 = vmatpush1.msra.mxu0 %v3607
    %3638 = vmatprep.subr.mxu0 0.0
    %3639 = vmatpush1.msra.mxu0 %v3608
    %3640 = vmatprep.subr.mxu0 0.0
    %3641 = vmatpush1.msra.mxu0 %v3609
    %3642 = vmatprep.subr.mxu0 0.0
    %3643 = vmatpush1.msra.mxu0 %v3610
    %3644 = vmatprep.subr.mxu0 0.0
    %3645 = vmatpush1.msra.mxu0 %v3611
    %3646 = vmatprep.subr.mxu0 0.0
    %3647 = vmatpush1.msra.mxu0 %v3612
    %3648 = vmatprep.subr.mxu0 0.0
    %3649 = vmatpush1.msra.mxu0 %v3613
    %3650 = vmatprep.subr.mxu0 0.0
    %3651 = vmatpush1.msra.mxu0 %v3614
    %3652 = vmatprep.subr.mxu0 0.0
    %3653 = vmatpush1.msra.mxu0 0.0
    %3654 = vmatprep.subr.mxu0 0.0
    %3655 = vmatpush1.msra.mxu0 0.0
    %3656 = vmatprep.subr.mxu0 0.0
    %3657 = vmatpush1.msra.mxu0 0.0
    %3658 = vmatprep.subr.mxu0 0.0
    %3659 = vmatpush1.msra.mxu0 0.0
    %3660 = vmatprep.subr.mxu0 0.0
    %3661 = vmatpush1.msra.mxu0 0.0
    %3662 = vmatprep.subr.mxu0 0.0
    %3663 = vmatpush1.msra.mxu0 0.0
    %3664 = vmatprep.subr.mxu0 0.0
    %3665 = vmatpush1.msra.mxu0 0.0
    %3666 = vmatprep.subr.mxu0 0.0
    %3667 = vmatpush1.msra.mxu0 0.0
    %3668 = vmatprep.subr.mxu0 0.0
    %3669 = vmatpush1.msra.mxu0 0.0
    %3670 = vmatprep.subr.mxu0 0.0
    %3671 = vmatpush1.msra.mxu0 0.0
    %3672 = vmatprep.subr.mxu0 0.0
    %3673 = vmatpush1.msra.mxu0 0.0
    %3674 = vmatprep.subr.mxu0 0.0
    %3675 = vmatpush1.msra.mxu0 0.0
    %3676 = vmatprep.subr.mxu0 0.0
    %3677 = vmatpush1.msra.mxu0 0.0
    %3678 = vmatprep.subr.mxu0 0.0
    %3679 = vmatpush1.msra.mxu0 0.0
    %3680 = vmatprep.subr.mxu0 0.0
    %3681 = vmatpush1.msra.mxu0 0.0
    %3682 = vmatprep.subr.mxu0 0.0
    %3683 = vmatpush1.msra.mxu0 0.0
    %3684 = vmatprep.mubr.f32.mxu0 0.0
    %3685 = vmatmul.mubr.f32.gmra.mrb[0].mxu0 %v3597
    %v3686 = vpop.f32.mrb[0].mxu0
    %v3687 = vadd.f32 %v3619, %v3686
    %v3688 = vpop.f32.mrb[0].mxu0
    %3689 = vmatprep.mubr.f32.mxu0 0.0
    %3690 = vmatmul.mubr.f32.gmra.mrb[0].mxu0 %v3598
    %v3691 = vpop.f32.mrb[0].mxu0
    %v3692 = vadd.f32 %v3619, %v3691
    %v3693 = vpop.f32.mrb[0].mxu0
    %3694 = vdwg.mxu0
    %v3695 = vadd.f32 %v3505, %v3687
    %v3696 = vadd.f32 %v3506, %v3692
    %v3697 = vld [vmem:[#allocation4 + $0x250] sm:$0x1]
    %v3698 = vld [vmem:[#allocation4 + $0x258] sm:$0x1]
    %v3699 = vsel %vm142, %v3695, 0.0
    %3700 = vadd.xlane.f32.xlu0 %v3699
    %v3701 = vpop.xlane.xlu0 %3700
    %v3702 = vsel %vm142, %v3696, 0.0
    %3703 = vadd.xlane.f32.xlu0 %v3702
    %v3704 = vpop.xlane.xlu0 %3703
    %v3705 = vmul.f32 %v3701, %v1674
    %v3706 = vmul.f32 %v3704, %v1674
    %v3707 = vsub.f32 %v3695, %v3705
    %v3708 = vsub.f32 %v3696, %v3706
    %v3709 = vmul.f32 %v3707, %v3707
    %v3710 = vmul.f32 %v3708, %v3708
    %v3711 = vsel %vm142, %v3709, 0.0
    %3712 = vadd.xlane.f32.xlu0 %v3711
    %v3713 = vpop.xlane.xlu0 %3712
    %v3714 = vsel %vm142, %v3710, 0.0
    %3715 = vadd.xlane.f32.xlu0 %v3714
    %v3716 = vpop.xlane.xlu0 %3715
    %v3717 = vmul.f32 %v3713, %v1674
    %v3718 = vmul.f32 %v3716, %v1674
    %v3719 = vadd.f32 %v3717, 1e-05
    %v3720 = vadd.f32 %v3718, 1e-05
    %v3721 = vrsqrt.pop %v3719
    %v3722 = vrsqrt.pop %v3720
    %v3723 = vmul.f32 %v3707, %v3721
    %v3724 = vmul.f32 %v3708, %v3722
    %v3725 = vlaneseq
    %v3726 = vshrl.u32 %v3725, 7
    %v3727 = vsub.s32 0, %v3726
    %v3728 = vrot.slane %v3697, %v3727
    %v3729 = vmul.f32 %v3723, %v3728
    %v3730 = vmul.f32 %v3724, %v3728
    %v3731 = vlaneseq
    %v3732 = vshrl.u32 %v3731, 7
    %v3733 = vsub.s32 0, %v3732
    %v3734 = vrot.slane %v3698, %v3733
    %v3735 = vadd.f32 %v3729, %v3734
    %v3736 = vadd.f32 %v3730, %v3734
    %v3737 = vld [vmem:[#allocation4 + $0x260] sm:$0x1]
    %v3738 = vld [vmem:[#allocation4 + $0x268] sm:$0x1]
    %v3739 = vsel %vm142, %v3735, 0.0
    %3740 = vadd.xlane.f32.xlu0 %v3739
    %v3741 = vpop.xlane.xlu0 %3740
    %v3742 = vsel %vm142, %v3736, 0.0
    %3743 = vadd.xlane.f32.xlu0 %v3742
    %v3744 = vpop.xlane.xlu0 %3743
    %v3745 = vmul.f32 %v3741, %v1674
    %v3746 = vmul.f32 %v3744, %v1674
    %v3747 = vsub.f32 %v3735, %v3745
    %v3748 = vsub.f32 %v3736, %v3746
    %v3749 = vmul.f32 %v3747, %v3747
    %v3750 = vmul.f32 %v3748, %v3748
    %v3751 = vsel %vm142, %v3749, 0.0
    %3752 = vadd.xlane.f32.xlu0 %v3751
    %v3753 = vpop.xlane.xlu0 %3752
    %v3754 = vsel %vm142, %v3750, 0.0
    %3755 = vadd.xlane.f32.xlu0 %v3754
    %v3756 = vpop.xlane.xlu0 %3755
    %v3757 = vmul.f32 %v3753, %v1674
    %v3758 = vmul.f32 %v3756, %v1674
    %v3759 = vadd.f32 %v3757, 1e-05
    %v3760 = vadd.f32 %v3758, 1e-05
    %v3761 = vrsqrt.pop %v3759
    %v3762 = vrsqrt.pop %v3760
    %v3763 = vmul.f32 %v3747, %v3761
    %v3764 = vmul.f32 %v3748, %v3762
    %v3765 = vlaneseq
    %v3766 = vshrl.u32 %v3765, 7
    %v3767 = vsub.s32 0, %v3766
    %v3768 = vrot.slane %v3737, %v3767
    %v3769 = vmul.f32 %v3763, %v3768
    %v3770 = vmul.f32 %v3764, %v3768
    %v3771 = vlaneseq
    %v3772 = vshrl.u32 %v3771, 7
    %v3773 = vsub.s32 0, %v3772
    %v3774 = vrot.slane %v3738, %v3773
    %v3775 = vadd.f32 %v3769, %v3774
    %v3776 = vadd.f32 %v3770, %v3774
    %v3777 = vld [vmem:[#allocation4 + $0x270] sm:$0xff]
    %v3778 = vld [vmem:[#allocation4 + $0x278] sm:$0xff]
    %v3779 = vld [vmem:[#allocation4 + $0x280] sm:$0xff]
    %v3780 = vld [vmem:[#allocation4 + $0x288] sm:$0xff]
    %v3781 = vld [vmem:[#allocation4 + $0x290] sm:$0x1]
    %v3782 = vlaneseq
    %v3783 = vshrl.u32 %v3782, 7
    %v3784 = vsub.s32 0, %v3783
    %v3785 = vrot.slane %v3781, %v3784
    %v3787 = vsel %vm142, %v3775, 0
    %v3790 = vsel %vm142, %v3776, 0
    %3792 = vmatprep.subr.mxu0 0.0
    %3793 = vmatpush1.msra.mxu0 %v3777
    %3794 = vmatprep.subr.mxu0 0.0
    %3795 = vmatpush1.msra.mxu0 %v3778
    %3796 = vmatprep.subr.mxu0 0.0
    %3797 = vmatpush1.msra.mxu0 %v3779
    %3798 = vmatprep.subr.mxu0 0.0
    %3799 = vmatpush1.msra.mxu0 %v3780
    %3800 = vmatprep.subr.mxu0 0.0
    %3801 = vmatpush1.msra.mxu0 0.0
    %3802 = vmatprep.subr.mxu0 0.0
    %3803 = vmatpush1.msra.mxu0 0.0
    %3804 = vmatprep.subr.mxu0 0.0
    %3805 = vmatpush1.msra.mxu0 0.0
    %3806 = vmatprep.subr.mxu0 0.0
    %3807 = vmatpush1.msra.mxu0 0.0
    %3808 = vmatprep.subr.mxu0 0.0
    %3809 = vmatpush1.msra.mxu0 0.0
    %3810 = vmatprep.subr.mxu0 0.0
    %3811 = vmatpush1.msra.mxu0 0.0
    %3812 = vmatprep.subr.mxu0 0.0
    %3813 = vmatpush1.msra.mxu0 0.0
    %3814 = vmatprep.subr.mxu0 0.0
    %3815 = vmatpush1.msra.mxu0 0.0
    %3816 = vmatprep.subr.mxu0 0.0
    %3817 = vmatpush1.msra.mxu0 0.0
    %3818 = vmatprep.subr.mxu0 0.0
    %3819 = vmatpush1.msra.mxu0 0.0
    %3820 = vmatprep.subr.mxu0 0.0
    %3821 = vmatpush1.msra.mxu0 0.0
    %3822 = vmatprep.subr.mxu0 0.0
    %3823 = vmatpush1.msra.mxu0 0.0
    %3824 = vmatprep.subr.mxu0 0.0
    %3825 = vmatpush1.msra.mxu0 0.0
    %3826 = vmatprep.subr.mxu0 0.0
    %3827 = vmatpush1.msra.mxu0 0.0
    %3828 = vmatprep.subr.mxu0 0.0
    %3829 = vmatpush1.msra.mxu0 0.0
    %3830 = vmatprep.subr.mxu0 0.0
    %3831 = vmatpush1.msra.mxu0 0.0
    %3832 = vmatprep.subr.mxu0 0.0
    %3833 = vmatpush1.msra.mxu0 0.0
    %3834 = vmatprep.subr.mxu0 0.0
    %3835 = vmatpush1.msra.mxu0 0.0
    %3836 = vmatprep.subr.mxu0 0.0
    %3837 = vmatpush1.msra.mxu0 0.0
    %3838 = vmatprep.subr.mxu0 0.0
    %3839 = vmatpush1.msra.mxu0 0.0
    %3840 = vmatprep.subr.mxu0 0.0
    %3841 = vmatpush1.msra.mxu0 0.0
    %3842 = vmatprep.subr.mxu0 0.0
    %3843 = vmatpush1.msra.mxu0 0.0
    %3844 = vmatprep.subr.mxu0 0.0
    %3845 = vmatpush1.msra.mxu0 0.0
    %3846 = vmatprep.subr.mxu0 0.0
    %3847 = vmatpush1.msra.mxu0 0.0
    %3848 = vmatprep.subr.mxu0 0.0
    %3849 = vmatpush1.msra.mxu0 0.0
    %3850 = vmatprep.subr.mxu0 0.0
    %3851 = vmatpush1.msra.mxu0 0.0
    %3852 = vmatprep.subr.mxu0 0.0
    %3853 = vmatpush1.msra.mxu0 0.0
    %3854 = vmatprep.subr.mxu0 0.0
    %3855 = vmatpush1.msra.mxu0 0.0
    %3856 = vmatprep.mubr.f32.mxu0 0.0
    %3857 = vmatmul.mubr.f32.gmra.mrb[0].mxu0 %v3787
    %v3858 = vpop.f32.mrb[0].mxu0
    %v3859 = vadd.f32 %v3785, %v3858
    %v3860 = vpop.f32.mrb[0].mxu0
    %3861 = vmatprep.mubr.f32.mxu0 0.0
    %3862 = vmatmul.mubr.f32.gmra.mrb[0].mxu0 %v3790
    %v3863 = vpop.f32.mrb[0].mxu0
    %v3864 = vadd.f32 %v3785, %v3863
    %v3865 = vpop.f32.mrb[0].mxu0
    %3866 = vdwg.mxu0
    %v3867 = vmax.f32 %v3859, 0.0
    %v3868 = vmax.f32 %v3864, 0.0
    %v3869 = vld [vmem:[#allocation4 + $0x298] sm:$0xff]
    %v3870 = vld [vmem:[#allocation4 + $0x2a0] sm:$0xff]
    %v3871 = vld [vmem:[#allocation4 + $0x2a8] sm:$0x1]
    %v3872 = vlaneseq
    %v3873 = vshrl.u32 %v3872, 7
    %v3874 = vsub.s32 0, %v3873
    %v3875 = vrot.slane %v3871, %v3874
    %v3877 = vsel %vm1568, %v3867, 0
    %v3880 = vsel %vm1568, %v3868, 0
    %3882 = vmatprep.subr.mxu0 0.0
    %3883 = vmatpush1.msra.mxu0 %v3869
    %3884 = vmatprep.subr.mxu0 0.0
    %3885 = vmatpush1.msra.mxu0 %v3870
    %3886 = vmatprep.subr.mxu0 0.0
    %3887 = vmatpush1.msra.mxu0 0.0
    %3888 = vmatprep.subr.mxu0 0.0
    %3889 = vmatpush1.msra.mxu0 0.0
    %3890 = vmatprep.subr.mxu0 0.0
    %3891 = vmatpush1.msra.mxu0 0.0
    %3892 = vmatprep.subr.mxu0 0.0
    %3893 = vmatpush1.msra.mxu0 0.0
    %3894 = vmatprep.subr.mxu0 0.0
    %3895 = vmatpush1.msra.mxu0 0.0
    %3896 = vmatprep.subr.mxu0 0.0
    %3897 = vmatpush1.msra.mxu0 0.0
    %3898 = vmatprep.subr.mxu0 0.0
    %3899 = vmatpush1.msra.mxu0 0.0
    %3900 = vmatprep.subr.mxu0 0.0
    %3901 = vmatpush1.msra.mxu0 0.0
    %3902 = vmatprep.subr.mxu0 0.0
    %3903 = vmatpush1.msra.mxu0 0.0
    %3904 = vmatprep.subr.mxu0 0.0
    %3905 = vmatpush1.msra.mxu0 0.0
    %3906 = vmatprep.subr.mxu0 0.0
    %3907 = vmatpush1.msra.mxu0 0.0
    %3908 = vmatprep.subr.mxu0 0.0
    %3909 = vmatpush1.msra.mxu0 0.0
    %3910 = vmatprep.subr.mxu0 0.0
    %3911 = vmatpush1.msra.mxu0 0.0
    %3912 = vmatprep.subr.mxu0 0.0
    %3913 = vmatpush1.msra.mxu0 0.0
    %3914 = vmatprep.subr.mxu0 0.0
    %3915 = vmatpush1.msra.mxu0 0.0
    %3916 = vmatprep.subr.mxu0 0.0
    %3917 = vmatpush1.msra.mxu0 0.0
    %3918 = vmatprep.subr.mxu0 0.0
    %3919 = vmatpush1.msra.mxu0 0.0
    %3920 = vmatprep.subr.mxu0 0.0
    %3921 = vmatpush1.msra.mxu0 0.0
    %3922 = vmatprep.subr.mxu0 0.0
    %3923 = vmatpush1.msra.mxu0 0.0
    %3924 = vmatprep.subr.mxu0 0.0
    %3925 = vmatpush1.msra.mxu0 0.0
    %3926 = vmatprep.subr.mxu0 0.0
    %3927 = vmatpush1.msra.mxu0 0.0
    %3928 = vmatprep.subr.mxu0 0.0
    %3929 = vmatpush1.msra.mxu0 0.0
    %3930 = vmatprep.subr.mxu0 0.0
    %3931 = vmatpush1.msra.mxu0 0.0
    %3932 = vmatprep.subr.mxu0 0.0
    %3933 = vmatpush1.msra.mxu0 0.0
    %3934 = vmatprep.subr.mxu0 0.0
    %3935 = vmatpush1.msra.mxu0 0.0
    %3936 = vmatprep.subr.mxu0 0.0
    %3937 = vmatpush1.msra.mxu0 0.0
    %3938 = vmatprep.subr.mxu0 0.0
    %3939 = vmatpush1.msra.mxu0 0.0
    %3940 = vmatprep.subr.mxu0 0.0
    %3941 = vmatpush1.msra.mxu0 0.0
    %3942 = vmatprep.subr.mxu0 0.0
    %3943 = vmatpush1.msra.mxu0 0.0
    %3944 = vmatprep.subr.mxu0 0.0
    %3945 = vmatpush1.msra.mxu0 0.0
    %3946 = vmatprep.mubr.f32.mxu0 0.0
    %3947 = vmatmul.mubr.f32.gmra.mrb[0].mxu0 %v3877
    %v3948 = vpop.f32.mrb[0].mxu0
    %v3949 = vadd.f32 %v3875, %v3948
    %v3950 = vpop.f32.mrb[0].mxu0
    %3951 = vmatprep.mubr.f32.mxu0 0.0
    %3952 = vmatmul.mubr.f32.gmra.mrb[0].mxu0 %v3880
    %v3953 = vpop.f32.mrb[0].mxu0
    %v3954 = vadd.f32 %v3875, %v3953
    %v3955 = vpop.f32.mrb[0].mxu0
    %3956 = vdwg.mxu0
    %vm3957 = vcmask 7168
    %v3958 = vsel %vm3957, %v3949, -inf
    %v3959 = vrot.slane %v3958, 4
    %v3960 = vmax.f32 %v3958, %v3959
    %v3961 = vrot.slane %v3960, 2
    %v3962 = vmax.f32 %v3960, %v3961
    %v3963 = vrot.slane %v3962, 1
    %v3964 = vmax.f32 %v3962, %v3963
    %v3965 = vsel %vm3957, %v3954, -inf
    %v3966 = vrot.slane %v3965, 4
    %v3967 = vmax.f32 %v3965, %v3966
    %v3968 = vrot.slane %v3967, 2
    %v3969 = vmax.f32 %v3967, %v3968
    %v3970 = vrot.slane %v3969, 1
    %v3971 = vmax.f32 %v3969, %v3970
    %v3972 = vsub.f32 %v3949, %v3964
    %v3973 = vsub.f32 %v3954, %v3971
    %v3974 = vmul.f32 %v3972, 1.442695
    %v3975 = vpow.pop %v3974
    %v3976 = vmul.f32 %v3973, 1.442695
    %v3977 = vpow.pop %v3976
    %v3978 = vsel %vm3957, %v3975, 0.0
    %v3979 = vrot.slane %v3978, 4
    %v3980 = vadd.f32 %v3978, %v3979
    %v3981 = vrot.slane %v3980, 2
    %v3982 = vadd.f32 %v3980, %v3981
    %v3983 = vrot.slane %v3982, 1
    %v3984 = vadd.f32 %v3982, %v3983
    %v3985 = vsel %vm3957, %v3977, 0.0
    %v3986 = vrot.slane %v3985, 4
    %v3987 = vadd.f32 %v3985, %v3986
    %v3988 = vrot.slane %v3987, 2
    %v3989 = vadd.f32 %v3987, %v3988
    %v3990 = vrot.slane %v3989, 1
    %v3991 = vadd.f32 %v3989, %v3990
    %v3992 = vrcp.pop %v3984
    %v3993 = vmul.f32 %v3975, %v3992
    %v3994 = vrcp.pop %v3991
    %v3995 = vmul.f32 %v3977, %v3994
    %3997 = vset.pattern.permute.xlu0 0
    %3998 = vperm.xlu0 %3997, %v3993
    %v3999 = vpop.permute.xlu0 %3998
    %4002 = vset.pattern.permute.xlu0 0
    %4003 = vperm.xlu0 %4002, %v3995
    %v4004 = vpop.permute.xlu0 %4003
    %v4006 = vmul.f32 %v3775, %v3999
    %v4007 = vmul.f32 %v3776, %v4004
    %v4008 = vsel %vm142, %v4006, 0.0
    %v4009 = vrot.slane %v4008, 4
    %v4010 = vadd.f32 %v4008, %v4009
    %v4011 = vrot.slane %v4010, 2
    %v4012 = vadd.f32 %v4010, %v4011
    %v4013 = vrot.slane %v4012, 1
    %v4014 = vadd.f32 %v4012, %v4013
    %v4015 = vsel %vm142, %v4007, 0.0
    %v4016 = vrot.slane %v4015, 4
    %v4017 = vadd.f32 %v4015, %v4016
    %v4018 = vrot.slane %v4017, 2
    %v4019 = vadd.f32 %v4017, %v4018
    %v4020 = vrot.slane %v4019, 1
    %v4021 = vadd.f32 %v4019, %v4020
    %v4022 = vsel %vm142, %v3775, 0.0
    %v4023 = vrot.slane %v4022, 4
    %v4024 = vadd.f32 %v4022, %v4023
    %v4025 = vrot.slane %v4024, 2
    %v4026 = vadd.f32 %v4024, %v4025
    %v4027 = vrot.slane %v4026, 1
    %v4028 = vadd.f32 %v4026, %v4027
    %v4029 = vsel %vm142, %v3776, 0.0
    %v4030 = vrot.slane %v4029, 4
    %v4031 = vadd.f32 %v4029, %v4030
    %v4032 = vrot.slane %v4031, 2
    %v4033 = vadd.f32 %v4031, %v4032
    %v4034 = vrot.slane %v4033, 1
    %v4035 = vadd.f32 %v4033, %v4034
    %v4036 = vrcp.pop 8.0
    %v4037 = vmul.f32 %v4028, %v4036
    %v4038 = vmul.f32 %v4035, %v4036
    %v4039 = vrot.slane %v3776, 7
    %4044 = vrot.lane.b32.xlu0 %v4037, 32
    %v4045 = vpop.permute.xlu0 %4044
    %4046 = vrot.lane.b32.xlu0 %v4038, 32
    %v4047 = vpop.permute.xlu0 %4046
    %4052 = vrot.lane.b32.xlu0 %v4014, 64
    %v4053 = vpop.permute.xlu0 %4052
    %4054 = vrot.lane.b32.xlu0 %v4021, 64
    %v4055 = vpop.permute.xlu0 %4054
    %v4058 = vsel %vm142, %v3775, %v4045
    %v4059 = vsel %vm142, %v4039, %v4047
    %vm4060 = vcmask 523264
    %v4061 = vsel %vm4060, %v4058, %v4053
    %v4062 = vsel %vm4060, %v4059, %v4055
    %v4063 = vld [vmem:[#allocation4 + $0x2b0] sm:$0xff]
    %v4064 = vld [vmem:[#allocation4 + $0x2b8] sm:$0xff]
    %v4065 = vld [vmem:[#allocation4 + $0x2c0] sm:$0xff]
    %v4066 = vld [vmem:[#allocation4 + $0x2c8] sm:$0xff]
    %v4067 = vld [vmem:[#allocation4 + $0x2d0] sm:$0xff]
    %v4068 = vld [vmem:[#allocation4 + $0x2d8] sm:$0xff]
    %v4069 = vld [vmem:[#allocation4 + $0x2e0] sm:$0xff]
    %v4070 = vld [vmem:[#allocation4 + $0x2e8] sm:$0xff]
    %v4071 = vld [vmem:[#allocation4 + $0x2f0] sm:$0xff]
    %v4072 = vld [vmem:[#allocation4 + $0x2f8] sm:$0xff]
    %v4073 = vld [vmem:[#allocation4 + $0x300] sm:$0xff]
    %v4074 = vld [vmem:[#allocation4 + $0x308] sm:$0xff]
    %v4075 = vld [vmem:[#allocation4 + $0x310] sm:$0x1]
    %v4076 = vlaneseq
    %v4077 = vshrl.u32 %v4076, 7
    %v4078 = vsub.s32 0, %v4077
    %v4079 = vrot.slane %v4075, %v4078
    %vm4082 = vcmask 1040384
    %v4083 = vrot.slane %v4061, 7
    %v4084 = vrot.slane %v4062, 7
    %v4085 = vsel %vm4082, %v4083, %v4084
    %vm4086 = vcmask 785408
    %v4087 = vsel %vm4086, %v4085, 0
    %4089 = vmatprep.subr.mxu0 0.0
    %4090 = vmatpush1.msra.mxu0 %v4063
    %4091 = vmatprep.subr.mxu0 0.0
    %4092 = vmatpush1.msra.mxu0 %v4064
    %4093 = vmatprep.subr.mxu0 0.0
    %4094 = vmatpush1.msra.mxu0 %v4065
    %4095 = vmatprep.subr.mxu0 0.0
    %4096 = vmatpush1.msra.mxu0 %v4066
    %4097 = vmatprep.subr.mxu0 0.0
    %4098 = vmatpush1.msra.mxu0 %v4067
    %4099 = vmatprep.subr.mxu0 0.0
    %4100 = vmatpush1.msra.mxu0 %v4068
    %4101 = vmatprep.subr.mxu0 0.0
    %4102 = vmatpush1.msra.mxu0 %v4069
    %4103 = vmatprep.subr.mxu0 0.0
    %4104 = vmatpush1.msra.mxu0 %v4070
    %4105 = vmatprep.subr.mxu0 0.0
    %4106 = vmatpush1.msra.mxu0 %v4071
    %4107 = vmatprep.subr.mxu0 0.0
    %4108 = vmatpush1.msra.mxu0 %v4072
    %4109 = vmatprep.subr.mxu0 0.0
    %4110 = vmatpush1.msra.mxu0 %v4073
    %4111 = vmatprep.subr.mxu0 0.0
    %4112 = vmatpush1.msra.mxu0 %v4074
    %4113 = vmatprep.subr.mxu0 0.0
    %4114 = vmatpush1.msra.mxu0 0.0
    %4115 = vmatprep.subr.mxu0 0.0
    %4116 = vmatpush1.msra.mxu0 0.0
    %4117 = vmatprep.subr.mxu0 0.0
    %4118 = vmatpush1.msra.mxu0 0.0
    %4119 = vmatprep.subr.mxu0 0.0
    %4120 = vmatpush1.msra.mxu0 0.0
    %4121 = vmatprep.subr.mxu0 0.0
    %4122 = vmatpush1.msra.mxu0 0.0
    %4123 = vmatprep.subr.mxu0 0.0
    %4124 = vmatpush1.msra.mxu0 0.0
    %4125 = vmatprep.subr.mxu0 0.0
    %4126 = vmatpush1.msra.mxu0 0.0
    %4127 = vmatprep.subr.mxu0 0.0
    %4128 = vmatpush1.msra.mxu0 0.0
    %4129 = vmatprep.subr.mxu0 0.0
    %4130 = vmatpush1.msra.mxu0 0.0
    %4131 = vmatprep.subr.mxu0 0.0
    %4132 = vmatpush1.msra.mxu0 0.0
    %4133 = vmatprep.subr.mxu0 0.0
    %4134 = vmatpush1.msra.mxu0 0.0
    %4135 = vmatprep.subr.mxu0 0.0
    %4136 = vmatpush1.msra.mxu0 0.0
    %4137 = vmatprep.subr.mxu0 0.0
    %4138 = vmatpush1.msra.mxu0 0.0
    %4139 = vmatprep.subr.mxu0 0.0
    %4140 = vmatpush1.msra.mxu0 0.0
    %4141 = vmatprep.subr.mxu0 0.0
    %4142 = vmatpush1.msra.mxu0 0.0
    %4143 = vmatprep.subr.mxu0 0.0
    %4144 = vmatpush1.msra.mxu0 0.0
    %4145 = vmatprep.subr.mxu0 0.0
    %4146 = vmatpush1.msra.mxu0 0.0
    %4147 = vmatprep.subr.mxu0 0.0
    %4148 = vmatpush1.msra.mxu0 0.0
    %4149 = vmatprep.subr.mxu0 0.0
    %4150 = vmatpush1.msra.mxu0 0.0
    %4151 = vmatprep.subr.mxu0 0.0
    %4152 = vmatpush1.msra.mxu0 0.0
    %4153 = vmatprep.mubr.f32.mxu0 0.0
    %4154 = vmatmul.mubr.f32.gmra.mrb[0].mxu0 %v4087
    %v4155 = vpop.f32.mrb[0].mxu0
    %v4156 = vadd.f32 %v4079, %v4155
    %v4157 = vpop.f32.mrb[0].mxu0
    %4158 = vdwg.mxu0
    %vm4159 = vcmp.ge.f32.partialorder %v4156, 0.0
    %v4160 = vld [vmem:[#allocation4 + $0x318] sm:$0x1]
    %v4161 = vlaneseq
    %v4162 = vshrl.u32 %v4161, 7
    %v4163 = vsub.s32 0, %v4162
    %v4164 = vrot.slane %v4160, %v4163
    %v4165 = vmul.f32 %v4156, %v4164
    %v4166 = vsel %vm4159, %v4156, %v4165
    %v4167 = vld [vmem:[#allocation4 + $0x320] sm:$0xff]
    %v4168 = vld [vmem:[#allocation4 + $0x328] sm:$0xff]
    %v4169 = vld [vmem:[#allocation4 + $0x330] sm:$0xff]
    %v4170 = vld [vmem:[#allocation4 + $0x338] sm:$0xff]
    %v4171 = vld [vmem:[#allocation4 + $0x340] sm:$0xff]
    %v4172 = vld [vmem:[#allocation4 + $0x348] sm:$0xff]
    %v4173 = vld [vmem:[#allocation4 + $0x350] sm:$0xff]
    %v4174 = vld [vmem:[#allocation4 + $0x358] sm:$0xff]
    %v4175 = vld [vmem:[#allocation4 + $0x360] sm:$0xff]
    %v4176 = vld [vmem:[#allocation4 + $0x368] sm:$0xff]
    %v4177 = vld [vmem:[#allocation4 + $0x370] sm:$0xff]
    %v4178 = vld [vmem:[#allocation4 + $0x378] sm:$0xff]
    %v4179 = vld [vmem:[#allocation4 + $0x380] sm:$0xff]
    %v4180 = vld [vmem:[#allocation4 + $0x388] sm:$0xff]
    %v4181 = vld [vmem:[#allocation4 + $0x390] sm:$0xff]
    %v4182 = vld [vmem:[#allocation4 + $0x398] sm:$0xff]
    %v4183 = vld [vmem:[#allocation4 + $0x3a0] sm:$0x1]
    %v4184 = vlaneseq
    %v4185 = vshrl.u32 %v4184, 7
    %v4186 = vsub.s32 0, %v4185
    %v4187 = vrot.slane %v4183, %v4186
    %4188 = vmatprep.subr.mxu0 0.0
    %4189 = vmatpush1.msra.mxu0 %v4167
    %4190 = vmatprep.subr.mxu0 0.0
    %4191 = vmatpush1.msra.mxu0 %v4168
    %4192 = vmatprep.subr.mxu0 0.0
    %4193 = vmatpush1.msra.mxu0 %v4169
    %4194 = vmatprep.subr.mxu0 0.0
    %4195 = vmatpush1.msra.mxu0 %v4170
    %4196 = vmatprep.subr.mxu0 0.0
    %4197 = vmatpush1.msra.mxu0 %v4171
    %4198 = vmatprep.subr.mxu0 0.0
    %4199 = vmatpush1.msra.mxu0 %v4172
    %4200 = vmatprep.subr.mxu0 0.0
    %4201 = vmatpush1.msra.mxu0 %v4173
    %4202 = vmatprep.subr.mxu0 0.0
    %4203 = vmatpush1.msra.mxu0 %v4174
    %4204 = vmatprep.subr.mxu0 0.0
    %4205 = vmatpush1.msra.mxu0 %v4175
    %4206 = vmatprep.subr.mxu0 0.0
    %4207 = vmatpush1.msra.mxu0 %v4176
    %4208 = vmatprep.subr.mxu0 0.0
    %4209 = vmatpush1.msra.mxu0 %v4177
    %4210 = vmatprep.subr.mxu0 0.0
    %4211 = vmatpush1.msra.mxu0 %v4178
    %4212 = vmatprep.subr.mxu0 0.0
    %4213 = vmatpush1.msra.mxu0 %v4179
    %4214 = vmatprep.subr.mxu0 0.0
    %4215 = vmatpush1.msra.mxu0 %v4180
    %4216 = vmatprep.subr.mxu0 0.0
    %4217 = vmatpush1.msra.mxu0 %v4181
    %4218 = vmatprep.subr.mxu0 0.0
    %4219 = vmatpush1.msra.mxu0 %v4182
    %4220 = vmatprep.subr.mxu0 0.0
    %4221 = vmatpush1.msra.mxu0 0.0
    %4222 = vmatprep.subr.mxu0 0.0
    %4223 = vmatpush1.msra.mxu0 0.0
    %4224 = vmatprep.subr.mxu0 0.0
    %4225 = vmatpush1.msra.mxu0 0.0
    %4226 = vmatprep.subr.mxu0 0.0
    %4227 = vmatpush1.msra.mxu0 0.0
    %4228 = vmatprep.subr.mxu0 0.0
    %4229 = vmatpush1.msra.mxu0 0.0
    %4230 = vmatprep.subr.mxu0 0.0
    %4231 = vmatpush1.msra.mxu0 0.0
    %4232 = vmatprep.subr.mxu0 0.0
    %4233 = vmatpush1.msra.mxu0 0.0
    %4234 = vmatprep.subr.mxu0 0.0
    %4235 = vmatpush1.msra.mxu0 0.0
    %4236 = vmatprep.subr.mxu0 0.0
    %4237 = vmatpush1.msra.mxu0 0.0
    %4238 = vmatprep.subr.mxu0 0.0
    %4239 = vmatpush1.msra.mxu0 0.0
    %4240 = vmatprep.subr.mxu0 0.0
    %4241 = vmatpush1.msra.mxu0 0.0
    %4242 = vmatprep.subr.mxu0 0.0
    %4243 = vmatpush1.msra.mxu0 0.0
    %4244 = vmatprep.subr.mxu0 0.0
    %4245 = vmatpush1.msra.mxu0 0.0
    %4246 = vmatprep.subr.mxu0 0.0
    %4247 = vmatpush1.msra.mxu0 0.0
    %4248 = vmatprep.subr.mxu0 0.0
    %4249 = vmatpush1.msra.mxu0 0.0
    %4250 = vmatprep.subr.mxu0 0.0
    %4251 = vmatpush1.msra.mxu0 0.0
    %4252 = vmatprep.mubr.f32.mxu0 0.0
    %4253 = vmatmul.mubr.f32.gmra.mrb[0].mxu0 %v4166
    %v4254 = vpop.f32.mrb[0].mxu0
    %v4255 = vadd.f32 %v4187, %v4254
    %v4256 = vpop.f32.mrb[0].mxu0
    %4257 = vdwg.mxu0
    %vm4258 = vcmp.ge.f32.partialorder %v4255, 0.0
    %v4259 = vld [vmem:[#allocation4 + $0x3a8] sm:$0x1]
    %v4260 = vlaneseq
    %v4261 = vshrl.u32 %v4260, 7
    %v4262 = vsub.s32 0, %v4261
    %v4263 = vrot.slane %v4259, %v4262
    %v4264 = vmul.f32 %v4255, %v4263
    %v4265 = vsel %vm4258, %v4255, %v4264
    %v4266 = vld [vmem:[#allocation4 + $0x3b0] sm:$0xff]
    %v4267 = vld [vmem:[#allocation4 + $0x3b8] sm:$0xff]
    %v4268 = vld [vmem:[#allocation4 + $0x3c0] sm:$0xff]
    %v4269 = vld [vmem:[#allocation4 + $0x3c8] sm:$0xff]
    %v4270 = vld [vmem:[#allocation4 + $0x3d0] sm:$0xff]
    %v4271 = vld [vmem:[#allocation4 + $0x3d8] sm:$0xff]
    %v4272 = vld [vmem:[#allocation4 + $0x3e0] sm:$0xff]
    %v4273 = vld [vmem:[#allocation4 + $0x3e8] sm:$0xff]
    %v4274 = vld [vmem:[#allocation4 + $0x3f0] sm:$0x1]
    %v4275 = vlaneseq
    %v4276 = vshrl.u32 %v4275, 7
    %v4277 = vsub.s32 0, %v4276
    %v4278 = vrot.slane %v4274, %v4277
    %v4280 = vsel %vm4060, %v4265, 0
    %4282 = vmatprep.subr.mxu0 0.0
    %4283 = vmatpush1.msra.mxu0 %v4266
    %4284 = vmatprep.subr.mxu0 0.0
    %4285 = vmatpush1.msra.mxu0 %v4267
    %4286 = vmatprep.subr.mxu0 0.0
    %4287 = vmatpush1.msra.mxu0 %v4268
    %4288 = vmatprep.subr.mxu0 0.0
    %4289 = vmatpush1.msra.mxu0 %v4269
    %4290 = vmatprep.subr.mxu0 0.0
    %4291 = vmatpush1.msra.mxu0 %v4270
    %4292 = vmatprep.subr.mxu0 0.0
    %4293 = vmatpush1.msra.mxu0 %v4271
    %4294 = vmatprep.subr.mxu0 0.0
    %4295 = vmatpush1.msra.mxu0 %v4272
    %4296 = vmatprep.subr.mxu0 0.0
    %4297 = vmatpush1.msra.mxu0 %v4273
    %4298 = vmatprep.subr.mxu0 0.0
    %4299 = vmatpush1.msra.mxu0 0.0
    %4300 = vmatprep.subr.mxu0 0.0
    %4301 = vmatpush1.msra.mxu0 0.0
    %4302 = vmatprep.subr.mxu0 0.0
    %4303 = vmatpush1.msra.mxu0 0.0
    %4304 = vmatprep.subr.mxu0 0.0
    %4305 = vmatpush1.msra.mxu0 0.0
    %4306 = vmatprep.subr.mxu0 0.0
    %4307 = vmatpush1.msra.mxu0 0.0
    %4308 = vmatprep.subr.mxu0 0.0
    %4309 = vmatpush1.msra.mxu0 0.0
    %4310 = vmatprep.subr.mxu0 0.0
    %4311 = vmatpush1.msra.mxu0 0.0
    %4312 = vmatprep.subr.mxu0 0.0
    %4313 = vmatpush1.msra.mxu0 0.0
    %4314 = vmatprep.subr.mxu0 0.0
    %4315 = vmatpush1.msra.mxu0 0.0
    %4316 = vmatprep.subr.mxu0 0.0
    %4317 = vmatpush1.msra.mxu0 0.0
    %4318 = vmatprep.subr.mxu0 0.0
    %4319 = vmatpush1.msra.mxu0 0.0
    %4320 = vmatprep.subr.mxu0 0.0
    %4321 = vmatpush1.msra.mxu0 0.0
    %4322 = vmatprep.subr.mxu0 0.0
    %4323 = vmatpush1.msra.mxu0 0.0
    %4324 = vmatprep.subr.mxu0 0.0
    %4325 = vmatpush1.msra.mxu0 0.0
    %4326 = vmatprep.subr.mxu0 0.0
    %4327 = vmatpush1.msra.mxu0 0.0
    %4328 = vmatprep.subr.mxu0 0.0
    %4329 = vmatpush1.msra.mxu0 0.0
    %4330 = vmatprep.subr.mxu0 0.0
    %4331 = vmatpush1.msra.mxu0 0.0
    %4332 = vmatprep.subr.mxu0 0.0
    %4333 = vmatpush1.msra.mxu0 0.0
    %4334 = vmatprep.subr.mxu0 0.0
    %4335 = vmatpush1.msra.mxu0 0.0
    %4336 = vmatprep.subr.mxu0 0.0
    %4337 = vmatpush1.msra.mxu0 0.0
    %4338 = vmatprep.subr.mxu0 0.0
    %4339 = vmatpush1.msra.mxu0 0.0
    %4340 = vmatprep.subr.mxu0 0.0
    %4341 = vmatpush1.msra.mxu0 0.0
    %4342 = vmatprep.subr.mxu0 0.0
    %4343 = vmatpush1.msra.mxu0 0.0
    %4344 = vmatprep.subr.mxu0 0.0
    %4345 = vmatpush1.msra.mxu0 0.0
    %4346 = vmatprep.mubr.f32.mxu0 0.0
    %4347 = vmatmul.mubr.f32.gmra.mrb[0].mxu0 %v4280
    %v4348 = vpop.f32.mrb[0].mxu0
    %v4349 = vadd.f32 %v4278, %v4348
    %v4350 = vpop.f32.mrb[0].mxu0
    %4351 = vdwg.mxu0
    %vm4352 = vcmp.ge.f32.partialorder %v4349, 0.0
    %v4353 = vld [vmem:[#allocation4 + $0x3f8] sm:$0x1]
    %v4354 = vlaneseq
    %v4355 = vshrl.u32 %v4354, 7
    %v4356 = vsub.s32 0, %v4355
    %v4357 = vrot.slane %v4353, %v4356
    %v4358 = vmul.f32 %v4349, %v4357
    %v4359 = vsel %vm4352, %v4349, %v4358
    %v4360 = vld [vmem:[#allocation4 + $0x400] sm:$0xff]
    %v4361 = vld [vmem:[#allocation4 + $0x408] sm:$0x1]
    %v4362 = vlaneseq
    %v4363 = vshrl.u32 %v4362, 7
    %v4364 = vsub.s32 0, %v4363
    %v4365 = vrot.slane %v4361, %v4364
    %4367 = vrot.lane.b32.xlu0 %v4359, 125
    %v4368 = vpop.permute.xlu0 %4367
    %v4369 = vsel %vm47, %v4368, 0
    %4371 = vmatprep.subr.mxu0 0.0
    %4372 = vmatpush1.msra.mxu0 %v4360
    %4373 = vmatprep.subr.mxu0 0.0
    %4374 = vmatpush1.msra.mxu0 0.0
    %4375 = vmatprep.subr.mxu0 0.0
    %4376 = vmatpush1.msra.mxu0 0.0
    %4377 = vmatprep.subr.mxu0 0.0
    %4378 = vmatpush1.msra.mxu0 0.0
    %4379 = vmatprep.subr.mxu0 0.0
    %4380 = vmatpush1.msra.mxu0 0.0
    %4381 = vmatprep.subr.mxu0 0.0
    %4382 = vmatpush1.msra.mxu0 0.0
    %4383 = vmatprep.subr.mxu0 0.0
    %4384 = vmatpush1.msra.mxu0 0.0
    %4385 = vmatprep.subr.mxu0 0.0
    %4386 = vmatpush1.msra.mxu0 0.0
    %4387 = vmatprep.subr.mxu0 0.0
    %4388 = vmatpush1.msra.mxu0 0.0
    %4389 = vmatprep.subr.mxu0 0.0
    %4390 = vmatpush1.msra.mxu0 0.0
    %4391 = vmatprep.subr.mxu0 0.0
    %4392 = vmatpush1.msra.mxu0 0.0
    %4393 = vmatprep.subr.mxu0 0.0
    %4394 = vmatpush1.msra.mxu0 0.0
    %4395 = vmatprep.subr.mxu0 0.0
    %4396 = vmatpush1.msra.mxu0 0.0
    %4397 = vmatprep.subr.mxu0 0.0
    %4398 = vmatpush1.msra.mxu0 0.0
    %4399 = vmatprep.subr.mxu0 0.0
    %4400 = vmatpush1.msra.mxu0 0.0
    %4401 = vmatprep.subr.mxu0 0.0
    %4402 = vmatpush1.msra.mxu0 0.0
    %4403 = vmatprep.subr.mxu0 0.0
    %4404 = vmatpush1.msra.mxu0 0.0
    %4405 = vmatprep.subr.mxu0 0.0
    %4406 = vmatpush1.msra.mxu0 0.0
    %4407 = vmatprep.subr.mxu0 0.0
    %4408 = vmatpush1.msra.mxu0 0.0
    %4409 = vmatprep.subr.mxu0 0.0
    %4410 = vmatpush1.msra.mxu0 0.0
    %4411 = vmatprep.subr.mxu0 0.0
    %4412 = vmatpush1.msra.mxu0 0.0
    %4413 = vmatprep.subr.mxu0 0.0
    %4414 = vmatpush1.msra.mxu0 0.0
    %4415 = vmatprep.subr.mxu0 0.0
    %4416 = vmatpush1.msra.mxu0 0.0
    %4417 = vmatprep.subr.mxu0 0.0
    %4418 = vmatpush1.msra.mxu0 0.0
    %4419 = vmatprep.subr.mxu0 0.0
    %4420 = vmatpush1.msra.mxu0 0.0
    %4421 = vmatprep.subr.mxu0 0.0
    %4422 = vmatpush1.msra.mxu0 0.0
    %4423 = vmatprep.subr.mxu0 0.0
    %4424 = vmatpush1.msra.mxu0 0.0
    %4425 = vmatprep.subr.mxu0 0.0
    %4426 = vmatpush1.msra.mxu0 0.0
    %4427 = vmatprep.subr.mxu0 0.0
    %4428 = vmatpush1.msra.mxu0 0.0
    %4429 = vmatprep.subr.mxu0 0.0
    %4430 = vmatpush1.msra.mxu0 0.0
    %4431 = vmatprep.subr.mxu0 0.0
    %4432 = vmatpush1.msra.mxu0 0.0
    %4433 = vmatprep.subr.mxu0 0.0
    %4434 = vmatpush1.msra.mxu0 0.0
    %4435 = vmatprep.mubr.f32.mxu0 0.0
    %4436 = vmatmul.mubr.f32.gmra.mrb[0].mxu0 %v4369
    %v4437 = vpop.f32.mrb[0].mxu0
    %v4438 = vadd.f32 %v4365, %v4437
    %v4439 = vpop.f32.mrb[0].mxu0
    %4440 = vdwg.mxu0
    %v4441 = vand.u32 2147483647, %v4438
    %v4442 = vsub.f32 0.0, %v4441
    %v4443 = vmul.f32 %v4442, 1.442695
    %v4444 = vpow.pop %v4443
    %vm4445 = vcmp.ge.f32.partialorder %v4438, 0.0
    %v4446 = vadd.f32 %v4444, 1.0
    %v4447 = vrcp.pop %v4446
    %v4448 = vmul.f32 1.0, %v4447
    %v4449 = vmul.f32 %v4444, %v4447
    %v4450 = vsel %vm4445, %v4448, %v4449
    %4452 = vrot.lane.b32.xlu0 %v4438, 3
    %v4453 = vpop.permute.xlu0 %4452
    %4456 = vrot.lane.b32.xlu0 %v4450, 4
    %v4457 = vpop.permute.xlu0 %4456
    %vm4459 = vcmask 23552
    %v4460 = vsel %vm4459, %v4359, %v4453
    %vm4461 = vcmask 31744
    %v4462 = vsel %vm4461, %v4460, %v4457
    %vm4463 = vcmask 39936
    %v4464 = vsel %vm4463, %v4462, 0.0
    %vm4465 = vcmask 58368
    %4466 = vst.msk [vmem:[%s2] sm:$0x3] %vm4465, %v4464
    // Predicated region
    $region18: #{forward.1} parent=1 // pred_check
      _
    $region19: #{forward.1} parent=1 // pred_check_branch
      %4468 = sbr.rel (0) target = $region21
    $region20: #{forward.1} parent=1 // pred_region
      _
    $region21: #{forward.1} parent=1 // pred_fallthru
      _
    // Predicated region
    $region22: #{forward.1} parent=1 // pred_check
      _
    $region23: #{forward.1} parent=1 // pred_check_branch
      %4470 = sbr.rel (0) target = $region25
    $region24: #{forward.1} parent=1 // pred_region
      _
    $region25: #{forward.1} parent=1 // pred_fallthru
      _
    %4471 = vsyncpa [#allocation3], 1
    %4472 = vsyncpa [#allocation5], 1

</llo_original>
